<compile_context>
chip_gen: v6e
topology: v6e:2x2x1
jax: 0.10.0
libtpu: 0.0.40
codegen_flags: <defaults>
</compile_context>

<pallas_src>
import functools

import jax
import jax.numpy as jnp
from jax.experimental import pallas as pl
from jax.experimental.pallas import tpu as pltpu


# --------------------------- LSTM recurrence ------------------------------ #
def _lstm_steps(pg_sc, whh_ref, h, c, n_steps, b_pad, hidden_dim, collect):
    """Statically unrolled LSTM recurrence with [i, f, o, g] gate packing.

    pg_sc:   (n_steps * b_pad, 4H) f32 scratch with precomputed x@Wih + b
    whh_ref: (H, 4H) bf16 ref (indexed per step -- no long hoisted live range)
    h, c:    (b_pad, H) f32 state
    collect: if True, return the per-step hidden states as a list of vreg vals
    """
    H = hidden_dim
    hs = []
    for t in range(n_steps):
        pre = pg_sc[pl.ds(t * b_pad, b_pad), :]                  # (Bp, 4H) f32
        gates = pre + jnp.dot(h.astype(whh_ref.dtype), whh_ref[...],
                              preferred_element_type=jnp.float32)
        # Sigmoid via tanh identity: one EUP push for all three [i, f, o] gates.
        sig3 = 0.5 * jnp.tanh(0.5 * gates[:, 0:3 * H]) + 0.5
        i_g = sig3[:, 0 * H:1 * H]
        f_g = sig3[:, 1 * H:2 * H]
        o_g = sig3[:, 2 * H:3 * H]
        g_g = jnp.tanh(gates[:, 3 * H:4 * H])
        c = f_g * c + i_g * g_g
        h = o_g * jnp.tanh(c)
        if collect:
            hs.append(h)
    return h, c, hs


# ----------------------- fused seq2seq kernel ----------------------------- #
def _seq2seq_kernel(tar_ref,                                   # SMEM (B*S_dec,)
                    x_ref, ewih_ref, ewhh_ref, eb_ref,
                    emb_ref, dwih_ref, dwhh_ref, db_ref,
                    wl_ref, bl_ref,
                    out_ref,
                    pg_enc_sc, pg_dec_sc, proj_sc,
                    *, batch, batch_pad, hidden_dim, out_dim, s_dec):
    """Fused encoder LSTM -> (embedding+ReLU) -> decoder LSTM -> Linear -> LogSoftmax.

    x_ref:   (S_enc*Bp, D)  bf16 time-major flattened encoder input
    emb_ref: (V_pad, E)     bf16 raw embedding table (ReLU applied in-kernel)
    e/d wih: (D|E, 4H) bf16   e/d whh: (H, 4H) bf16   e/d b: (1, 4H) f32
    wl_ref:  (H, O_pad) bf16  bl_ref: (1, O_pad) f32
    out_ref: (S_dec*Bp, O_pad) f32 log-probs (lane-dense; pad cols/rows sliced
             off by the wrapper)
    """
    f32 = jnp.float32
    H = hidden_dim
    Bp = batch_pad
    S_enc = x_ref.shape[0] // Bp
    O_pad = out_ref.shape[1]

    # ---- encoder: hoisted input projection (one MXU matmul for all steps) ----
    pg_enc_sc[...] = (
        jnp.dot(x_ref[...], ewih_ref[...], preferred_element_type=f32)
        + eb_ref[...])

    # ---- fused embedding: per-vocab decoder input projection table ----------
    # relu/gather commute with the row-wise matmul, and vocab is tiny, so we
    # project the whole (padded) table once and gather pre-gate rows instead
    # of gathering embeddings in the wrapper.
    emb_rel = jnp.maximum(emb_ref[...], 0)                       # ReLU, bf16
    proj_sc[...] = (
        jnp.dot(emb_rel, dwih_ref[...], preferred_element_type=f32)
        + db_ref[...])

    # ---- gather decoder pre-gates from the projection table -----------------
    pg_dec_sc[...] = jnp.zeros_like(pg_dec_sc)     # keep pad rows finite
    for t in range(s_dec):
        for b in range(batch):
            tok = tar_ref[b * s_dec + t]                         # SMEM scalar
            pg_dec_sc[pl.ds(t * Bp + b, 1), :] = proj_sc[pl.ds(tok, 1), :]

    # ---- encoder recurrence --------------------------------------------------
    h = jnp.zeros((Bp, H), f32)
    c = jnp.zeros((Bp, H), f32)
    h, c, _ = _lstm_steps(pg_enc_sc, ewhh_ref, h, c, S_enc, Bp, H,
                          collect=False)

    # ---- decoder recurrence (seeded by encoder final state), hs in vregs ----
    h, c, hs_list = _lstm_steps(pg_dec_sc, dwhh_ref, h, c, s_dec, Bp, H,
                                collect=True)

    # ---- fused Linear + LogSoftmax epilogue (lane-dense O_pad output) -------
    hs = jnp.concatenate(hs_list, axis=0)                        # (S_dec*Bp, H)
    logits = (jnp.dot(hs.astype(wl_ref.dtype), wl_ref[...],
                      preferred_element_type=f32)
              + bl_ref[...])
    col = jax.lax.broadcasted_iota(jnp.int32, (1, O_pad), 1)
    logits = jnp.where(col < out_dim, logits, f32(-1e30))        # mask pad cols
    m = jnp.max(logits, axis=-1, keepdims=True)
    z = logits - m
    lse = jnp.log(jnp.sum(jnp.exp(z), axis=-1, keepdims=True))
    out_ref[...] = z - lse


# ----------------------------- Full forward ------------------------------- #
def seq2seq_lstm_forward(params, x, tar_seq):
    """x: (B, S_enc, input_dim) f32; tar_seq: (B, S_dec) int32.
    Returns log-probs of shape (B, S_dec, output_dim)."""
    B, S_enc, D_in = x.shape
    S_dec = tar_seq.shape[1]
    H = params["enc_whh_t"].shape[0]
    O = params["l1_w_t"].shape[1]
    V, E = params["emb"].shape
    Bp = ((B + 7) // 8) * 8                 # pad batch to sublane boundary
    O_pad = ((O + 127) // 128) * 128        # pad output to lane boundary
    Vp = ((V + 7) // 8) * 8                 # pad vocab to sublane boundary
    bf16 = jnp.bfloat16

    # Encoder input: bf16 cast folded into the relayout chain (single fusion).
    x_tm = jnp.transpose(x.astype(bf16), (1, 0, 2))              # (S_enc, B, D)
    x_tm = jnp.pad(x_tm, ((0, 0), (0, Bp - B), (0, 0)))
    x2d = x_tm.reshape(S_enc * Bp, D_in)

    # Raw embedding table (gather + ReLU happen in-kernel).
    # TODO(synk): dropout (p=0.2) applied as identity (eval-mode semantics).
    emb = jnp.pad(params["emb"].astype(bf16), ((0, Vp - V), (0, 0)))

    # Projection weights padded to a lane-dense output width.
    wl = jnp.pad(params["l1_w_t"], ((0, 0), (0, O_pad - O))).astype(bf16)
    bl = jnp.pad(params["l1_b"], ((0, 0), (0, O_pad - O)))

    # Token ids scalar-prefetched into SMEM (row-major (b, t) flatten).
    tar_flat = tar_seq.reshape(-1).astype(jnp.int32)

    kernel = functools.partial(
        _seq2seq_kernel, batch=B, batch_pad=Bp, hidden_dim=H,
        out_dim=O, s_dec=S_dec)
    vmem = pl.BlockSpec(memory_space=pltpu.MemorySpace.VMEM)

    grid_spec = pltpu.PrefetchScalarGridSpec(
        num_scalar_prefetch=1,
        grid=(1,),
        in_specs=[vmem] * 10,
        out_specs=vmem,
        scratch_shapes=[
            pltpu.VMEM((S_enc * Bp, 4 * H), jnp.float32),   # encoder pre-gates
            pltpu.VMEM((S_dec * Bp, 4 * H), jnp.float32),   # decoder pre-gates
            pltpu.VMEM((Vp, 4 * H), jnp.float32),           # vocab projection
        ])

    # Advisory cost estimate (helps XLA schedule around this small call).
    flops = int(2 * (S_enc * Bp * D_in * 4 * H
                     + Vp * E * 4 * H
                     + (S_enc + S_dec) * Bp * H * 4 * H
                     + S_dec * Bp * H * O_pad))
    transcendentals = int((S_enc + S_dec) * Bp * 5 * H
                          + S_dec * Bp * (O_pad + 1))
    bytes_accessed = int(
        x2d.size * 2 + emb.size * 2 + tar_flat.size * 4
        + (params["enc_wih_t"].size + params["enc_whh_t"].size
           + params["dec_wih_t"].size + params["dec_whh_t"].size
           + wl.size) * 2
        + (params["enc_b"].size + params["dec_b"].size + bl.size) * 4
        + S_dec * Bp * O_pad * 4)

    out2d = pl.pallas_call(
        kernel,
        out_shape=jax.ShapeDtypeStruct((S_dec * Bp, O_pad), jnp.float32),
        grid_spec=grid_spec,
        compiler_params=pltpu.CompilerParams(
            dimension_semantics=("arbitrary",),
            vmem_limit_bytes=32 * 1024 * 1024),
        cost_estimate=pl.CostEstimate(
            flops=flops, transcendentals=transcendentals,
            bytes_accessed=bytes_accessed),
    )(tar_flat,
      x2d,
      params["enc_wih_t"].astype(bf16), params["enc_whh_t"].astype(bf16),
      params["enc_b"],
      emb,
      params["dec_wih_t"].astype(bf16), params["dec_whh_t"].astype(bf16),
      params["dec_b"],
      wl, bl)

    logp = out2d.reshape(S_dec, Bp, O_pad)
    logp = jnp.transpose(logp, (1, 0, 2))[:B, :, :O]             # (B, S_dec, O)
    return logp


# ----------------------------- Param init --------------------------------- #
def init_params(key, *, input_dim, hidden_dim, embed_dim, output_dim,
                tar_seq_dim, padding_idx=6):
    """LSTM weights stored transposed (in_dim, 4H) with kernel gate packing
    [i, f, o, g].  (PyTorch packs [i, f, g, o]; a real checkpoint would need a
    column permute of the 4H axis — init here is random uniform so packing
    order is a pure convention.)"""
    keys = jax.random.split(key, 12)
    H = hidden_dim
    scale = 1.0 / jnp.sqrt(H)

    def u(k, shape):
        return jax.random.uniform(k, shape, jnp.float32, -scale, scale)

    # Encoder LSTM
    enc_wih_t = u(keys[0], (input_dim, 4 * H))
    enc_whh_t = u(keys[1], (H, 4 * H))
    enc_b = (u(keys[2], (4 * H,)) + u(keys[3], (4 * H,))).reshape(1, 4 * H)

    # Decoder LSTM
    dec_wih_t = u(keys[4], (embed_dim, 4 * H))
    dec_whh_t = u(keys[5], (H, 4 * H))
    dec_b = (u(keys[6], (4 * H,)) + u(keys[7], (4 * H,))).reshape(1, 4 * H)

    # Embedding: N(0, 1), padding row zeroed
    emb = jax.random.normal(keys[8], (tar_seq_dim, embed_dim), jnp.float32)
    emb = emb.at[padding_idx].set(0.0)

    # Linear (transposed)
    l1_w_t = u(keys[9], (H, output_dim))
    l1_b = u(keys[10], (output_dim,)).reshape(1, output_dim)

    return dict(enc_wih_t=enc_wih_t, enc_whh_t=enc_whh_t, enc_b=enc_b,
                dec_wih_t=dec_wih_t, dec_whh_t=dec_whh_t, dec_b=dec_b,
                emb=emb, l1_w_t=l1_w_t, l1_b=l1_b)


if __name__ == "__main__":
    # Small shapes consistent with the module structure.
    B = 2
    S_ENC = 8
    S_DEC = 7
    INPUT_DIM = 128
    HIDDEN_DIM = 128
    EMBED_DIM = 128
    OUTPUT_DIM = 7
    TAR_SEQ_DIM = 7   # vocab size for the embedding (padding_idx = 6)

    key = jax.random.PRNGKey(0)
    k_param, k_x, k_tar = jax.random.split(key, 3)

    params = init_params(
        k_param, input_dim=INPUT_DIM, hidden_dim=HIDDEN_DIM,
        embed_dim=EMBED_DIM, output_dim=OUTPUT_DIM, tar_seq_dim=TAR_SEQ_DIM)

    x = jax.random.normal(k_x, (B, S_ENC, INPUT_DIM), jnp.float32)
    tar_seq = jax.random.randint(k_tar, (B, S_DEC), 0, TAR_SEQ_DIM, jnp.int32)

    fwd = jax.jit(seq2seq_lstm_forward)
    prediction = fwd(params, x, tar_seq)
    prediction = jax.block_until_ready(prediction)

    assert prediction.shape == (B, S_DEC, OUTPUT_DIM), prediction.shape
    assert bool(jnp.all(jnp.isfinite(prediction)))
    # log-softmax rows should exponentiate-sum to ~1
    row_sums = jnp.exp(prediction).sum(axis=-1)
    assert bool(jnp.allclose(row_sums, 1.0, atol=1e-4))

    print("KERNEL_OK")
</pallas_src>

<mosaic_0001>
module attributes {stable_mosaic.version = 11 : i64} {
  func.func @_seq2seq_kernel(%arg0: i32, %arg1: memref<14xi32, #tpu.memory_space<smem>>, %arg2: memref<64x128xbf16, #tpu.memory_space<vmem>>, %arg3: memref<128x512xbf16, #tpu.memory_space<vmem>>, %arg4: memref<128x512xbf16, #tpu.memory_space<vmem>>, %arg5: memref<1x512xf32, #tpu.memory_space<vmem>>, %arg6: memref<8x128xbf16, #tpu.memory_space<vmem>>, %arg7: memref<128x512xbf16, #tpu.memory_space<vmem>>, %arg8: memref<128x512xbf16, #tpu.memory_space<vmem>>, %arg9: memref<1x512xf32, #tpu.memory_space<vmem>>, %arg10: memref<128x128xbf16, #tpu.memory_space<vmem>>, %arg11: memref<1x128xf32, #tpu.memory_space<vmem>>, %arg12: memref<56x128xf32, #tpu.memory_space<vmem>>, %arg13: memref<64x512xf32, #tpu.memory_space<vmem>>, %arg14: memref<56x512xf32, #tpu.memory_space<vmem>>, %arg15: memref<8x512xf32, #tpu.memory_space<vmem>>) attributes {dimension_semantics = [#tpu.dimension_semantics<arbitrary>], iteration_bounds = array<i64: 1>, scalar_prefetch = 1 : i64, scratch_operands = 3 : i64, tpu.core_type = #tpu.core_type<tc>, window_params = [{pipeline_mode = #tpu.pipeline_mode<synchronous>, transform_indices = @transform_0, window_bounds = array<i64: 64, 128>}, {pipeline_mode = #tpu.pipeline_mode<synchronous>, transform_indices = @transform_1, window_bounds = array<i64: 128, 512>}, {pipeline_mode = #tpu.pipeline_mode<synchronous>, transform_indices = @transform_2, window_bounds = array<i64: 128, 512>}, {pipeline_mode = #tpu.pipeline_mode<synchronous>, transform_indices = @transform_3, window_bounds = array<i64: 1, 512>}, {pipeline_mode = #tpu.pipeline_mode<synchronous>, transform_indices = @transform_4, window_bounds = array<i64: 8, 128>}, {pipeline_mode = #tpu.pipeline_mode<synchronous>, transform_indices = @transform_5, window_bounds = array<i64: 128, 512>}, {pipeline_mode = #tpu.pipeline_mode<synchronous>, transform_indices = @transform_6, window_bounds = array<i64: 128, 512>}, {pipeline_mode = #tpu.pipeline_mode<synchronous>, transform_indices = @transform_7, window_bounds = array<i64: 1, 512>}, {pipeline_mode = #tpu.pipeline_mode<synchronous>, transform_indices = @transform_8, window_bounds = array<i64: 128, 128>}, {pipeline_mode = #tpu.pipeline_mode<synchronous>, transform_indices = @transform_9, window_bounds = array<i64: 1, 128>}, {pipeline_mode = #tpu.pipeline_mode<synchronous>, transform_indices = @transform_10, window_bounds = array<i64: 56, 128>}]} {
    %c0 = arith.constant 0 : index
    %c0_0 = arith.constant 0 : index
    %0 = vector.load %arg2[%c0, %c0_0] : memref<64x128xbf16, #tpu.memory_space<vmem>>, vector<64x128xbf16>
    %c0_1 = arith.constant 0 : index
    %c0_2 = arith.constant 0 : index
    %1 = vector.load %arg3[%c0_1, %c0_2] : memref<128x512xbf16, #tpu.memory_space<vmem>>, vector<128x512xbf16>
    %cst = arith.constant dense<0.000000e+00> : vector<64x512xf32>
    %2 = tpu.matmul %0, %1, %cst {dimension_numbers = #tpu.dot_dimension_numbers<[1], [0], [0], [1], [0, 0, 1, 1], [], []>} : vector<64x128xbf16>, vector<128x512xbf16>, vector<64x512xf32> -> vector<64x512xf32>
    %c0_3 = arith.constant 0 : index
    %c0_4 = arith.constant 0 : index
    %3 = vector.load %arg5[%c0_3, %c0_4] : memref<1x512xf32, #tpu.memory_space<vmem>>, vector<1x512xf32>
    %4 = vector.broadcast %3 : vector<1x512xf32> to vector<64x512xf32>
    %5 = arith.addf %2, %4 : vector<64x512xf32>
    %c0_5 = arith.constant 0 : index
    %c0_6 = arith.constant 0 : index
    %6 = vector.load %arg13[%c0_5, %c0_6] : memref<64x512xf32, #tpu.memory_space<vmem>>, vector<64x512xf32>
    tpu.vector_store %arg13[%c0_5, %c0_6], %5 {strides = array<i32>} : memref<64x512xf32, #tpu.memory_space<vmem>>, vector<64x512xf32>,
    %c0_7 = arith.constant 0 : index
    %c0_8 = arith.constant 0 : index
    %7 = vector.load %arg6[%c0_7, %c0_8] : memref<8x128xbf16, #tpu.memory_space<vmem>>, vector<8x128xbf16>
    %cst_9 = arith.constant 0.000000e+00 : bf16
    %8 = vector.broadcast %cst_9 : bf16 to vector<8x128xbf16>
    %9 = arith.maximumf %7, %8 : vector<8x128xbf16>
    %c0_10 = arith.constant 0 : index
    %c0_11 = arith.constant 0 : index
    %10 = vector.load %arg7[%c0_10, %c0_11] : memref<128x512xbf16, #tpu.memory_space<vmem>>, vector<128x512xbf16>
    %cst_12 = arith.constant dense<0.000000e+00> : vector<8x512xf32>
    %11 = tpu.matmul %9, %10, %cst_12 {dimension_numbers = #tpu.dot_dimension_numbers<[1], [0], [0], [1], [0, 0, 1, 1], [], []>} : vector<8x128xbf16>, vector<128x512xbf16>, vector<8x512xf32> -> vector<8x512xf32>
    %c0_13 = arith.constant 0 : index
    %c0_14 = arith.constant 0 : index
    %12 = vector.load %arg9[%c0_13, %c0_14] : memref<1x512xf32, #tpu.memory_space<vmem>>, vector<1x512xf32>
    %13 = vector.broadcast %12 : vector<1x512xf32> to vector<8x512xf32>
    %14 = arith.addf %11, %13 : vector<8x512xf32>
    %c0_15 = arith.constant 0 : index
    %c0_16 = arith.constant 0 : index
    %15 = vector.load %arg15[%c0_15, %c0_16] : memref<8x512xf32, #tpu.memory_space<vmem>>, vector<8x512xf32>
    tpu.vector_store %arg15[%c0_15, %c0_16], %14 {strides = array<i32>} : memref<8x512xf32, #tpu.memory_space<vmem>>, vector<8x512xf32>,
    %cst_17 = arith.constant 0.000000e+00 : f32
    %16 = vector.broadcast %cst_17 : f32 to vector<56x512xf32>
    %c0_18 = arith.constant 0 : index
    %c0_19 = arith.constant 0 : index
    %17 = vector.load %arg14[%c0_18, %c0_19] : memref<56x512xf32, #tpu.memory_space<vmem>>, vector<56x512xf32>
    tpu.vector_store %arg14[%c0_18, %c0_19], %16 {strides = array<i32>} : memref<56x512xf32, #tpu.memory_space<vmem>>, vector<56x512xf32>,
    %c0_20 = arith.constant 0 : index
    %18 = memref.load %arg1[%c0_20] : memref<14xi32, #tpu.memory_space<smem>>
    %19 = arith.index_cast %18 : i32 to index
    %c0_21 = arith.constant 0 : index
    %20 = vector.load %arg15[%19, %c0_21] : memref<8x512xf32, #tpu.memory_space<vmem>>, vector<1x512xf32>
    %c0_22 = arith.constant 0 : index
    %c0_23 = arith.constant 0 : index
    %21 = vector.load %arg14[%c0_22, %c0_23] : memref<56x512xf32, #tpu.memory_space<vmem>>, vector<1x512xf32>
    tpu.vector_store %arg14[%c0_22, %c0_23], %20 {strides = array<i32>} : memref<56x512xf32, #tpu.memory_space<vmem>>, vector<1x512xf32>,
    %c7 = arith.constant 7 : index
    %22 = memref.load %arg1[%c7] : memref<14xi32, #tpu.memory_space<smem>>
    %23 = arith.index_cast %22 : i32 to index
    %c0_24 = arith.constant 0 : index
    %24 = vector.load %arg15[%23, %c0_24] : memref<8x512xf32, #tpu.memory_space<vmem>>, vector<1x512xf32>
    %c1 = arith.constant 1 : index
    %c0_25 = arith.constant 0 : index
    %25 = vector.load %arg14[%c1, %c0_25] : memref<56x512xf32, #tpu.memory_space<vmem>>, vector<1x512xf32>
    tpu.vector_store %arg14[%c1, %c0_25], %24 {strides = array<i32>} : memref<56x512xf32, #tpu.memory_space<vmem>>, vector<1x512xf32>,
    %c1_26 = arith.constant 1 : index
    %26 = memref.load %arg1[%c1_26] : memref<14xi32, #tpu.memory_space<smem>>
    %27 = arith.index_cast %26 : i32 to index
    %c0_27 = arith.constant 0 : index
    %28 = vector.load %arg15[%27, %c0_27] : memref<8x512xf32, #tpu.memory_space<vmem>>, vector<1x512xf32>
    %c8 = arith.constant 8 : index
    %c0_28 = arith.constant 0 : index
    %29 = vector.load %arg14[%c8, %c0_28] : memref<56x512xf32, #tpu.memory_space<vmem>>, vector<1x512xf32>
    tpu.vector_store %arg14[%c8, %c0_28], %28 {strides = array<i32>} : memref<56x512xf32, #tpu.memory_space<vmem>>, vector<1x512xf32>,
    %c8_29 = arith.constant 8 : index
    %30 = memref.load %arg1[%c8_29] : memref<14xi32, #tpu.memory_space<smem>>
    %31 = arith.index_cast %30 : i32 to index
    %c0_30 = arith.constant 0 : index
    %32 = vector.load %arg15[%31, %c0_30] : memref<8x512xf32, #tpu.memory_space<vmem>>, vector<1x512xf32>
    %c9 = arith.constant 9 : index
    %c0_31 = arith.constant 0 : index
    %33 = vector.load %arg14[%c9, %c0_31] : memref<56x512xf32, #tpu.memory_space<vmem>>, vector<1x512xf32>
    tpu.vector_store %arg14[%c9, %c0_31], %32 {strides = array<i32>} : memref<56x512xf32, #tpu.memory_space<vmem>>, vector<1x512xf32>,
    %c2 = arith.constant 2 : index
    %34 = memref.load %arg1[%c2] : memref<14xi32, #tpu.memory_space<smem>>
    %35 = arith.index_cast %34 : i32 to index
    %c0_32 = arith.constant 0 : index
    %36 = vector.load %arg15[%35, %c0_32] : memref<8x512xf32, #tpu.memory_space<vmem>>, vector<1x512xf32>
    %c16 = arith.constant 16 : index
    %c0_33 = arith.constant 0 : index
    %37 = vector.load %arg14[%c16, %c0_33] : memref<56x512xf32, #tpu.memory_space<vmem>>, vector<1x512xf32>
    tpu.vector_store %arg14[%c16, %c0_33], %36 {strides = array<i32>} : memref<56x512xf32, #tpu.memory_space<vmem>>, vector<1x512xf32>,
    %c9_34 = arith.constant 9 : index
    %38 = memref.load %arg1[%c9_34] : memref<14xi32, #tpu.memory_space<smem>>
    %39 = arith.index_cast %38 : i32 to index
    %c0_35 = arith.constant 0 : index
    %40 = vector.load %arg15[%39, %c0_35] : memref<8x512xf32, #tpu.memory_space<vmem>>, vector<1x512xf32>
    %c17 = arith.constant 17 : index
    %c0_36 = arith.constant 0 : index
    %41 = vector.load %arg14[%c17, %c0_36] : memref<56x512xf32, #tpu.memory_space<vmem>>, vector<1x512xf32>
    tpu.vector_store %arg14[%c17, %c0_36], %40 {strides = array<i32>} : memref<56x512xf32, #tpu.memory_space<vmem>>, vector<1x512xf32>,
    %c3 = arith.constant 3 : index
    %42 = memref.load %arg1[%c3] : memref<14xi32, #tpu.memory_space<smem>>
    %43 = arith.index_cast %42 : i32 to index
    %c0_37 = arith.constant 0 : index
    %44 = vector.load %arg15[%43, %c0_37] : memref<8x512xf32, #tpu.memory_space<vmem>>, vector<1x512xf32>
    %c24 = arith.constant 24 : index
    %c0_38 = arith.constant 0 : index
    %45 = vector.load %arg14[%c24, %c0_38] : memref<56x512xf32, #tpu.memory_space<vmem>>, vector<1x512xf32>
    tpu.vector_store %arg14[%c24, %c0_38], %44 {strides = array<i32>} : memref<56x512xf32, #tpu.memory_space<vmem>>, vector<1x512xf32>,
    %c10 = arith.constant 10 : index
    %46 = memref.load %arg1[%c10] : memref<14xi32, #tpu.memory_space<smem>>
    %47 = arith.index_cast %46 : i32 to index
    %c0_39 = arith.constant 0 : index
    %48 = vector.load %arg15[%47, %c0_39] : memref<8x512xf32, #tpu.memory_space<vmem>>, vector<1x512xf32>
    %c25 = arith.constant 25 : index
    %c0_40 = arith.constant 0 : index
    %49 = vector.load %arg14[%c25, %c0_40] : memref<56x512xf32, #tpu.memory_space<vmem>>, vector<1x512xf32>
    tpu.vector_store %arg14[%c25, %c0_40], %48 {strides = array<i32>} : memref<56x512xf32, #tpu.memory_space<vmem>>, vector<1x512xf32>,
    %c4 = arith.constant 4 : index
    %50 = memref.load %arg1[%c4] : memref<14xi32, #tpu.memory_space<smem>>
    %51 = arith.index_cast %50 : i32 to index
    %c0_41 = arith.constant 0 : index
    %52 = vector.load %arg15[%51, %c0_41] : memref<8x512xf32, #tpu.memory_space<vmem>>, vector<1x512xf32>
    %c32 = arith.constant 32 : index
    %c0_42 = arith.constant 0 : index
    %53 = vector.load %arg14[%c32, %c0_42] : memref<56x512xf32, #tpu.memory_space<vmem>>, vector<1x512xf32>
    tpu.vector_store %arg14[%c32, %c0_42], %52 {strides = array<i32>} : memref<56x512xf32, #tpu.memory_space<vmem>>, vector<1x512xf32>,
    %c11 = arith.constant 11 : index
    %54 = memref.load %arg1[%c11] : memref<14xi32, #tpu.memory_space<smem>>
    %55 = arith.index_cast %54 : i32 to index
    %c0_43 = arith.constant 0 : index
    %56 = vector.load %arg15[%55, %c0_43] : memref<8x512xf32, #tpu.memory_space<vmem>>, vector<1x512xf32>
    %c33 = arith.constant 33 : index
    %c0_44 = arith.constant 0 : index
    %57 = vector.load %arg14[%c33, %c0_44] : memref<56x512xf32, #tpu.memory_space<vmem>>, vector<1x512xf32>
    tpu.vector_store %arg14[%c33, %c0_44], %56 {strides = array<i32>} : memref<56x512xf32, #tpu.memory_space<vmem>>, vector<1x512xf32>,
    %c5 = arith.constant 5 : index
    %58 = memref.load %arg1[%c5] : memref<14xi32, #tpu.memory_space<smem>>
    %59 = arith.index_cast %58 : i32 to index
    %c0_45 = arith.constant 0 : index
    %60 = vector.load %arg15[%59, %c0_45] : memref<8x512xf32, #tpu.memory_space<vmem>>, vector<1x512xf32>
    %c40 = arith.constant 40 : index
    %c0_46 = arith.constant 0 : index
    %61 = vector.load %arg14[%c40, %c0_46] : memref<56x512xf32, #tpu.memory_space<vmem>>, vector<1x512xf32>
    tpu.vector_store %arg14[%c40, %c0_46], %60 {strides = array<i32>} : memref<56x512xf32, #tpu.memory_space<vmem>>, vector<1x512xf32>,
    %c12 = arith.constant 12 : index
    %62 = memref.load %arg1[%c12] : memref<14xi32, #tpu.memory_space<smem>>
    %63 = arith.index_cast %62 : i32 to index
    %c0_47 = arith.constant 0 : index
    %64 = vector.load %arg15[%63, %c0_47] : memref<8x512xf32, #tpu.memory_space<vmem>>, vector<1x512xf32>
    %c41 = arith.constant 41 : index
    %c0_48 = arith.constant 0 : index
    %65 = vector.load %arg14[%c41, %c0_48] : memref<56x512xf32, #tpu.memory_space<vmem>>, vector<1x512xf32>
    tpu.vector_store %arg14[%c41, %c0_48], %64 {strides = array<i32>} : memref<56x512xf32, #tpu.memory_space<vmem>>, vector<1x512xf32>,
    %c6 = arith.constant 6 : index
    %66 = memref.load %arg1[%c6] : memref<14xi32, #tpu.memory_space<smem>>
    %67 = arith.index_cast %66 : i32 to index
    %c0_49 = arith.constant 0 : index
    %68 = vector.load %arg15[%67, %c0_49] : memref<8x512xf32, #tpu.memory_space<vmem>>, vector<1x512xf32>
    %c48 = arith.constant 48 : index
    %c0_50 = arith.constant 0 : index
    %69 = vector.load %arg14[%c48, %c0_50] : memref<56x512xf32, #tpu.memory_space<vmem>>, vector<1x512xf32>
    tpu.vector_store %arg14[%c48, %c0_50], %68 {strides = array<i32>} : memref<56x512xf32, #tpu.memory_space<vmem>>, vector<1x512xf32>,
    %c13 = arith.constant 13 : index
    %70 = memref.load %arg1[%c13] : memref<14xi32, #tpu.memory_space<smem>>
    %71 = arith.index_cast %70 : i32 to index
    %c0_51 = arith.constant 0 : index
    %72 = vector.load %arg15[%71, %c0_51] : memref<8x512xf32, #tpu.memory_space<vmem>>, vector<1x512xf32>
    %c49 = arith.constant 49 : index
    %c0_52 = arith.constant 0 : index
    %73 = vector.load %arg14[%c49, %c0_52] : memref<56x512xf32, #tpu.memory_space<vmem>>, vector<1x512xf32>
    tpu.vector_store %arg14[%c49, %c0_52], %72 {strides = array<i32>} : memref<56x512xf32, #tpu.memory_space<vmem>>, vector<1x512xf32>,
    %cst_53 = arith.constant 0.000000e+00 : f32
    %74 = vector.broadcast %cst_53 : f32 to vector<8x128xf32>
    %cst_54 = arith.constant 0.000000e+00 : f32
    %75 = vector.broadcast %cst_54 : f32 to vector<8x128xf32>
    %c0_55 = arith.constant 0 : index
    %c0_56 = arith.constant 0 : index
    %76 = vector.load %arg13[%c0_55, %c0_56] : memref<64x512xf32, #tpu.memory_space<vmem>>, vector<8x512xf32>
    %77 = arith.truncf %74 : vector<8x128xf32> to vector<8x128xbf16>
    %c0_57 = arith.constant 0 : index
    %c0_58 = arith.constant 0 : index
    %78 = vector.load %arg4[%c0_57, %c0_58] : memref<128x512xbf16, #tpu.memory_space<vmem>>, vector<128x512xbf16>
    %cst_59 = arith.constant dense<0.000000e+00> : vector<8x512xf32>
    %79 = tpu.matmul %77, %78, %cst_59 {dimension_numbers = #tpu.dot_dimension_numbers<[1], [0], [0], [1], [0, 0, 1, 1], [], []>} : vector<8x128xbf16>, vector<128x512xbf16>, vector<8x512xf32> -> vector<8x512xf32>
    %80 = arith.addf %76, %79 : vector<8x512xf32>
    %81 = vector.extract_strided_slice %80 {offsets = [0, 0], sizes = [8, 384], strides = [1, 1]} : vector<8x512xf32> to vector<8x384xf32>
    %cst_60 = arith.constant 5.000000e-01 : f32
    %82 = vector.broadcast %cst_60 : f32 to vector<8x384xf32>
    %83 = arith.mulf %82, %81 : vector<8x384xf32>
    %84 = math.tanh %83 : vector<8x384xf32>
    %cst_61 = arith.constant 5.000000e-01 : f32
    %85 = vector.broadcast %cst_61 : f32 to vector<8x384xf32>
    %86 = arith.mulf %85, %84 : vector<8x384xf32>
    %cst_62 = arith.constant 5.000000e-01 : f32
    %87 = vector.broadcast %cst_62 : f32 to vector<8x384xf32>
    %88 = arith.addf %86, %87 : vector<8x384xf32>
    %89 = vector.extract_strided_slice %88 {offsets = [0, 0], sizes = [8, 128], strides = [1, 1]} : vector<8x384xf32> to vector<8x128xf32>
    %90 = vector.extract_strided_slice %88 {offsets = [0, 128], sizes = [8, 128], strides = [1, 1]} : vector<8x384xf32> to vector<8x128xf32>
    %91 = vector.extract_strided_slice %88 {offsets = [0, 256], sizes = [8, 128], strides = [1, 1]} : vector<8x384xf32> to vector<8x128xf32>
    %92 = vector.extract_strided_slice %80 {offsets = [0, 384], sizes = [8, 128], strides = [1, 1]} : vector<8x512xf32> to vector<8x128xf32>
    %93 = math.tanh %92 : vector<8x128xf32>
    %94 = arith.mulf %90, %75 : vector<8x128xf32>
    %95 = arith.mulf %89, %93 : vector<8x128xf32>
    %96 = arith.addf %94, %95 : vector<8x128xf32>
    %97 = math.tanh %96 : vector<8x128xf32>
    %98 = arith.mulf %91, %97 : vector<8x128xf32>
    %c8_63 = arith.constant 8 : index
    %c0_64 = arith.constant 0 : index
    %99 = vector.load %arg13[%c8_63, %c0_64] : memref<64x512xf32, #tpu.memory_space<vmem>>, vector<8x512xf32>
    %100 = arith.truncf %98 : vector<8x128xf32> to vector<8x128xbf16>
    %c0_65 = arith.constant 0 : index
    %c0_66 = arith.constant 0 : index
    %101 = vector.load %arg4[%c0_65, %c0_66] : memref<128x512xbf16, #tpu.memory_space<vmem>>, vector<128x512xbf16>
    %cst_67 = arith.constant dense<0.000000e+00> : vector<8x512xf32>
    %102 = tpu.matmul %100, %101, %cst_67 {dimension_numbers = #tpu.dot_dimension_numbers<[1], [0], [0], [1], [0, 0, 1, 1], [], []>} : vector<8x128xbf16>, vector<128x512xbf16>, vector<8x512xf32> -> vector<8x512xf32>
    %103 = arith.addf %99, %102 : vector<8x512xf32>
    %104 = vector.extract_strided_slice %103 {offsets = [0, 0], sizes = [8, 384], strides = [1, 1]} : vector<8x512xf32> to vector<8x384xf32>
    %cst_68 = arith.constant 5.000000e-01 : f32
    %105 = vector.broadcast %cst_68 : f32 to vector<8x384xf32>
    %106 = arith.mulf %105, %104 : vector<8x384xf32>
    %107 = math.tanh %106 : vector<8x384xf32>
    %cst_69 = arith.constant 5.000000e-01 : f32
    %108 = vector.broadcast %cst_69 : f32 to vector<8x384xf32>
    %109 = arith.mulf %108, %107 : vector<8x384xf32>
    %cst_70 = arith.constant 5.000000e-01 : f32
    %110 = vector.broadcast %cst_70 : f32 to vector<8x384xf32>
    %111 = arith.addf %109, %110 : vector<8x384xf32>
    %112 = vector.extract_strided_slice %111 {offsets = [0, 0], sizes = [8, 128], strides = [1, 1]} : vector<8x384xf32> to vector<8x128xf32>
    %113 = vector.extract_strided_slice %111 {offsets = [0, 128], sizes = [8, 128], strides = [1, 1]} : vector<8x384xf32> to vector<8x128xf32>
    %114 = vector.extract_strided_slice %111 {offsets = [0, 256], sizes = [8, 128], strides = [1, 1]} : vector<8x384xf32> to vector<8x128xf32>
    %115 = vector.extract_strided_slice %103 {offsets = [0, 384], sizes = [8, 128], strides = [1, 1]} : vector<8x512xf32> to vector<8x128xf32>
    %116 = math.tanh %115 : vector<8x128xf32>
    %117 = arith.mulf %113, %96 : vector<8x128xf32>
    %118 = arith.mulf %112, %116 : vector<8x128xf32>
    %119 = arith.addf %117, %118 : vector<8x128xf32>
    %120 = math.tanh %119 : vector<8x128xf32>
    %121 = arith.mulf %114, %120 : vector<8x128xf32>
    %c16_71 = arith.constant 16 : index
    %c0_72 = arith.constant 0 : index
    %122 = vector.load %arg13[%c16_71, %c0_72] : memref<64x512xf32, #tpu.memory_space<vmem>>, vector<8x512xf32>
    %123 = arith.truncf %121 : vector<8x128xf32> to vector<8x128xbf16>
    %c0_73 = arith.constant 0 : index
    %c0_74 = arith.constant 0 : index
    %124 = vector.load %arg4[%c0_73, %c0_74] : memref<128x512xbf16, #tpu.memory_space<vmem>>, vector<128x512xbf16>
    %cst_75 = arith.constant dense<0.000000e+00> : vector<8x512xf32>
    %125 = tpu.matmul %123, %124, %cst_75 {dimension_numbers = #tpu.dot_dimension_numbers<[1], [0], [0], [1], [0, 0, 1, 1], [], []>} : vector<8x128xbf16>, vector<128x512xbf16>, vector<8x512xf32> -> vector<8x512xf32>
    %126 = arith.addf %122, %125 : vector<8x512xf32>
    %127 = vector.extract_strided_slice %126 {offsets = [0, 0], sizes = [8, 384], strides = [1, 1]} : vector<8x512xf32> to vector<8x384xf32>
    %cst_76 = arith.constant 5.000000e-01 : f32
    %128 = vector.broadcast %cst_76 : f32 to vector<8x384xf32>
    %129 = arith.mulf %128, %127 : vector<8x384xf32>
    %130 = math.tanh %129 : vector<8x384xf32>
    %cst_77 = arith.constant 5.000000e-01 : f32
    %131 = vector.broadcast %cst_77 : f32 to vector<8x384xf32>
    %132 = arith.mulf %131, %130 : vector<8x384xf32>
    %cst_78 = arith.constant 5.000000e-01 : f32
    %133 = vector.broadcast %cst_78 : f32 to vector<8x384xf32>
    %134 = arith.addf %132, %133 : vector<8x384xf32>
    %135 = vector.extract_strided_slice %134 {offsets = [0, 0], sizes = [8, 128], strides = [1, 1]} : vector<8x384xf32> to vector<8x128xf32>
    %136 = vector.extract_strided_slice %134 {offsets = [0, 128], sizes = [8, 128], strides = [1, 1]} : vector<8x384xf32> to vector<8x128xf32>
    %137 = vector.extract_strided_slice %134 {offsets = [0, 256], sizes = [8, 128], strides = [1, 1]} : vector<8x384xf32> to vector<8x128xf32>
    %138 = vector.extract_strided_slice %126 {offsets = [0, 384], sizes = [8, 128], strides = [1, 1]} : vector<8x512xf32> to vector<8x128xf32>
    %139 = math.tanh %138 : vector<8x128xf32>
    %140 = arith.mulf %136, %119 : vector<8x128xf32>
    %141 = arith.mulf %135, %139 : vector<8x128xf32>
    %142 = arith.addf %140, %141 : vector<8x128xf32>
    %143 = math.tanh %142 : vector<8x128xf32>
    %144 = arith.mulf %137, %143 : vector<8x128xf32>
    %c24_79 = arith.constant 24 : index
    %c0_80 = arith.constant 0 : index
    %145 = vector.load %arg13[%c24_79, %c0_80] : memref<64x512xf32, #tpu.memory_space<vmem>>, vector<8x512xf32>
    %146 = arith.truncf %144 : vector<8x128xf32> to vector<8x128xbf16>
    %c0_81 = arith.constant 0 : index
    %c0_82 = arith.constant 0 : index
    %147 = vector.load %arg4[%c0_81, %c0_82] : memref<128x512xbf16, #tpu.memory_space<vmem>>, vector<128x512xbf16>
    %cst_83 = arith.constant dense<0.000000e+00> : vector<8x512xf32>
    %148 = tpu.matmul %146, %147, %cst_83 {dimension_numbers = #tpu.dot_dimension_numbers<[1], [0], [0], [1], [0, 0, 1, 1], [], []>} : vector<8x128xbf16>, vector<128x512xbf16>, vector<8x512xf32> -> vector<8x512xf32>
    %149 = arith.addf %145, %148 : vector<8x512xf32>
    %150 = vector.extract_strided_slice %149 {offsets = [0, 0], sizes = [8, 384], strides = [1, 1]} : vector<8x512xf32> to vector<8x384xf32>
    %cst_84 = arith.constant 5.000000e-01 : f32
    %151 = vector.broadcast %cst_84 : f32 to vector<8x384xf32>
    %152 = arith.mulf %151, %150 : vector<8x384xf32>
    %153 = math.tanh %152 : vector<8x384xf32>
    %cst_85 = arith.constant 5.000000e-01 : f32
    %154 = vector.broadcast %cst_85 : f32 to vector<8x384xf32>
    %155 = arith.mulf %154, %153 : vector<8x384xf32>
    %cst_86 = arith.constant 5.000000e-01 : f32
    %156 = vector.broadcast %cst_86 : f32 to vector<8x384xf32>
    %157 = arith.addf %155, %156 : vector<8x384xf32>
    %158 = vector.extract_strided_slice %157 {offsets = [0, 0], sizes = [8, 128], strides = [1, 1]} : vector<8x384xf32> to vector<8x128xf32>
    %159 = vector.extract_strided_slice %157 {offsets = [0, 128], sizes = [8, 128], strides = [1, 1]} : vector<8x384xf32> to vector<8x128xf32>
    %160 = vector.extract_strided_slice %157 {offsets = [0, 256], sizes = [8, 128], strides = [1, 1]} : vector<8x384xf32> to vector<8x128xf32>
    %161 = vector.extract_strided_slice %149 {offsets = [0, 384], sizes = [8, 128], strides = [1, 1]} : vector<8x512xf32> to vector<8x128xf32>
    %162 = math.tanh %161 : vector<8x128xf32>
    %163 = arith.mulf %159, %142 : vector<8x128xf32>
    %164 = arith.mulf %158, %162 : vector<8x128xf32>
    %165 = arith.addf %163, %164 : vector<8x128xf32>
    %166 = math.tanh %165 : vector<8x128xf32>
    %167 = arith.mulf %160, %166 : vector<8x128xf32>
    %c32_87 = arith.constant 32 : index
    %c0_88 = arith.constant 0 : index
    %168 = vector.load %arg13[%c32_87, %c0_88] : memref<64x512xf32, #tpu.memory_space<vmem>>, vector<8x512xf32>
    %169 = arith.truncf %167 : vector<8x128xf32> to vector<8x128xbf16>
    %c0_89 = arith.constant 0 : index
    %c0_90 = arith.constant 0 : index
    %170 = vector.load %arg4[%c0_89, %c0_90] : memref<128x512xbf16, #tpu.memory_space<vmem>>, vector<128x512xbf16>
    %cst_91 = arith.constant dense<0.000000e+00> : vector<8x512xf32>
    %171 = tpu.matmul %169, %170, %cst_91 {dimension_numbers = #tpu.dot_dimension_numbers<[1], [0], [0], [1], [0, 0, 1, 1], [], []>} : vector<8x128xbf16>, vector<128x512xbf16>, vector<8x512xf32> -> vector<8x512xf32>
    %172 = arith.addf %168, %171 : vector<8x512xf32>
    %173 = vector.extract_strided_slice %172 {offsets = [0, 0], sizes = [8, 384], strides = [1, 1]} : vector<8x512xf32> to vector<8x384xf32>
    %cst_92 = arith.constant 5.000000e-01 : f32
    %174 = vector.broadcast %cst_92 : f32 to vector<8x384xf32>
    %175 = arith.mulf %174, %173 : vector<8x384xf32>
    %176 = math.tanh %175 : vector<8x384xf32>
    %cst_93 = arith.constant 5.000000e-01 : f32
    %177 = vector.broadcast %cst_93 : f32 to vector<8x384xf32>
    %178 = arith.mulf %177, %176 : vector<8x384xf32>
    %cst_94 = arith.constant 5.000000e-01 : f32
    %179 = vector.broadcast %cst_94 : f32 to vector<8x384xf32>
    %180 = arith.addf %178, %179 : vector<8x384xf32>
    %181 = vector.extract_strided_slice %180 {offsets = [0, 0], sizes = [8, 128], strides = [1, 1]} : vector<8x384xf32> to vector<8x128xf32>
    %182 = vector.extract_strided_slice %180 {offsets = [0, 128], sizes = [8, 128], strides = [1, 1]} : vector<8x384xf32> to vector<8x128xf32>
    %183 = vector.extract_strided_slice %180 {offsets = [0, 256], sizes = [8, 128], strides = [1, 1]} : vector<8x384xf32> to vector<8x128xf32>
    %184 = vector.extract_strided_slice %172 {offsets = [0, 384], sizes = [8, 128], strides = [1, 1]} : vector<8x512xf32> to vector<8x128xf32>
    %185 = math.tanh %184 : vector<8x128xf32>
    %186 = arith.mulf %182, %165 : vector<8x128xf32>
    %187 = arith.mulf %181, %185 : vector<8x128xf32>
    %188 = arith.addf %186, %187 : vector<8x128xf32>
    %189 = math.tanh %188 : vector<8x128xf32>
    %190 = arith.mulf %183, %189 : vector<8x128xf32>
    %c40_95 = arith.constant 40 : index
    %c0_96 = arith.constant 0 : index
    %191 = vector.load %arg13[%c40_95, %c0_96] : memref<64x512xf32, #tpu.memory_space<vmem>>, vector<8x512xf32>
    %192 = arith.truncf %190 : vector<8x128xf32> to vector<8x128xbf16>
    %c0_97 = arith.constant 0 : index
    %c0_98 = arith.constant 0 : index
    %193 = vector.load %arg4[%c0_97, %c0_98] : memref<128x512xbf16, #tpu.memory_space<vmem>>, vector<128x512xbf16>
    %cst_99 = arith.constant dense<0.000000e+00> : vector<8x512xf32>
    %194 = tpu.matmul %192, %193, %cst_99 {dimension_numbers = #tpu.dot_dimension_numbers<[1], [0], [0], [1], [0, 0, 1, 1], [], []>} : vector<8x128xbf16>, vector<128x512xbf16>, vector<8x512xf32> -> vector<8x512xf32>
    %195 = arith.addf %191, %194 : vector<8x512xf32>
    %196 = vector.extract_strided_slice %195 {offsets = [0, 0], sizes = [8, 384], strides = [1, 1]} : vector<8x512xf32> to vector<8x384xf32>
    %cst_100 = arith.constant 5.000000e-01 : f32
    %197 = vector.broadcast %cst_100 : f32 to vector<8x384xf32>
    %198 = arith.mulf %197, %196 : vector<8x384xf32>
    %199 = math.tanh %198 : vector<8x384xf32>
    %cst_101 = arith.constant 5.000000e-01 : f32
    %200 = vector.broadcast %cst_101 : f32 to vector<8x384xf32>
    %201 = arith.mulf %200, %199 : vector<8x384xf32>
    %cst_102 = arith.constant 5.000000e-01 : f32
    %202 = vector.broadcast %cst_102 : f32 to vector<8x384xf32>
    %203 = arith.addf %201, %202 : vector<8x384xf32>
    %204 = vector.extract_strided_slice %203 {offsets = [0, 0], sizes = [8, 128], strides = [1, 1]} : vector<8x384xf32> to vector<8x128xf32>
    %205 = vector.extract_strided_slice %203 {offsets = [0, 128], sizes = [8, 128], strides = [1, 1]} : vector<8x384xf32> to vector<8x128xf32>
    %206 = vector.extract_strided_slice %203 {offsets = [0, 256], sizes = [8, 128], strides = [1, 1]} : vector<8x384xf32> to vector<8x128xf32>
    %207 = vector.extract_strided_slice %195 {offsets = [0, 384], sizes = [8, 128], strides = [1, 1]} : vector<8x512xf32> to vector<8x128xf32>
    %208 = math.tanh %207 : vector<8x128xf32>
    %209 = arith.mulf %205, %188 : vector<8x128xf32>
    %210 = arith.mulf %204, %208 : vector<8x128xf32>
    %211 = arith.addf %209, %210 : vector<8x128xf32>
    %212 = math.tanh %211 : vector<8x128xf32>
    %213 = arith.mulf %206, %212 : vector<8x128xf32>
    %c48_103 = arith.constant 48 : index
    %c0_104 = arith.constant 0 : index
    %214 = vector.load %arg13[%c48_103, %c0_104] : memref<64x512xf32, #tpu.memory_space<vmem>>, vector<8x512xf32>
    %215 = arith.truncf %213 : vector<8x128xf32> to vector<8x128xbf16>
    %c0_105 = arith.constant 0 : index
    %c0_106 = arith.constant 0 : index
    %216 = vector.load %arg4[%c0_105, %c0_106] : memref<128x512xbf16, #tpu.memory_space<vmem>>, vector<128x512xbf16>
    %cst_107 = arith.constant dense<0.000000e+00> : vector<8x512xf32>
    %217 = tpu.matmul %215, %216, %cst_107 {dimension_numbers = #tpu.dot_dimension_numbers<[1], [0], [0], [1], [0, 0, 1, 1], [], []>} : vector<8x128xbf16>, vector<128x512xbf16>, vector<8x512xf32> -> vector<8x512xf32>
    %218 = arith.addf %214, %217 : vector<8x512xf32>
    %219 = vector.extract_strided_slice %218 {offsets = [0, 0], sizes = [8, 384], strides = [1, 1]} : vector<8x512xf32> to vector<8x384xf32>
    %cst_108 = arith.constant 5.000000e-01 : f32
    %220 = vector.broadcast %cst_108 : f32 to vector<8x384xf32>
    %221 = arith.mulf %220, %219 : vector<8x384xf32>
    %222 = math.tanh %221 : vector<8x384xf32>
    %cst_109 = arith.constant 5.000000e-01 : f32
    %223 = vector.broadcast %cst_109 : f32 to vector<8x384xf32>
    %224 = arith.mulf %223, %222 : vector<8x384xf32>
    %cst_110 = arith.constant 5.000000e-01 : f32
    %225 = vector.broadcast %cst_110 : f32 to vector<8x384xf32>
    %226 = arith.addf %224, %225 : vector<8x384xf32>
    %227 = vector.extract_strided_slice %226 {offsets = [0, 0], sizes = [8, 128], strides = [1, 1]} : vector<8x384xf32> to vector<8x128xf32>
    %228 = vector.extract_strided_slice %226 {offsets = [0, 128], sizes = [8, 128], strides = [1, 1]} : vector<8x384xf32> to vector<8x128xf32>
    %229 = vector.extract_strided_slice %226 {offsets = [0, 256], sizes = [8, 128], strides = [1, 1]} : vector<8x384xf32> to vector<8x128xf32>
    %230 = vector.extract_strided_slice %218 {offsets = [0, 384], sizes = [8, 128], strides = [1, 1]} : vector<8x512xf32> to vector<8x128xf32>
    %231 = math.tanh %230 : vector<8x128xf32>
    %232 = arith.mulf %228, %211 : vector<8x128xf32>
    %233 = arith.mulf %227, %231 : vector<8x128xf32>
    %234 = arith.addf %232, %233 : vector<8x128xf32>
    %235 = math.tanh %234 : vector<8x128xf32>
    %236 = arith.mulf %229, %235 : vector<8x128xf32>
    %c56 = arith.constant 56 : index
    %c0_111 = arith.constant 0 : index
    %237 = vector.load %arg13[%c56, %c0_111] : memref<64x512xf32, #tpu.memory_space<vmem>>, vector<8x512xf32>
    %238 = arith.truncf %236 : vector<8x128xf32> to vector<8x128xbf16>
    %c0_112 = arith.constant 0 : index
    %c0_113 = arith.constant 0 : index
    %239 = vector.load %arg4[%c0_112, %c0_113] : memref<128x512xbf16, #tpu.memory_space<vmem>>, vector<128x512xbf16>
    %cst_114 = arith.constant dense<0.000000e+00> : vector<8x512xf32>
    %240 = tpu.matmul %238, %239, %cst_114 {dimension_numbers = #tpu.dot_dimension_numbers<[1], [0], [0], [1], [0, 0, 1, 1], [], []>} : vector<8x128xbf16>, vector<128x512xbf16>, vector<8x512xf32> -> vector<8x512xf32>
    %241 = arith.addf %237, %240 : vector<8x512xf32>
    %242 = vector.extract_strided_slice %241 {offsets = [0, 0], sizes = [8, 384], strides = [1, 1]} : vector<8x512xf32> to vector<8x384xf32>
    %cst_115 = arith.constant 5.000000e-01 : f32
    %243 = vector.broadcast %cst_115 : f32 to vector<8x384xf32>
    %244 = arith.mulf %243, %242 : vector<8x384xf32>
    %245 = math.tanh %244 : vector<8x384xf32>
    %cst_116 = arith.constant 5.000000e-01 : f32
    %246 = vector.broadcast %cst_116 : f32 to vector<8x384xf32>
    %247 = arith.mulf %246, %245 : vector<8x384xf32>
    %cst_117 = arith.constant 5.000000e-01 : f32
    %248 = vector.broadcast %cst_117 : f32 to vector<8x384xf32>
    %249 = arith.addf %247, %248 : vector<8x384xf32>
    %250 = vector.extract_strided_slice %249 {offsets = [0, 0], sizes = [8, 128], strides = [1, 1]} : vector<8x384xf32> to vector<8x128xf32>
    %251 = vector.extract_strided_slice %249 {offsets = [0, 128], sizes = [8, 128], strides = [1, 1]} : vector<8x384xf32> to vector<8x128xf32>
    %252 = vector.extract_strided_slice %249 {offsets = [0, 256], sizes = [8, 128], strides = [1, 1]} : vector<8x384xf32> to vector<8x128xf32>
    %253 = vector.extract_strided_slice %241 {offsets = [0, 384], sizes = [8, 128], strides = [1, 1]} : vector<8x512xf32> to vector<8x128xf32>
    %254 = math.tanh %253 : vector<8x128xf32>
    %255 = arith.mulf %251, %234 : vector<8x128xf32>
    %256 = arith.mulf %250, %254 : vector<8x128xf32>
    %257 = arith.addf %255, %256 : vector<8x128xf32>
    %258 = math.tanh %257 : vector<8x128xf32>
    %259 = arith.mulf %252, %258 : vector<8x128xf32>
    %c0_118 = arith.constant 0 : index
    %c0_119 = arith.constant 0 : index
    %260 = vector.load %arg14[%c0_118, %c0_119] : memref<56x512xf32, #tpu.memory_space<vmem>>, vector<8x512xf32>
    %261 = arith.truncf %259 : vector<8x128xf32> to vector<8x128xbf16>
    %c0_120 = arith.constant 0 : index
    %c0_121 = arith.constant 0 : index
    %262 = vector.load %arg8[%c0_120, %c0_121] : memref<128x512xbf16, #tpu.memory_space<vmem>>, vector<128x512xbf16>
    %cst_122 = arith.constant dense<0.000000e+00> : vector<8x512xf32>
    %263 = tpu.matmul %261, %262, %cst_122 {dimension_numbers = #tpu.dot_dimension_numbers<[1], [0], [0], [1], [0, 0, 1, 1], [], []>} : vector<8x128xbf16>, vector<128x512xbf16>, vector<8x512xf32> -> vector<8x512xf32>
    %264 = arith.addf %260, %263 : vector<8x512xf32>
    %265 = vector.extract_strided_slice %264 {offsets = [0, 0], sizes = [8, 384], strides = [1, 1]} : vector<8x512xf32> to vector<8x384xf32>
    %cst_123 = arith.constant 5.000000e-01 : f32
    %266 = vector.broadcast %cst_123 : f32 to vector<8x384xf32>
    %267 = arith.mulf %266, %265 : vector<8x384xf32>
    %268 = math.tanh %267 : vector<8x384xf32>
    %cst_124 = arith.constant 5.000000e-01 : f32
    %269 = vector.broadcast %cst_124 : f32 to vector<8x384xf32>
    %270 = arith.mulf %269, %268 : vector<8x384xf32>
    %cst_125 = arith.constant 5.000000e-01 : f32
    %271 = vector.broadcast %cst_125 : f32 to vector<8x384xf32>
    %272 = arith.addf %270, %271 : vector<8x384xf32>
    %273 = vector.extract_strided_slice %272 {offsets = [0, 0], sizes = [8, 128], strides = [1, 1]} : vector<8x384xf32> to vector<8x128xf32>
    %274 = vector.extract_strided_slice %272 {offsets = [0, 128], sizes = [8, 128], strides = [1, 1]} : vector<8x384xf32> to vector<8x128xf32>
    %275 = vector.extract_strided_slice %272 {offsets = [0, 256], sizes = [8, 128], strides = [1, 1]} : vector<8x384xf32> to vector<8x128xf32>
    %276 = vector.extract_strided_slice %264 {offsets = [0, 384], sizes = [8, 128], strides = [1, 1]} : vector<8x512xf32> to vector<8x128xf32>
    %277 = math.tanh %276 : vector<8x128xf32>
    %278 = arith.mulf %274, %257 : vector<8x128xf32>
    %279 = arith.mulf %273, %277 : vector<8x128xf32>
    %280 = arith.addf %278, %279 : vector<8x128xf32>
    %281 = math.tanh %280 : vector<8x128xf32>
    %282 = arith.mulf %275, %281 : vector<8x128xf32>
    %c8_126 = arith.constant 8 : index
    %c0_127 = arith.constant 0 : index
    %283 = vector.load %arg14[%c8_126, %c0_127] : memref<56x512xf32, #tpu.memory_space<vmem>>, vector<8x512xf32>
    %284 = arith.truncf %282 : vector<8x128xf32> to vector<8x128xbf16>
    %c0_128 = arith.constant 0 : index
    %c0_129 = arith.constant 0 : index
    %285 = vector.load %arg8[%c0_128, %c0_129] : memref<128x512xbf16, #tpu.memory_space<vmem>>, vector<128x512xbf16>
    %cst_130 = arith.constant dense<0.000000e+00> : vector<8x512xf32>
    %286 = tpu.matmul %284, %285, %cst_130 {dimension_numbers = #tpu.dot_dimension_numbers<[1], [0], [0], [1], [0, 0, 1, 1], [], []>} : vector<8x128xbf16>, vector<128x512xbf16>, vector<8x512xf32> -> vector<8x512xf32>
    %287 = arith.addf %283, %286 : vector<8x512xf32>
    %288 = vector.extract_strided_slice %287 {offsets = [0, 0], sizes = [8, 384], strides = [1, 1]} : vector<8x512xf32> to vector<8x384xf32>
    %cst_131 = arith.constant 5.000000e-01 : f32
    %289 = vector.broadcast %cst_131 : f32 to vector<8x384xf32>
    %290 = arith.mulf %289, %288 : vector<8x384xf32>
    %291 = math.tanh %290 : vector<8x384xf32>
    %cst_132 = arith.constant 5.000000e-01 : f32
    %292 = vector.broadcast %cst_132 : f32 to vector<8x384xf32>
    %293 = arith.mulf %292, %291 : vector<8x384xf32>
    %cst_133 = arith.constant 5.000000e-01 : f32
    %294 = vector.broadcast %cst_133 : f32 to vector<8x384xf32>
    %295 = arith.addf %293, %294 : vector<8x384xf32>
    %296 = vector.extract_strided_slice %295 {offsets = [0, 0], sizes = [8, 128], strides = [1, 1]} : vector<8x384xf32> to vector<8x128xf32>
    %297 = vector.extract_strided_slice %295 {offsets = [0, 128], sizes = [8, 128], strides = [1, 1]} : vector<8x384xf32> to vector<8x128xf32>
    %298 = vector.extract_strided_slice %295 {offsets = [0, 256], sizes = [8, 128], strides = [1, 1]} : vector<8x384xf32> to vector<8x128xf32>
    %299 = vector.extract_strided_slice %287 {offsets = [0, 384], sizes = [8, 128], strides = [1, 1]} : vector<8x512xf32> to vector<8x128xf32>
    %300 = math.tanh %299 : vector<8x128xf32>
    %301 = arith.mulf %297, %280 : vector<8x128xf32>
    %302 = arith.mulf %296, %300 : vector<8x128xf32>
    %303 = arith.addf %301, %302 : vector<8x128xf32>
    %304 = math.tanh %303 : vector<8x128xf32>
    %305 = arith.mulf %298, %304 : vector<8x128xf32>
    %c16_134 = arith.constant 16 : index
    %c0_135 = arith.constant 0 : index
    %306 = vector.load %arg14[%c16_134, %c0_135] : memref<56x512xf32, #tpu.memory_space<vmem>>, vector<8x512xf32>
    %307 = arith.truncf %305 : vector<8x128xf32> to vector<8x128xbf16>
    %c0_136 = arith.constant 0 : index
    %c0_137 = arith.constant 0 : index
    %308 = vector.load %arg8[%c0_136, %c0_137] : memref<128x512xbf16, #tpu.memory_space<vmem>>, vector<128x512xbf16>
    %cst_138 = arith.constant dense<0.000000e+00> : vector<8x512xf32>
    %309 = tpu.matmul %307, %308, %cst_138 {dimension_numbers = #tpu.dot_dimension_numbers<[1], [0], [0], [1], [0, 0, 1, 1], [], []>} : vector<8x128xbf16>, vector<128x512xbf16>, vector<8x512xf32> -> vector<8x512xf32>
    %310 = arith.addf %306, %309 : vector<8x512xf32>
    %311 = vector.extract_strided_slice %310 {offsets = [0, 0], sizes = [8, 384], strides = [1, 1]} : vector<8x512xf32> to vector<8x384xf32>
    %cst_139 = arith.constant 5.000000e-01 : f32
    %312 = vector.broadcast %cst_139 : f32 to vector<8x384xf32>
    %313 = arith.mulf %312, %311 : vector<8x384xf32>
    %314 = math.tanh %313 : vector<8x384xf32>
    %cst_140 = arith.constant 5.000000e-01 : f32
    %315 = vector.broadcast %cst_140 : f32 to vector<8x384xf32>
    %316 = arith.mulf %315, %314 : vector<8x384xf32>
    %cst_141 = arith.constant 5.000000e-01 : f32
    %317 = vector.broadcast %cst_141 : f32 to vector<8x384xf32>
    %318 = arith.addf %316, %317 : vector<8x384xf32>
    %319 = vector.extract_strided_slice %318 {offsets = [0, 0], sizes = [8, 128], strides = [1, 1]} : vector<8x384xf32> to vector<8x128xf32>
    %320 = vector.extract_strided_slice %318 {offsets = [0, 128], sizes = [8, 128], strides = [1, 1]} : vector<8x384xf32> to vector<8x128xf32>
    %321 = vector.extract_strided_slice %318 {offsets = [0, 256], sizes = [8, 128], strides = [1, 1]} : vector<8x384xf32> to vector<8x128xf32>
    %322 = vector.extract_strided_slice %310 {offsets = [0, 384], sizes = [8, 128], strides = [1, 1]} : vector<8x512xf32> to vector<8x128xf32>
    %323 = math.tanh %322 : vector<8x128xf32>
    %324 = arith.mulf %320, %303 : vector<8x128xf32>
    %325 = arith.mulf %319, %323 : vector<8x128xf32>
    %326 = arith.addf %324, %325 : vector<8x128xf32>
    %327 = math.tanh %326 : vector<8x128xf32>
    %328 = arith.mulf %321, %327 : vector<8x128xf32>
    %c24_142 = arith.constant 24 : index
    %c0_143 = arith.constant 0 : index
    %329 = vector.load %arg14[%c24_142, %c0_143] : memref<56x512xf32, #tpu.memory_space<vmem>>, vector<8x512xf32>
    %330 = arith.truncf %328 : vector<8x128xf32> to vector<8x128xbf16>
    %c0_144 = arith.constant 0 : index
    %c0_145 = arith.constant 0 : index
    %331 = vector.load %arg8[%c0_144, %c0_145] : memref<128x512xbf16, #tpu.memory_space<vmem>>, vector<128x512xbf16>
    %cst_146 = arith.constant dense<0.000000e+00> : vector<8x512xf32>
    %332 = tpu.matmul %330, %331, %cst_146 {dimension_numbers = #tpu.dot_dimension_numbers<[1], [0], [0], [1], [0, 0, 1, 1], [], []>} : vector<8x128xbf16>, vector<128x512xbf16>, vector<8x512xf32> -> vector<8x512xf32>
    %333 = arith.addf %329, %332 : vector<8x512xf32>
    %334 = vector.extract_strided_slice %333 {offsets = [0, 0], sizes = [8, 384], strides = [1, 1]} : vector<8x512xf32> to vector<8x384xf32>
    %cst_147 = arith.constant 5.000000e-01 : f32
    %335 = vector.broadcast %cst_147 : f32 to vector<8x384xf32>
    %336 = arith.mulf %335, %334 : vector<8x384xf32>
    %337 = math.tanh %336 : vector<8x384xf32>
    %cst_148 = arith.constant 5.000000e-01 : f32
    %338 = vector.broadcast %cst_148 : f32 to vector<8x384xf32>
    %339 = arith.mulf %338, %337 : vector<8x384xf32>
    %cst_149 = arith.constant 5.000000e-01 : f32
    %340 = vector.broadcast %cst_149 : f32 to vector<8x384xf32>
    %341 = arith.addf %339, %340 : vector<8x384xf32>
    %342 = vector.extract_strided_slice %341 {offsets = [0, 0], sizes = [8, 128], strides = [1, 1]} : vector<8x384xf32> to vector<8x128xf32>
    %343 = vector.extract_strided_slice %341 {offsets = [0, 128], sizes = [8, 128], strides = [1, 1]} : vector<8x384xf32> to vector<8x128xf32>
    %344 = vector.extract_strided_slice %341 {offsets = [0, 256], sizes = [8, 128], strides = [1, 1]} : vector<8x384xf32> to vector<8x128xf32>
    %345 = vector.extract_strided_slice %333 {offsets = [0, 384], sizes = [8, 128], strides = [1, 1]} : vector<8x512xf32> to vector<8x128xf32>
    %346 = math.tanh %345 : vector<8x128xf32>
    %347 = arith.mulf %343, %326 : vector<8x128xf32>
    %348 = arith.mulf %342, %346 : vector<8x128xf32>
    %349 = arith.addf %347, %348 : vector<8x128xf32>
    %350 = math.tanh %349 : vector<8x128xf32>
    %351 = arith.mulf %344, %350 : vector<8x128xf32>
    %c32_150 = arith.constant 32 : index
    %c0_151 = arith.constant 0 : index
    %352 = vector.load %arg14[%c32_150, %c0_151] : memref<56x512xf32, #tpu.memory_space<vmem>>, vector<8x512xf32>
    %353 = arith.truncf %351 : vector<8x128xf32> to vector<8x128xbf16>
    %c0_152 = arith.constant 0 : index
    %c0_153 = arith.constant 0 : index
    %354 = vector.load %arg8[%c0_152, %c0_153] : memref<128x512xbf16, #tpu.memory_space<vmem>>, vector<128x512xbf16>
    %cst_154 = arith.constant dense<0.000000e+00> : vector<8x512xf32>
    %355 = tpu.matmul %353, %354, %cst_154 {dimension_numbers = #tpu.dot_dimension_numbers<[1], [0], [0], [1], [0, 0, 1, 1], [], []>} : vector<8x128xbf16>, vector<128x512xbf16>, vector<8x512xf32> -> vector<8x512xf32>
    %356 = arith.addf %352, %355 : vector<8x512xf32>
    %357 = vector.extract_strided_slice %356 {offsets = [0, 0], sizes = [8, 384], strides = [1, 1]} : vector<8x512xf32> to vector<8x384xf32>
    %cst_155 = arith.constant 5.000000e-01 : f32
    %358 = vector.broadcast %cst_155 : f32 to vector<8x384xf32>
    %359 = arith.mulf %358, %357 : vector<8x384xf32>
    %360 = math.tanh %359 : vector<8x384xf32>
    %cst_156 = arith.constant 5.000000e-01 : f32
    %361 = vector.broadcast %cst_156 : f32 to vector<8x384xf32>
    %362 = arith.mulf %361, %360 : vector<8x384xf32>
    %cst_157 = arith.constant 5.000000e-01 : f32
    %363 = vector.broadcast %cst_157 : f32 to vector<8x384xf32>
    %364 = arith.addf %362, %363 : vector<8x384xf32>
    %365 = vector.extract_strided_slice %364 {offsets = [0, 0], sizes = [8, 128], strides = [1, 1]} : vector<8x384xf32> to vector<8x128xf32>
    %366 = vector.extract_strided_slice %364 {offsets = [0, 128], sizes = [8, 128], strides = [1, 1]} : vector<8x384xf32> to vector<8x128xf32>
    %367 = vector.extract_strided_slice %364 {offsets = [0, 256], sizes = [8, 128], strides = [1, 1]} : vector<8x384xf32> to vector<8x128xf32>
    %368 = vector.extract_strided_slice %356 {offsets = [0, 384], sizes = [8, 128], strides = [1, 1]} : vector<8x512xf32> to vector<8x128xf32>
    %369 = math.tanh %368 : vector<8x128xf32>
    %370 = arith.mulf %366, %349 : vector<8x128xf32>
    %371 = arith.mulf %365, %369 : vector<8x128xf32>
    %372 = arith.addf %370, %371 : vector<8x128xf32>
    %373 = math.tanh %372 : vector<8x128xf32>
    %374 = arith.mulf %367, %373 : vector<8x128xf32>
    %c40_158 = arith.constant 40 : index
    %c0_159 = arith.constant 0 : index
    %375 = vector.load %arg14[%c40_158, %c0_159] : memref<56x512xf32, #tpu.memory_space<vmem>>, vector<8x512xf32>
    %376 = arith.truncf %374 : vector<8x128xf32> to vector<8x128xbf16>
    %c0_160 = arith.constant 0 : index
    %c0_161 = arith.constant 0 : index
    %377 = vector.load %arg8[%c0_160, %c0_161] : memref<128x512xbf16, #tpu.memory_space<vmem>>, vector<128x512xbf16>
    %cst_162 = arith.constant dense<0.000000e+00> : vector<8x512xf32>
    %378 = tpu.matmul %376, %377, %cst_162 {dimension_numbers = #tpu.dot_dimension_numbers<[1], [0], [0], [1], [0, 0, 1, 1], [], []>} : vector<8x128xbf16>, vector<128x512xbf16>, vector<8x512xf32> -> vector<8x512xf32>
    %379 = arith.addf %375, %378 : vector<8x512xf32>
    %380 = vector.extract_strided_slice %379 {offsets = [0, 0], sizes = [8, 384], strides = [1, 1]} : vector<8x512xf32> to vector<8x384xf32>
    %cst_163 = arith.constant 5.000000e-01 : f32
    %381 = vector.broadcast %cst_163 : f32 to vector<8x384xf32>
    %382 = arith.mulf %381, %380 : vector<8x384xf32>
    %383 = math.tanh %382 : vector<8x384xf32>
    %cst_164 = arith.constant 5.000000e-01 : f32
    %384 = vector.broadcast %cst_164 : f32 to vector<8x384xf32>
    %385 = arith.mulf %384, %383 : vector<8x384xf32>
    %cst_165 = arith.constant 5.000000e-01 : f32
    %386 = vector.broadcast %cst_165 : f32 to vector<8x384xf32>
    %387 = arith.addf %385, %386 : vector<8x384xf32>
    %388 = vector.extract_strided_slice %387 {offsets = [0, 0], sizes = [8, 128], strides = [1, 1]} : vector<8x384xf32> to vector<8x128xf32>
    %389 = vector.extract_strided_slice %387 {offsets = [0, 128], sizes = [8, 128], strides = [1, 1]} : vector<8x384xf32> to vector<8x128xf32>
    %390 = vector.extract_strided_slice %387 {offsets = [0, 256], sizes = [8, 128], strides = [1, 1]} : vector<8x384xf32> to vector<8x128xf32>
    %391 = vector.extract_strided_slice %379 {offsets = [0, 384], sizes = [8, 128], strides = [1, 1]} : vector<8x512xf32> to vector<8x128xf32>
    %392 = math.tanh %391 : vector<8x128xf32>
    %393 = arith.mulf %389, %372 : vector<8x128xf32>
    %394 = arith.mulf %388, %392 : vector<8x128xf32>
    %395 = arith.addf %393, %394 : vector<8x128xf32>
    %396 = math.tanh %395 : vector<8x128xf32>
    %397 = arith.mulf %390, %396 : vector<8x128xf32>
    %c48_166 = arith.constant 48 : index
    %c0_167 = arith.constant 0 : index
    %398 = vector.load %arg14[%c48_166, %c0_167] : memref<56x512xf32, #tpu.memory_space<vmem>>, vector<8x512xf32>
    %399 = arith.truncf %397 : vector<8x128xf32> to vector<8x128xbf16>
    %c0_168 = arith.constant 0 : index
    %c0_169 = arith.constant 0 : index
    %400 = vector.load %arg8[%c0_168, %c0_169] : memref<128x512xbf16, #tpu.memory_space<vmem>>, vector<128x512xbf16>
    %cst_170 = arith.constant dense<0.000000e+00> : vector<8x512xf32>
    %401 = tpu.matmul %399, %400, %cst_170 {dimension_numbers = #tpu.dot_dimension_numbers<[1], [0], [0], [1], [0, 0, 1, 1], [], []>} : vector<8x128xbf16>, vector<128x512xbf16>, vector<8x512xf32> -> vector<8x512xf32>
    %402 = arith.addf %398, %401 : vector<8x512xf32>
    %403 = vector.extract_strided_slice %402 {offsets = [0, 0], sizes = [8, 384], strides = [1, 1]} : vector<8x512xf32> to vector<8x384xf32>
    %cst_171 = arith.constant 5.000000e-01 : f32
    %404 = vector.broadcast %cst_171 : f32 to vector<8x384xf32>
    %405 = arith.mulf %404, %403 : vector<8x384xf32>
    %406 = math.tanh %405 : vector<8x384xf32>
    %cst_172 = arith.constant 5.000000e-01 : f32
    %407 = vector.broadcast %cst_172 : f32 to vector<8x384xf32>
    %408 = arith.mulf %407, %406 : vector<8x384xf32>
    %cst_173 = arith.constant 5.000000e-01 : f32
    %409 = vector.broadcast %cst_173 : f32 to vector<8x384xf32>
    %410 = arith.addf %408, %409 : vector<8x384xf32>
    %411 = vector.extract_strided_slice %410 {offsets = [0, 0], sizes = [8, 128], strides = [1, 1]} : vector<8x384xf32> to vector<8x128xf32>
    %412 = vector.extract_strided_slice %410 {offsets = [0, 128], sizes = [8, 128], strides = [1, 1]} : vector<8x384xf32> to vector<8x128xf32>
    %413 = vector.extract_strided_slice %410 {offsets = [0, 256], sizes = [8, 128], strides = [1, 1]} : vector<8x384xf32> to vector<8x128xf32>
    %414 = vector.extract_strided_slice %402 {offsets = [0, 384], sizes = [8, 128], strides = [1, 1]} : vector<8x512xf32> to vector<8x128xf32>
    %415 = math.tanh %414 : vector<8x128xf32>
    %416 = arith.mulf %412, %395 : vector<8x128xf32>
    %417 = arith.mulf %411, %415 : vector<8x128xf32>
    %418 = arith.addf %416, %417 : vector<8x128xf32>
    %419 = math.tanh %418 : vector<8x128xf32>
    %420 = arith.mulf %413, %419 : vector<8x128xf32>
    %421 = tpu.concatenate %282, %305, %328, %351, %374, %397, %420 in 0 : vector<8x128xf32>, vector<8x128xf32>, vector<8x128xf32>, vector<8x128xf32>, vector<8x128xf32>, vector<8x128xf32>, vector<8x128xf32> -> vector<56x128xf32>
    %422 = arith.truncf %421 : vector<56x128xf32> to vector<56x128xbf16>
    %c0_174 = arith.constant 0 : index
    %c0_175 = arith.constant 0 : index
    %423 = vector.load %arg10[%c0_174, %c0_175] : memref<128x128xbf16, #tpu.memory_space<vmem>>, vector<128x128xbf16>
    %cst_176 = arith.constant dense<0.000000e+00> : vector<56x128xf32>
    %424 = tpu.matmul %422, %423, %cst_176 {dimension_numbers = #tpu.dot_dimension_numbers<[1], [0], [0], [1], [0, 0, 1, 1], [], []>} : vector<56x128xbf16>, vector<128x128xbf16>, vector<56x128xf32> -> vector<56x128xf32>
    %c0_177 = arith.constant 0 : index
    %c0_178 = arith.constant 0 : index
    %425 = vector.load %arg11[%c0_177, %c0_178] : memref<1x128xf32, #tpu.memory_space<vmem>>, vector<1x128xf32>
    %426 = vector.broadcast %425 : vector<1x128xf32> to vector<56x128xf32>
    %427 = arith.addf %424, %426 : vector<56x128xf32>
    %428 = tpu.iota {dimensions = array<i32: 1>} : vector<1x128xi32>
    %c7_i32 = arith.constant 7 : i32
    %429 = vector.broadcast %c7_i32 : i32 to vector<1x128xi32>
    %430 = arith.cmpi slt, %428, %429 : vector<1x128xi32>
    %cst_179 = arith.constant -1.000000e+30 : f32
    %431 = vector.shape_cast %430 : vector<1x128xi1> to vector<1x128xi1>
    %432 = vector.broadcast %431 : vector<1x128xi1> to vector<56x128xi1>
    %433 = vector.broadcast %cst_179 : f32 to vector<56x128xf32>
    %434 = arith.select %432, %427, %433 : vector<56x128xi1>, vector<56x128xf32>
    %cst_180 = arith.constant dense<0xFF800000> : vector<56xf32>
    %435 = vector.multi_reduction <maximumf>, %434, %cst_180 [1] : vector<56x128xf32> to vector<56xf32>
    %436 = vector.shape_cast %435 : vector<56xf32> to vector<56x1xf32>
    %437 = vector.broadcast %436 : vector<56x1xf32> to vector<56x128xf32>
    %438 = arith.subf %434, %437 : vector<56x128xf32>
    %439 = math.exp %438 : vector<56x128xf32>
    %cst_181 = arith.constant dense<0.000000e+00> : vector<56xf32>
    %440 = vector.multi_reduction <add>, %439, %cst_181 [1] : vector<56x128xf32> to vector<56xf32>
    %441 = vector.shape_cast %440 : vector<56xf32> to vector<56x1xf32>
    %442 = math.log %441 : vector<56x1xf32>
    %443 = vector.broadcast %442 : vector<56x1xf32> to vector<56x128xf32>
    %444 = arith.subf %438, %443 : vector<56x128xf32>
    %c0_182 = arith.constant 0 : index
    %c0_183 = arith.constant 0 : index
    %445 = vector.load %arg12[%c0_182, %c0_183] : memref<56x128xf32, #tpu.memory_space<vmem>>, vector<56x128xf32>
    tpu.vector_store %arg12[%c0_182, %c0_183], %444 {strides = array<i32>} : memref<56x128xf32, #tpu.memory_space<vmem>>, vector<56x128xf32>,
    return
  }
  func.func @transform_0(%arg0: i32, %arg1: memref<14xi32, #tpu.memory_space<smem>>) -> (i32, i32) {
    %c0_i32 = arith.constant 0 : i32
    %c0_i32_0 = arith.constant 0 : i32
    %c0_i32_1 = arith.constant 0 : i32
    return %c0_i32, %c0_i32_0 : i32, i32
  }
  func.func @transform_1(%arg0: i32, %arg1: memref<14xi32, #tpu.memory_space<smem>>) -> (i32, i32) {
    %c0_i32 = arith.constant 0 : i32
    %c0_i32_0 = arith.constant 0 : i32
    %c0_i32_1 = arith.constant 0 : i32
    return %c0_i32, %c0_i32_0 : i32, i32
  }
  func.func @transform_2(%arg0: i32, %arg1: memref<14xi32, #tpu.memory_space<smem>>) -> (i32, i32) {
    %c0_i32 = arith.constant 0 : i32
    %c0_i32_0 = arith.constant 0 : i32
    %c0_i32_1 = arith.constant 0 : i32
    return %c0_i32, %c0_i32_0 : i32, i32
  }
  func.func @transform_3(%arg0: i32, %arg1: memref<14xi32, #tpu.memory_space<smem>>) -> (i32, i32) {
    %c0_i32 = arith.constant 0 : i32
    %c0_i32_0 = arith.constant 0 : i32
    %c0_i32_1 = arith.constant 0 : i32
    return %c0_i32, %c0_i32_0 : i32, i32
  }
  func.func @transform_4(%arg0: i32, %arg1: memref<14xi32, #tpu.memory_space<smem>>) -> (i32, i32) {
    %c0_i32 = arith.constant 0 : i32
    %c0_i32_0 = arith.constant 0 : i32
    %c0_i32_1 = arith.constant 0 : i32
    return %c0_i32, %c0_i32_0 : i32, i32
  }
  func.func @transform_5(%arg0: i32, %arg1: memref<14xi32, #tpu.memory_space<smem>>) -> (i32, i32) {
    %c0_i32 = arith.constant 0 : i32
    %c0_i32_0 = arith.constant 0 : i32
    %c0_i32_1 = arith.constant 0 : i32
    return %c0_i32, %c0_i32_0 : i32, i32
  }
  func.func @transform_6(%arg0: i32, %arg1: memref<14xi32, #tpu.memory_space<smem>>) -> (i32, i32) {
    %c0_i32 = arith.constant 0 : i32
    %c0_i32_0 = arith.constant 0 : i32
    %c0_i32_1 = arith.constant 0 : i32
    return %c0_i32, %c0_i32_0 : i32, i32
  }
  func.func @transform_7(%arg0: i32, %arg1: memref<14xi32, #tpu.memory_space<smem>>) -> (i32, i32) {
    %c0_i32 = arith.constant 0 : i32
    %c0_i32_0 = arith.constant 0 : i32
    %c0_i32_1 = arith.constant 0 : i32
    return %c0_i32, %c0_i32_0 : i32, i32
  }
  func.func @transform_8(%arg0: i32, %arg1: memref<14xi32, #tpu.memory_space<smem>>) -> (i32, i32) {
    %c0_i32 = arith.constant 0 : i32
    %c0_i32_0 = arith.constant 0 : i32
    %c0_i32_1 = arith.constant 0 : i32
    return %c0_i32, %c0_i32_0 : i32, i32
  }
  func.func @transform_9(%arg0: i32, %arg1: memref<14xi32, #tpu.memory_space<smem>>) -> (i32, i32) {
    %c0_i32 = arith.constant 0 : i32
    %c0_i32_0 = arith.constant 0 : i32
    %c0_i32_1 = arith.constant 0 : i32
    return %c0_i32, %c0_i32_0 : i32, i32
  }
  func.func @transform_10(%arg0: i32, %arg1: memref<14xi32, #tpu.memory_space<smem>>) -> (i32, i32) {
    %c0_i32 = arith.constant 0 : i32
    %c0_i32_0 = arith.constant 0 : i32
    %c0_i32_1 = arith.constant 0 : i32
    return %c0_i32, %c0_i32_0 : i32, i32
  }
}

</mosaic_0001>

<llo_original>
// kernel: seq2seq_lstm_forward.1
$region0: #{seq2seq_lstm_forward.1}
  #allocation0 [shape = 'u32[]', space=smem, size = 0x4, offset = 0x4, fixed_abs, tag = 'smem constant byte address 0x4 - core index']
  #allocation1 [shape = 'u32[144,128]{1,0:T(1,128)}', space=vmem, size = 0x12000, scoped, tag = 'internal scratch']
  #allocation2 [shape = 'f32[64,512]{1,0:T(8,128)}', space=vmem, size = 0x20000, scoped, tag = 'scratch operand']
  #allocation3 [shape = 'f32[56,512]{1,0:T(8,128)}', space=vmem, size = 0x1c000, scoped, tag = 'scratch operand']
  #allocation4 [shape = 'f32[8,512]{1,0:T(8,128)}', space=vmem, size = 0x4000, scoped, tag = 'scratch operand']
  #allocation5 [shape = 's32[1]{0}', space=sflag, size = 0x4, scoped, tag = 'scoped memory for seq2seq_lstm_forward.1']
  #allocation6 [shape = 'u8[512]{0}', space=smem, size = 0x200, scoped, tag = 'prefetched SMEM operand 0']
  %s0 = inlined_call_operand.vmem [shape: s32[14], index: 0, kind: input, shape index: {}]
  %s1 = inlined_call_operand.vmem [shape: bf16[64,128], index: 1, kind: input, shape index: {}]
  %s2 = inlined_call_operand.vmem [shape: bf16[128,512], index: 2, kind: input, shape index: {}]
  %s3 = inlined_call_operand.vmem [shape: bf16[128,512], index: 3, kind: input, shape index: {}]
  %s4 = inlined_call_operand.vmem [shape: f32[1,512], index: 4, kind: input, shape index: {}]
  %s5 = inlined_call_operand.vmem [shape: bf16[8,128], index: 5, kind: input, shape index: {}]
  %s6 = inlined_call_operand.vmem [shape: bf16[128,512], index: 6, kind: input, shape index: {}]
  %s7 = inlined_call_operand.vmem [shape: bf16[128,512], index: 7, kind: input, shape index: {}]
  %s8 = inlined_call_operand.vmem [shape: f32[1,512], index: 8, kind: input, shape index: {}]
  %s9 = inlined_call_operand.vmem [shape: bf16[128,128], index: 9, kind: input, shape index: {}]
  %s10 = inlined_call_operand.vmem [shape: f32[1,128], index: 10, kind: input, shape index: {}]
  %s11 = inlined_call_operand.vmem [shape: f32[56,128], index: 11, kind: output, shape index: {}]
  %s12 = sld [smem:[#allocation0]]
  $region50: #{seq2seq_lstm_forward.1} parent=0
    _
  %s14 = ssub.s32 1, %s12
  %s15 = scalar_select 0, %s14, %s12
  %s16 = sshll.u32 %s0, 4
  %s17 = int_to_ptr.vmem [resolvable:$true] %s16
  %19 = dma.vmem_to_smem %s17, 16, [#allocation6], [#allocation5]
  %20 = dma.done [#allocation5], 16
  %21 = sfence
  // Predicated region
  $region2: #{seq2seq_lstm_forward.1} parent=0 // pred_check
    _
  $region3: #{seq2seq_lstm_forward.1} parent=0 // pred_check_branch
    %23 = sbr.rel (0) target = $region5
  $region4: #{seq2seq_lstm_forward.1} parent=0 // pred_region
    _
  $region5: #{seq2seq_lstm_forward.1} parent=0 // pred_fallthru
    _
  // Predicated region
  $region6: #{seq2seq_lstm_forward.1} parent=0 // pred_check
    _
  $region7: #{seq2seq_lstm_forward.1} parent=0 // pred_check_branch
    %25 = sbr.rel (0) target = $region9
  $region8: #{seq2seq_lstm_forward.1} parent=0 // pred_region
    _
  $region9: #{seq2seq_lstm_forward.1} parent=0 // pred_fallthru
    _
  // Predicated region
  $region10: #{seq2seq_lstm_forward.1} parent=0 // pred_check
    _
  $region11: #{seq2seq_lstm_forward.1} parent=0 // pred_check_branch
    %27 = sbr.rel (0) target = $region13
  $region12: #{seq2seq_lstm_forward.1} parent=0 // pred_region
    _
  $region13: #{seq2seq_lstm_forward.1} parent=0 // pred_fallthru
    _
  // Predicated region
  $region14: #{seq2seq_lstm_forward.1} parent=0 // pred_check
    _
  $region15: #{seq2seq_lstm_forward.1} parent=0 // pred_check_branch
    %29 = sbr.rel (0) target = $region17
  $region16: #{seq2seq_lstm_forward.1} parent=0 // pred_region
    _
  $region17: #{seq2seq_lstm_forward.1} parent=0 // pred_fallthru
    _
  // Predicated region
  $region18: #{seq2seq_lstm_forward.1} parent=0 // pred_check
    _
  $region19: #{seq2seq_lstm_forward.1} parent=0 // pred_check_branch
    %31 = sbr.rel (0) target = $region21
  $region20: #{seq2seq_lstm_forward.1} parent=0 // pred_region
    _
  $region21: #{seq2seq_lstm_forward.1} parent=0 // pred_fallthru
    _
  // Predicated region
  $region22: #{seq2seq_lstm_forward.1} parent=0 // pred_check
    _
  $region23: #{seq2seq_lstm_forward.1} parent=0 // pred_check_branch
    %33 = sbr.rel (0) target = $region25
  $region24: #{seq2seq_lstm_forward.1} parent=0 // pred_region
    _
  $region25: #{seq2seq_lstm_forward.1} parent=0 // pred_fallthru
    _
  // Predicated region
  $region26: #{seq2seq_lstm_forward.1} parent=0 // pred_check
    _
  $region27: #{seq2seq_lstm_forward.1} parent=0 // pred_check_branch
    %35 = sbr.rel (0) target = $region29
  $region28: #{seq2seq_lstm_forward.1} parent=0 // pred_region
    _
  $region29: #{seq2seq_lstm_forward.1} parent=0 // pred_fallthru
    _
  // Predicated region
  $region30: #{seq2seq_lstm_forward.1} parent=0 // pred_check
    _
  $region31: #{seq2seq_lstm_forward.1} parent=0 // pred_check_branch
    %37 = sbr.rel (0) target = $region33
  $region32: #{seq2seq_lstm_forward.1} parent=0 // pred_region
    _
  $region33: #{seq2seq_lstm_forward.1} parent=0 // pred_fallthru
    _
  // Predicated region
  $region34: #{seq2seq_lstm_forward.1} parent=0 // pred_check
    _
  $region35: #{seq2seq_lstm_forward.1} parent=0 // pred_check_branch
    %39 = sbr.rel (0) target = $region37
  $region36: #{seq2seq_lstm_forward.1} parent=0 // pred_region
    _
  $region37: #{seq2seq_lstm_forward.1} parent=0 // pred_fallthru
    _
  // Predicated region
  $region38: #{seq2seq_lstm_forward.1} parent=0 // pred_check
    _
  $region39: #{seq2seq_lstm_forward.1} parent=0 // pred_check_branch
    %41 = sbr.rel (0) target = $region41
  $region40: #{seq2seq_lstm_forward.1} parent=0 // pred_region
    _
  $region41: #{seq2seq_lstm_forward.1} parent=0 // pred_fallthru
    _
  %v43 = vld [vmem:[%s1] sm:$0xf]
  %v44 = vld [vmem:[%s1 + $0x4] sm:$0xf]
  %v45 = vld [vmem:[%s1 + $0x8] sm:$0xf]
  %v46 = vld [vmem:[%s1 + $0xc] sm:$0xf]
  %v47 = vld [vmem:[%s1 + $0x10] sm:$0xf]
  %v48 = vld [vmem:[%s1 + $0x14] sm:$0xf]
  %v49 = vld [vmem:[%s1 + $0x18] sm:$0xf]
  %v50 = vld [vmem:[%s1 + $0x1c] sm:$0xf]
  %v51 = vld [vmem:[%s2] sm:$0xff]
  %v52 = vld [vmem:[%s2 + $0x8] sm:$0xff]
  %v53 = vld [vmem:[%s2 + $0x10] sm:$0xff]
  %v54 = vld [vmem:[%s2 + $0x18] sm:$0xff]
  %v55 = vld [vmem:[%s2 + $0x20] sm:$0xff]
  %v56 = vld [vmem:[%s2 + $0x28] sm:$0xff]
  %v57 = vld [vmem:[%s2 + $0x30] sm:$0xff]
  %v58 = vld [vmem:[%s2 + $0x38] sm:$0xff]
  %v59 = vld [vmem:[%s2 + $0x40] sm:$0xff]
  %v60 = vld [vmem:[%s2 + $0x48] sm:$0xff]
  %v61 = vld [vmem:[%s2 + $0x50] sm:$0xff]
  %v62 = vld [vmem:[%s2 + $0x58] sm:$0xff]
  %v63 = vld [vmem:[%s2 + $0x60] sm:$0xff]
  %v64 = vld [vmem:[%s2 + $0x68] sm:$0xff]
  %v65 = vld [vmem:[%s2 + $0x70] sm:$0xff]
  %v66 = vld [vmem:[%s2 + $0x78] sm:$0xff]
  %v67 = vld [vmem:[%s2 + $0x80] sm:$0xff]
  %v68 = vld [vmem:[%s2 + $0x88] sm:$0xff]
  %v69 = vld [vmem:[%s2 + $0x90] sm:$0xff]
  %v70 = vld [vmem:[%s2 + $0x98] sm:$0xff]
  %v71 = vld [vmem:[%s2 + $0xa0] sm:$0xff]
  %v72 = vld [vmem:[%s2 + $0xa8] sm:$0xff]
  %v73 = vld [vmem:[%s2 + $0xb0] sm:$0xff]
  %v74 = vld [vmem:[%s2 + $0xb8] sm:$0xff]
  %v75 = vld [vmem:[%s2 + $0xc0] sm:$0xff]
  %v76 = vld [vmem:[%s2 + $0xc8] sm:$0xff]
  %v77 = vld [vmem:[%s2 + $0xd0] sm:$0xff]
  %v78 = vld [vmem:[%s2 + $0xd8] sm:$0xff]
  %v79 = vld [vmem:[%s2 + $0xe0] sm:$0xff]
  %v80 = vld [vmem:[%s2 + $0xe8] sm:$0xff]
  %v81 = vld [vmem:[%s2 + $0xf0] sm:$0xff]
  %v82 = vld [vmem:[%s2 + $0xf8] sm:$0xff]
  %v83 = vld [vmem:[%s4] sm:$0xf]
  %v85 = vlaneseq
  %v86 = vshrl.u32 %v85, 7
  %v87 = vsub.s32 0, %v86
  %v88 = vrot.slane %v83, %v87
  %v89 = vlaneseq
  %v90 = vshrl.u32 %v89, 7
  %v91 = vsub.s32 1, %v90
  %v92 = vrot.slane %v83, %v91
  %v93 = vlaneseq
  %v94 = vshrl.u32 %v93, 7
  %v95 = vsub.s32 2, %v94
  %v96 = vrot.slane %v83, %v95
  %v97 = vlaneseq
  %v98 = vshrl.u32 %v97, 7
  %v99 = vsub.s32 3, %v98
  %v100 = vrot.slane %v83, %v99
  %v113 = vunpack.c.l.b16 %v43
  %v114 = vunpack.c.l.b16 %v44
  %v115 = vunpack.c.l.b16 %v45
  %v116 = vunpack.c.l.b16 %v46
  %v117 = vunpack.c.l.b16 %v47
  %v118 = vunpack.c.l.b16 %v48
  %v119 = vunpack.c.l.b16 %v49
  %v120 = vunpack.c.l.b16 %v50
  %v121 = vpack.c.b16 %v114, %v113
  %v122 = vpack.c.b16 %v116, %v115
  %v123 = vpack.c.b16 %v118, %v117
  %v124 = vpack.c.b16 %v120, %v119
  %v161 = vunpack.c.l.b16 %v51
  %v162 = vunpack.c.h.b16 %v51
  %v163 = vunpack.c.l.b16 %v52
  %v164 = vunpack.c.h.b16 %v52
  %v165 = vunpack.c.l.b16 %v53
  %v166 = vunpack.c.h.b16 %v53
  %v167 = vunpack.c.l.b16 %v54
  %v168 = vunpack.c.h.b16 %v54
  %v169 = vunpack.c.l.b16 %v55
  %v170 = vunpack.c.h.b16 %v55
  %v171 = vunpack.c.l.b16 %v56
  %v172 = vunpack.c.h.b16 %v56
  %v173 = vunpack.c.l.b16 %v57
  %v174 = vunpack.c.h.b16 %v57
  %v175 = vunpack.c.l.b16 %v58
  %v176 = vunpack.c.h.b16 %v58
  %v177 = vunpack.c.l.b16 %v59
  %v178 = vunpack.c.h.b16 %v59
  %v179 = vunpack.c.l.b16 %v60
  %v180 = vunpack.c.h.b16 %v60
  %v181 = vunpack.c.l.b16 %v61
  %v182 = vunpack.c.h.b16 %v61
  %v183 = vunpack.c.l.b16 %v62
  %v184 = vunpack.c.h.b16 %v62
  %v185 = vunpack.c.l.b16 %v63
  %v186 = vunpack.c.h.b16 %v63
  %v187 = vunpack.c.l.b16 %v64
  %v188 = vunpack.c.h.b16 %v64
  %v189 = vunpack.c.l.b16 %v65
  %v190 = vunpack.c.h.b16 %v65
  %v191 = vunpack.c.l.b16 %v66
  %v192 = vunpack.c.h.b16 %v66
  %v193 = vunpack.c.l.b16 %v67
  %v194 = vunpack.c.h.b16 %v67
  %v195 = vunpack.c.l.b16 %v68
  %v196 = vunpack.c.h.b16 %v68
  %v197 = vunpack.c.l.b16 %v69
  %v198 = vunpack.c.h.b16 %v69
  %v199 = vunpack.c.l.b16 %v70
  %v200 = vunpack.c.h.b16 %v70
  %v201 = vunpack.c.l.b16 %v71
  %v202 = vunpack.c.h.b16 %v71
  %v203 = vunpack.c.l.b16 %v72
  %v204 = vunpack.c.h.b16 %v72
  %v205 = vunpack.c.l.b16 %v73
  %v206 = vunpack.c.h.b16 %v73
  %v207 = vunpack.c.l.b16 %v74
  %v208 = vunpack.c.h.b16 %v74
  %v209 = vunpack.c.l.b16 %v75
  %v210 = vunpack.c.h.b16 %v75
  %v211 = vunpack.c.l.b16 %v76
  %v212 = vunpack.c.h.b16 %v76
  %v213 = vunpack.c.l.b16 %v77
  %v214 = vunpack.c.h.b16 %v77
  %v215 = vunpack.c.l.b16 %v78
  %v216 = vunpack.c.h.b16 %v78
  %v217 = vunpack.c.l.b16 %v79
  %v218 = vunpack.c.h.b16 %v79
  %v219 = vunpack.c.l.b16 %v80
  %v220 = vunpack.c.h.b16 %v80
  %v221 = vunpack.c.l.b16 %v81
  %v222 = vunpack.c.h.b16 %v81
  %v223 = vunpack.c.l.b16 %v82
  %v224 = vunpack.c.h.b16 %v82
  %v225 = vpack.c.b16 %v165, %v161
  %v226 = vpack.c.b16 %v166, %v162
  %v227 = vpack.c.b16 %v167, %v163
  %v228 = vpack.c.b16 %v168, %v164
  %v229 = vpack.c.b16 %v173, %v169
  %v230 = vpack.c.b16 %v174, %v170
  %v231 = vpack.c.b16 %v175, %v171
  %v232 = vpack.c.b16 %v176, %v172
  %v233 = vpack.c.b16 %v181, %v177
  %v234 = vpack.c.b16 %v182, %v178
  %v235 = vpack.c.b16 %v183, %v179
  %v236 = vpack.c.b16 %v184, %v180
  %v237 = vpack.c.b16 %v189, %v185
  %v238 = vpack.c.b16 %v190, %v186
  %v239 = vpack.c.b16 %v191, %v187
  %v240 = vpack.c.b16 %v192, %v188
  %v241 = vpack.c.b16 %v197, %v193
  %v242 = vpack.c.b16 %v198, %v194
  %v243 = vpack.c.b16 %v199, %v195
  %v244 = vpack.c.b16 %v200, %v196
  %v245 = vpack.c.b16 %v205, %v201
  %v246 = vpack.c.b16 %v206, %v202
  %v247 = vpack.c.b16 %v207, %v203
  %v248 = vpack.c.b16 %v208, %v204
  %v249 = vpack.c.b16 %v213, %v209
  %v250 = vpack.c.b16 %v214, %v210
  %v251 = vpack.c.b16 %v215, %v211
  %v252 = vpack.c.b16 %v216, %v212
  %v253 = vpack.c.b16 %v221, %v217
  %v254 = vpack.c.b16 %v222, %v218
  %v255 = vpack.c.b16 %v223, %v219
  %v256 = vpack.c.b16 %v224, %v220
  %289 = vmatprep.subr.bf16.mxu0 %v254
  %290 = vmatpush1.bf16.msra.mxu0 %v253
  %291 = vmatprep.subr.bf16.mxu0 %v250
  %292 = vmatpush1.bf16.msra.mxu0 %v249
  %293 = vmatprep.subr.bf16.mxu0 %v246
  %294 = vmatpush1.bf16.msra.mxu0 %v245
  %295 = vmatprep.subr.bf16.mxu0 %v242
  %296 = vmatpush1.bf16.msra.mxu0 %v241
  %297 = vmatprep.subr.bf16.mxu0 %v238
  %298 = vmatpush1.bf16.msra.mxu0 %v237
  %299 = vmatprep.subr.bf16.mxu0 %v234
  %300 = vmatpush1.bf16.msra.mxu0 %v233
  %301 = vmatprep.subr.bf16.mxu0 %v230
  %302 = vmatpush1.bf16.msra.mxu0 %v229
  %303 = vmatprep.subr.bf16.mxu0 %v226
  %304 = vmatpush1.bf16.msra.mxu0 %v225
  %305 = vmatprep.subr.bf16.mxu0 0
  %306 = vmatpush2.bf16.msra.mxu0 0
  %307 = vmatprep.subr.bf16.mxu0 0
  %308 = vmatpush2.bf16.msra.mxu0 0
  %309 = vmatprep.subr.bf16.mxu0 0
  %310 = vmatpush2.bf16.msra.mxu0 0
  %311 = vmatprep.subr.bf16.mxu0 0
  %312 = vmatpush2.bf16.msra.mxu0 0
  %313 = vmatprep.subr.bf16.mxu0 0
  %314 = vmatpush2.bf16.msra.mxu0 0
  %315 = vmatprep.subr.bf16.mxu0 0
  %316 = vmatpush2.bf16.msra.mxu0 0
  %317 = vmatprep.subr.bf16.mxu0 0
  %318 = vmatpush2.bf16.msra.mxu0 0
  %319 = vmatprep.subr.bf16.mxu0 0
  %320 = vmatpush2.bf16.msra.mxu0 0
  %321 = vmatprep.mubr.bf16.mxu0 0
  %322 = vmatmul.mubr.bf16.gmra.mxu0 %v121
  %v323 = vpop.f32.mrf.mxu0
  %v324 = vadd.f32 %v88, %v323
  %v325 = vpop.f32.mrf.mxu0
  %v326 = vadd.f32 %v92, %v325
  %v327 = vpop.f32.mrf.mxu0
  %v328 = vadd.f32 %v88, %v327
  %v329 = vpop.f32.mrf.mxu0
  %v330 = vadd.f32 %v92, %v329
  %331 = vmatprep.mubr.bf16.mxu0 0
  %332 = vmatmul.mubr.bf16.gmra.mxu0 %v122
  %v333 = vpop.f32.mrf.mxu0
  %v334 = vadd.f32 %v88, %v333
  %v335 = vpop.f32.mrf.mxu0
  %v336 = vadd.f32 %v92, %v335
  %v337 = vpop.f32.mrf.mxu0
  %v338 = vadd.f32 %v88, %v337
  %v339 = vpop.f32.mrf.mxu0
  %v340 = vadd.f32 %v92, %v339
  %341 = vmatprep.mubr.bf16.mxu0 0
  %342 = vmatmul.mubr.bf16.gmra.mxu0 %v123
  %v343 = vpop.f32.mrf.mxu0
  %v344 = vadd.f32 %v88, %v343
  %v345 = vpop.f32.mrf.mxu0
  %v346 = vadd.f32 %v92, %v345
  %v347 = vpop.f32.mrf.mxu0
  %v348 = vadd.f32 %v88, %v347
  %v349 = vpop.f32.mrf.mxu0
  %v350 = vadd.f32 %v92, %v349
  %351 = vmatprep.mubr.bf16.mxu0 0
  %352 = vmatmul.mubr.bf16.gmra.mxu0 %v124
  %v353 = vpop.f32.mrf.mxu0
  %v354 = vadd.f32 %v88, %v353
  %v355 = vpop.f32.mrf.mxu0
  %v356 = vadd.f32 %v92, %v355
  %v357 = vpop.f32.mrf.mxu0
  %v358 = vadd.f32 %v88, %v357
  %v359 = vpop.f32.mrf.mxu0
  %v360 = vadd.f32 %v92, %v359
  %361 = vdwg.mxu0
  %362 = vmatprep.subr.bf16.mxu0 %v256
  %363 = vmatpush1.bf16.msra.mxu0 %v255
  %364 = vmatprep.subr.bf16.mxu0 %v252
  %365 = vmatpush1.bf16.msra.mxu0 %v251
  %366 = vmatprep.subr.bf16.mxu0 %v248
  %367 = vmatpush1.bf16.msra.mxu0 %v247
  %368 = vmatprep.subr.bf16.mxu0 %v244
  %369 = vmatpush1.bf16.msra.mxu0 %v243
  %370 = vmatprep.subr.bf16.mxu0 %v240
  %371 = vmatpush1.bf16.msra.mxu0 %v239
  %372 = vmatprep.subr.bf16.mxu0 %v236
  %373 = vmatpush1.bf16.msra.mxu0 %v235
  %374 = vmatprep.subr.bf16.mxu0 %v232
  %375 = vmatpush1.bf16.msra.mxu0 %v231
  %376 = vmatprep.subr.bf16.mxu0 %v228
  %377 = vmatpush1.bf16.msra.mxu0 %v227
  %378 = vmatprep.subr.bf16.mxu0 0
  %379 = vmatpush2.bf16.msra.mxu0 0
  %380 = vmatprep.subr.bf16.mxu0 0
  %381 = vmatpush2.bf16.msra.mxu0 0
  %382 = vmatprep.subr.bf16.mxu0 0
  %383 = vmatpush2.bf16.msra.mxu0 0
  %384 = vmatprep.subr.bf16.mxu0 0
  %385 = vmatpush2.bf16.msra.mxu0 0
  %386 = vmatprep.subr.bf16.mxu0 0
  %387 = vmatpush2.bf16.msra.mxu0 0
  %388 = vmatprep.subr.bf16.mxu0 0
  %389 = vmatpush2.bf16.msra.mxu0 0
  %390 = vmatprep.subr.bf16.mxu0 0
  %391 = vmatpush2.bf16.msra.mxu0 0
  %392 = vmatprep.subr.bf16.mxu0 0
  %393 = vmatpush2.bf16.msra.mxu0 0
  %394 = vmatprep.mubr.bf16.mxu0 0
  %395 = vmatmul.mubr.bf16.gmra.mxu0 %v121
  %v396 = vpop.f32.mrf.mxu0
  %v397 = vadd.f32 %v96, %v396
  %v398 = vpop.f32.mrf.mxu0
  %v399 = vadd.f32 %v100, %v398
  %v400 = vpop.f32.mrf.mxu0
  %v401 = vadd.f32 %v96, %v400
  %v402 = vpop.f32.mrf.mxu0
  %v403 = vadd.f32 %v100, %v402
  %404 = vmatprep.mubr.bf16.mxu0 0
  %405 = vmatmul.mubr.bf16.gmra.mxu0 %v122
  %v406 = vpop.f32.mrf.mxu0
  %v407 = vadd.f32 %v96, %v406
  %v408 = vpop.f32.mrf.mxu0
  %v409 = vadd.f32 %v100, %v408
  %v410 = vpop.f32.mrf.mxu0
  %v411 = vadd.f32 %v96, %v410
  %v412 = vpop.f32.mrf.mxu0
  %v413 = vadd.f32 %v100, %v412
  %414 = vmatprep.mubr.bf16.mxu0 0
  %415 = vmatmul.mubr.bf16.gmra.mxu0 %v123
  %v416 = vpop.f32.mrf.mxu0
  %v417 = vadd.f32 %v96, %v416
  %v418 = vpop.f32.mrf.mxu0
  %v419 = vadd.f32 %v100, %v418
  %v420 = vpop.f32.mrf.mxu0
  %v421 = vadd.f32 %v96, %v420
  %v422 = vpop.f32.mrf.mxu0
  %v423 = vadd.f32 %v100, %v422
  %424 = vmatprep.mubr.bf16.mxu0 0
  %425 = vmatmul.mubr.bf16.gmra.mxu0 %v124
  %v426 = vpop.f32.mrf.mxu0
  %v427 = vadd.f32 %v96, %v426
  %v428 = vpop.f32.mrf.mxu0
  %v429 = vadd.f32 %v100, %v428
  %v430 = vpop.f32.mrf.mxu0
  %v431 = vadd.f32 %v96, %v430
  %v432 = vpop.f32.mrf.mxu0
  %v433 = vadd.f32 %v100, %v432
  %434 = vdwg.mxu0
  %435 = vst [vmem:[#allocation2] sm:$0xff] %v324
  %436 = vst [vmem:[#allocation2 + $0x8] sm:$0xff] %v326
  %437 = vst [vmem:[#allocation2 + $0x10] sm:$0xff] %v397
  %438 = vst [vmem:[#allocation2 + $0x18] sm:$0xff] %v399
  %439 = vst [vmem:[#allocation2 + $0x20] sm:$0xff] %v328
  %440 = vst [vmem:[#allocation2 + $0x28] sm:$0xff] %v330
  %441 = vst [vmem:[#allocation2 + $0x30] sm:$0xff] %v401
  %442 = vst [vmem:[#allocation2 + $0x38] sm:$0xff] %v403
  %443 = vst [vmem:[#allocation2 + $0x40] sm:$0xff] %v334
  %444 = vst [vmem:[#allocation2 + $0x48] sm:$0xff] %v336
  %445 = vst [vmem:[#allocation2 + $0x50] sm:$0xff] %v407
  %446 = vst [vmem:[#allocation2 + $0x58] sm:$0xff] %v409
  %447 = vst [vmem:[#allocation2 + $0x60] sm:$0xff] %v338
  %448 = vst [vmem:[#allocation2 + $0x68] sm:$0xff] %v340
  %449 = vst [vmem:[#allocation2 + $0x70] sm:$0xff] %v411
  %450 = vst [vmem:[#allocation2 + $0x78] sm:$0xff] %v413
  %451 = vst [vmem:[#allocation2 + $0x80] sm:$0xff] %v344
  %452 = vst [vmem:[#allocation2 + $0x88] sm:$0xff] %v346
  %453 = vst [vmem:[#allocation2 + $0x90] sm:$0xff] %v417
  %454 = vst [vmem:[#allocation2 + $0x98] sm:$0xff] %v419
  %455 = vst [vmem:[#allocation2 + $0xa0] sm:$0xff] %v348
  %456 = vst [vmem:[#allocation2 + $0xa8] sm:$0xff] %v350
  %457 = vst [vmem:[#allocation2 + $0xb0] sm:$0xff] %v421
  %458 = vst [vmem:[#allocation2 + $0xb8] sm:$0xff] %v423
  %459 = vst [vmem:[#allocation2 + $0xc0] sm:$0xff] %v354
  %460 = vst [vmem:[#allocation2 + $0xc8] sm:$0xff] %v356
  %461 = vst [vmem:[#allocation2 + $0xd0] sm:$0xff] %v427
  %462 = vst [vmem:[#allocation2 + $0xd8] sm:$0xff] %v429
  %463 = vst [vmem:[#allocation2 + $0xe0] sm:$0xff] %v358
  %464 = vst [vmem:[#allocation2 + $0xe8] sm:$0xff] %v360
  %465 = vst [vmem:[#allocation2 + $0xf0] sm:$0xff] %v431
  %466 = vst [vmem:[#allocation2 + $0xf8] sm:$0xff] %v433
  %v467 = vld [vmem:[%s5] sm:$0xf]
  %v468 = vmax.bf16 %v467, 0
  %v469 = vld [vmem:[%s6] sm:$0xff]
  %v470 = vld [vmem:[%s6 + $0x8] sm:$0xff]
  %v471 = vld [vmem:[%s6 + $0x10] sm:$0xff]
  %v472 = vld [vmem:[%s6 + $0x18] sm:$0xff]
  %v473 = vld [vmem:[%s6 + $0x20] sm:$0xff]
  %v474 = vld [vmem:[%s6 + $0x28] sm:$0xff]
  %v475 = vld [vmem:[%s6 + $0x30] sm:$0xff]
  %v476 = vld [vmem:[%s6 + $0x38] sm:$0xff]
  %v477 = vld [vmem:[%s6 + $0x40] sm:$0xff]
  %v478 = vld [vmem:[%s6 + $0x48] sm:$0xff]
  %v479 = vld [vmem:[%s6 + $0x50] sm:$0xff]
  %v480 = vld [vmem:[%s6 + $0x58] sm:$0xff]
  %v481 = vld [vmem:[%s6 + $0x60] sm:$0xff]
  %v482 = vld [vmem:[%s6 + $0x68] sm:$0xff]
  %v483 = vld [vmem:[%s6 + $0x70] sm:$0xff]
  %v484 = vld [vmem:[%s6 + $0x78] sm:$0xff]
  %v485 = vld [vmem:[%s6 + $0x80] sm:$0xff]
  %v486 = vld [vmem:[%s6 + $0x88] sm:$0xff]
  %v487 = vld [vmem:[%s6 + $0x90] sm:$0xff]
  %v488 = vld [vmem:[%s6 + $0x98] sm:$0xff]
  %v489 = vld [vmem:[%s6 + $0xa0] sm:$0xff]
  %v490 = vld [vmem:[%s6 + $0xa8] sm:$0xff]
  %v491 = vld [vmem:[%s6 + $0xb0] sm:$0xff]
  %v492 = vld [vmem:[%s6 + $0xb8] sm:$0xff]
  %v493 = vld [vmem:[%s6 + $0xc0] sm:$0xff]
  %v494 = vld [vmem:[%s6 + $0xc8] sm:$0xff]
  %v495 = vld [vmem:[%s6 + $0xd0] sm:$0xff]
  %v496 = vld [vmem:[%s6 + $0xd8] sm:$0xff]
  %v497 = vld [vmem:[%s6 + $0xe0] sm:$0xff]
  %v498 = vld [vmem:[%s6 + $0xe8] sm:$0xff]
  %v499 = vld [vmem:[%s6 + $0xf0] sm:$0xff]
  %v500 = vld [vmem:[%s6 + $0xf8] sm:$0xff]
  %v501 = vld [vmem:[%s8] sm:$0xf]
  %v503 = vlaneseq
  %v504 = vshrl.u32 %v503, 7
  %v505 = vsub.s32 0, %v504
  %v506 = vrot.slane %v501, %v505
  %v507 = vlaneseq
  %v508 = vshrl.u32 %v507, 7
  %v509 = vsub.s32 1, %v508
  %v510 = vrot.slane %v501, %v509
  %v511 = vlaneseq
  %v512 = vshrl.u32 %v511, 7
  %v513 = vsub.s32 2, %v512
  %v514 = vrot.slane %v501, %v513
  %v515 = vlaneseq
  %v516 = vshrl.u32 %v515, 7
  %v517 = vsub.s32 3, %v516
  %v518 = vrot.slane %v501, %v517
  %v555 = vunpack.c.l.b16 %v469
  %v556 = vunpack.c.h.b16 %v469
  %v557 = vunpack.c.l.b16 %v470
  %v558 = vunpack.c.h.b16 %v470
  %v559 = vunpack.c.l.b16 %v471
  %v560 = vunpack.c.h.b16 %v471
  %v561 = vunpack.c.l.b16 %v472
  %v562 = vunpack.c.h.b16 %v472
  %v563 = vunpack.c.l.b16 %v473
  %v564 = vunpack.c.h.b16 %v473
  %v565 = vunpack.c.l.b16 %v474
  %v566 = vunpack.c.h.b16 %v474
  %v567 = vunpack.c.l.b16 %v475
  %v568 = vunpack.c.h.b16 %v475
  %v569 = vunpack.c.l.b16 %v476
  %v570 = vunpack.c.h.b16 %v476
  %v571 = vunpack.c.l.b16 %v477
  %v572 = vunpack.c.h.b16 %v477
  %v573 = vunpack.c.l.b16 %v478
  %v574 = vunpack.c.h.b16 %v478
  %v575 = vunpack.c.l.b16 %v479
  %v576 = vunpack.c.h.b16 %v479
  %v577 = vunpack.c.l.b16 %v480
  %v578 = vunpack.c.h.b16 %v480
  %v579 = vunpack.c.l.b16 %v481
  %v580 = vunpack.c.h.b16 %v481
  %v581 = vunpack.c.l.b16 %v482
  %v582 = vunpack.c.h.b16 %v482
  %v583 = vunpack.c.l.b16 %v483
  %v584 = vunpack.c.h.b16 %v483
  %v585 = vunpack.c.l.b16 %v484
  %v586 = vunpack.c.h.b16 %v484
  %v587 = vunpack.c.l.b16 %v485
  %v588 = vunpack.c.h.b16 %v485
  %v589 = vunpack.c.l.b16 %v486
  %v590 = vunpack.c.h.b16 %v486
  %v591 = vunpack.c.l.b16 %v487
  %v592 = vunpack.c.h.b16 %v487
  %v593 = vunpack.c.l.b16 %v488
  %v594 = vunpack.c.h.b16 %v488
  %v595 = vunpack.c.l.b16 %v489
  %v596 = vunpack.c.h.b16 %v489
  %v597 = vunpack.c.l.b16 %v490
  %v598 = vunpack.c.h.b16 %v490
  %v599 = vunpack.c.l.b16 %v491
  %v600 = vunpack.c.h.b16 %v491
  %v601 = vunpack.c.l.b16 %v492
  %v602 = vunpack.c.h.b16 %v492
  %v603 = vunpack.c.l.b16 %v493
  %v604 = vunpack.c.h.b16 %v493
  %v605 = vunpack.c.l.b16 %v494
  %v606 = vunpack.c.h.b16 %v494
  %v607 = vunpack.c.l.b16 %v495
  %v608 = vunpack.c.h.b16 %v495
  %v609 = vunpack.c.l.b16 %v496
  %v610 = vunpack.c.h.b16 %v496
  %v611 = vunpack.c.l.b16 %v497
  %v612 = vunpack.c.h.b16 %v497
  %v613 = vunpack.c.l.b16 %v498
  %v614 = vunpack.c.h.b16 %v498
  %v615 = vunpack.c.l.b16 %v499
  %v616 = vunpack.c.h.b16 %v499
  %v617 = vunpack.c.l.b16 %v500
  %v618 = vunpack.c.h.b16 %v500
  %v619 = vpack.c.b16 %v559, %v555
  %v620 = vpack.c.b16 %v560, %v556
  %v621 = vpack.c.b16 %v561, %v557
  %v622 = vpack.c.b16 %v562, %v558
  %v623 = vpack.c.b16 %v567, %v563
  %v624 = vpack.c.b16 %v568, %v564
  %v625 = vpack.c.b16 %v569, %v565
  %v626 = vpack.c.b16 %v570, %v566
  %v627 = vpack.c.b16 %v575, %v571
  %v628 = vpack.c.b16 %v576, %v572
  %v629 = vpack.c.b16 %v577, %v573
  %v630 = vpack.c.b16 %v578, %v574
  %v631 = vpack.c.b16 %v583, %v579
  %v632 = vpack.c.b16 %v584, %v580
  %v633 = vpack.c.b16 %v585, %v581
  %v634 = vpack.c.b16 %v586, %v582
  %v635 = vpack.c.b16 %v591, %v587
  %v636 = vpack.c.b16 %v592, %v588
  %v637 = vpack.c.b16 %v593, %v589
  %v638 = vpack.c.b16 %v594, %v590
  %v639 = vpack.c.b16 %v599, %v595
  %v640 = vpack.c.b16 %v600, %v596
  %v641 = vpack.c.b16 %v601, %v597
  %v642 = vpack.c.b16 %v602, %v598
  %v643 = vpack.c.b16 %v607, %v603
  %v644 = vpack.c.b16 %v608, %v604
  %v645 = vpack.c.b16 %v609, %v605
  %v646 = vpack.c.b16 %v610, %v606
  %v647 = vpack.c.b16 %v615, %v611
  %v648 = vpack.c.b16 %v616, %v612
  %v649 = vpack.c.b16 %v617, %v613
  %v650 = vpack.c.b16 %v618, %v614
  %683 = vmatprep.subr.bf16.mxu0 %v648
  %684 = vmatpush1.bf16.msra.mxu0 %v647
  %685 = vmatprep.subr.bf16.mxu0 %v644
  %686 = vmatpush1.bf16.msra.mxu0 %v643
  %687 = vmatprep.subr.bf16.mxu0 %v640
  %688 = vmatpush1.bf16.msra.mxu0 %v639
  %689 = vmatprep.subr.bf16.mxu0 %v636
  %690 = vmatpush1.bf16.msra.mxu0 %v635
  %691 = vmatprep.subr.bf16.mxu0 %v632
  %692 = vmatpush1.bf16.msra.mxu0 %v631
  %693 = vmatprep.subr.bf16.mxu0 %v628
  %694 = vmatpush1.bf16.msra.mxu0 %v627
  %695 = vmatprep.subr.bf16.mxu0 %v624
  %696 = vmatpush1.bf16.msra.mxu0 %v623
  %697 = vmatprep.subr.bf16.mxu0 %v620
  %698 = vmatpush1.bf16.msra.mxu0 %v619
  %699 = vmatprep.subr.bf16.mxu0 0
  %700 = vmatpush2.bf16.msra.mxu0 0
  %701 = vmatprep.subr.bf16.mxu0 0
  %702 = vmatpush2.bf16.msra.mxu0 0
  %703 = vmatprep.subr.bf16.mxu0 0
  %704 = vmatpush2.bf16.msra.mxu0 0
  %705 = vmatprep.subr.bf16.mxu0 0
  %706 = vmatpush2.bf16.msra.mxu0 0
  %707 = vmatprep.subr.bf16.mxu0 0
  %708 = vmatpush2.bf16.msra.mxu0 0
  %709 = vmatprep.subr.bf16.mxu0 0
  %710 = vmatpush2.bf16.msra.mxu0 0
  %711 = vmatprep.subr.bf16.mxu0 0
  %712 = vmatpush2.bf16.msra.mxu0 0
  %713 = vmatprep.subr.bf16.mxu0 0
  %714 = vmatpush2.bf16.msra.mxu0 0
  %715 = vmatprep.mubr.bf16.mxu0 0
  %716 = vmatmul.mubr.bf16.gmra.mxu0 %v468
  %v717 = vpop.f32.mrf.mxu0
  %v718 = vadd.f32 %v506, %v717
  %v719 = vpop.f32.mrf.mxu0
  %v720 = vadd.f32 %v510, %v719
  %v721 = vpop.f32.mrf.mxu0
  %v722 = vpop.f32.mrf.mxu0
  %723 = vdwg.mxu0
  %724 = vmatprep.subr.bf16.mxu0 %v650
  %725 = vmatpush1.bf16.msra.mxu0 %v649
  %726 = vmatprep.subr.bf16.mxu0 %v646
  %727 = vmatpush1.bf16.msra.mxu0 %v645
  %728 = vmatprep.subr.bf16.mxu0 %v642
  %729 = vmatpush1.bf16.msra.mxu0 %v641
  %730 = vmatprep.subr.bf16.mxu0 %v638
  %731 = vmatpush1.bf16.msra.mxu0 %v637
  %732 = vmatprep.subr.bf16.mxu0 %v634
  %733 = vmatpush1.bf16.msra.mxu0 %v633
  %734 = vmatprep.subr.bf16.mxu0 %v630
  %735 = vmatpush1.bf16.msra.mxu0 %v629
  %736 = vmatprep.subr.bf16.mxu0 %v626
  %737 = vmatpush1.bf16.msra.mxu0 %v625
  %738 = vmatprep.subr.bf16.mxu0 %v622
  %739 = vmatpush1.bf16.msra.mxu0 %v621
  %740 = vmatprep.subr.bf16.mxu0 0
  %741 = vmatpush2.bf16.msra.mxu0 0
  %742 = vmatprep.subr.bf16.mxu0 0
  %743 = vmatpush2.bf16.msra.mxu0 0
  %744 = vmatprep.subr.bf16.mxu0 0
  %745 = vmatpush2.bf16.msra.mxu0 0
  %746 = vmatprep.subr.bf16.mxu0 0
  %747 = vmatpush2.bf16.msra.mxu0 0
  %748 = vmatprep.subr.bf16.mxu0 0
  %749 = vmatpush2.bf16.msra.mxu0 0
  %750 = vmatprep.subr.bf16.mxu0 0
  %751 = vmatpush2.bf16.msra.mxu0 0
  %752 = vmatprep.subr.bf16.mxu0 0
  %753 = vmatpush2.bf16.msra.mxu0 0
  %754 = vmatprep.subr.bf16.mxu0 0
  %755 = vmatpush2.bf16.msra.mxu0 0
  %756 = vmatprep.mubr.bf16.mxu0 0
  %757 = vmatmul.mubr.bf16.gmra.mxu0 %v468
  %v758 = vpop.f32.mrf.mxu0
  %v759 = vadd.f32 %v514, %v758
  %v760 = vpop.f32.mrf.mxu0
  %v761 = vadd.f32 %v518, %v760
  %v762 = vpop.f32.mrf.mxu0
  %v763 = vpop.f32.mrf.mxu0
  %764 = vdwg.mxu0
  %765 = vst [vmem:[#allocation4] sm:$0xff] %v718
  %766 = vst [vmem:[#allocation4 + $0x8] sm:$0xff] %v720
  %767 = vst [vmem:[#allocation4 + $0x10] sm:$0xff] %v759
  %768 = vst [vmem:[#allocation4 + $0x18] sm:$0xff] %v761
  %769 = vst [vmem:[#allocation3] sm:$0xff] 0.0
  %770 = vst [vmem:[#allocation3 + $0x8] sm:$0xff] 0.0
  %771 = vst [vmem:[#allocation3 + $0x10] sm:$0xff] 0.0
  %772 = vst [vmem:[#allocation3 + $0x18] sm:$0xff] 0.0
  %773 = vst [vmem:[#allocation3 + $0x20] sm:$0xff] 0.0
  %774 = vst [vmem:[#allocation3 + $0x28] sm:$0xff] 0.0
  %775 = vst [vmem:[#allocation3 + $0x30] sm:$0xff] 0.0
  %776 = vst [vmem:[#allocation3 + $0x38] sm:$0xff] 0.0
  %777 = vst [vmem:[#allocation3 + $0x40] sm:$0xff] 0.0
  %778 = vst [vmem:[#allocation3 + $0x48] sm:$0xff] 0.0
  %779 = vst [vmem:[#allocation3 + $0x50] sm:$0xff] 0.0
  %780 = vst [vmem:[#allocation3 + $0x58] sm:$0xff] 0.0
  %781 = vst [vmem:[#allocation3 + $0x60] sm:$0xff] 0.0
  %782 = vst [vmem:[#allocation3 + $0x68] sm:$0xff] 0.0
  %783 = vst [vmem:[#allocation3 + $0x70] sm:$0xff] 0.0
  %784 = vst [vmem:[#allocation3 + $0x78] sm:$0xff] 0.0
  %785 = vst [vmem:[#allocation3 + $0x80] sm:$0xff] 0.0
  %786 = vst [vmem:[#allocation3 + $0x88] sm:$0xff] 0.0
  %787 = vst [vmem:[#allocation3 + $0x90] sm:$0xff] 0.0
  %788 = vst [vmem:[#allocation3 + $0x98] sm:$0xff] 0.0
  %789 = vst [vmem:[#allocation3 + $0xa0] sm:$0xff] 0.0
  %790 = vst [vmem:[#allocation3 + $0xa8] sm:$0xff] 0.0
  %791 = vst [vmem:[#allocation3 + $0xb0] sm:$0xff] 0.0
  %792 = vst [vmem:[#allocation3 + $0xb8] sm:$0xff] 0.0
  %793 = vst [vmem:[#allocation3 + $0xc0] sm:$0xff] 0.0
  %794 = vst [vmem:[#allocation3 + $0xc8] sm:$0xff] 0.0
  %795 = vst [vmem:[#allocation3 + $0xd0] sm:$0xff] 0.0
  %796 = vst [vmem:[#allocation3 + $0xd8] sm:$0xff] 0.0
  %s797 = sld [smem:[#allocation6]]
  %s798 = sshra.s32 %s797, 3
  %s799 = sand.u32 %s797, 7
  %s800 = sshra.s32 %s797, 3
  %s801 = sand.u32 %s797, 7
  %s802 = smul.u32 %s798, 4
  %s803 = smul.u32 %s802, 8
  %s804 = sadd.s32 %s803, %s801
  %s805 = scalar_lea.vmem [#allocation4], %s804
  %v806 = vld [vmem:[%s805] ss:$8 sm:$0xf]
  %v807 = vlaneseq
  %vm808 = vcmp.ge.s32.totalorder %v807, 0
  %vm809 = vcmp.lt.s32.totalorder %v807, 512
  %vm810 = vmand %vm808, %vm809
  %811 = vst.msk [vmem:[#allocation3] ss:$8 sm:$0xf] %vm810, %v806
  %812 = vst.msk [vmem:[#allocation3] ss:$8 sm:$0x0] %vm810, %v806
  %s813 = sld [smem:[#allocation6 + $0x7]]
  %s814 = sshra.s32 %s813, 3
  %s815 = sand.u32 %s813, 7
  %s816 = sshra.s32 %s813, 3
  %s817 = sand.u32 %s813, 7
  %s818 = smul.u32 %s814, 4
  %s819 = smul.u32 %s818, 8
  %s820 = sadd.s32 %s819, %s817
  %s821 = scalar_lea.vmem [#allocation4], %s820
  %v822 = vld [vmem:[%s821] ss:$8 sm:$0xf]
  %s823 = scalar_lea.vmem [#allocation3], 1
  %824 = vst.msk [vmem:[%s823] ss:$8 sm:$0xf] %vm810, %v822
  %825 = vst.msk [vmem:[%s823] ss:$8 sm:$0x0] %vm810, %v822
  %s826 = sld [smem:[#allocation6 + $0x1]]
  %s827 = sshra.s32 %s826, 3
  %s828 = sand.u32 %s826, 7
  %s829 = sshra.s32 %s826, 3
  %s830 = sand.u32 %s826, 7
  %s831 = smul.u32 %s827, 4
  %s832 = smul.u32 %s831, 8
  %s833 = sadd.s32 %s832, %s830
  %s834 = scalar_lea.vmem [#allocation4], %s833
  %v835 = vld [vmem:[%s834] ss:$8 sm:$0xf]
  %s836 = scalar_lea.vmem [#allocation3], 32
  %837 = vst.msk [vmem:[%s836] ss:$8 sm:$0xf] %vm810, %v835
  %838 = vst.msk [vmem:[%s836] ss:$8 sm:$0x0] %vm810, %v835
  %s839 = sld [smem:[#allocation6 + $0x8]]
  %s840 = sshra.s32 %s839, 3
  %s841 = sand.u32 %s839, 7
  %s842 = sshra.s32 %s839, 3
  %s843 = sand.u32 %s839, 7
  %s844 = smul.u32 %s840, 4
  %s845 = smul.u32 %s844, 8
  %s846 = sadd.s32 %s845, %s843
  %s847 = scalar_lea.vmem [#allocation4], %s846
  %v848 = vld [vmem:[%s847] ss:$8 sm:$0xf]
  %s849 = scalar_lea.vmem [#allocation3], 33
  %850 = vst.msk [vmem:[%s849] ss:$8 sm:$0xf] %vm810, %v848
  %851 = vst.msk [vmem:[%s849] ss:$8 sm:$0x0] %vm810, %v848
  %s852 = sld [smem:[#allocation6 + $0x2]]
  %s853 = sshra.s32 %s852, 3
  %s854 = sand.u32 %s852, 7
  %s855 = sshra.s32 %s852, 3
  %s856 = sand.u32 %s852, 7
  %s857 = smul.u32 %s853, 4
  %s858 = smul.u32 %s857, 8
  %s859 = sadd.s32 %s858, %s856
  %s860 = scalar_lea.vmem [#allocation4], %s859
  %v861 = vld [vmem:[%s860] ss:$8 sm:$0xf]
  %s862 = scalar_lea.vmem [#allocation3], 64
  %863 = vst.msk [vmem:[%s862] ss:$8 sm:$0xf] %vm810, %v861
  %864 = vst.msk [vmem:[%s862] ss:$8 sm:$0x0] %vm810, %v861
  %s865 = sld [smem:[#allocation6 + $0x9]]
  %s866 = sshra.s32 %s865, 3
  %s867 = sand.u32 %s865, 7
  %s868 = sshra.s32 %s865, 3
  %s869 = sand.u32 %s865, 7
  %s870 = smul.u32 %s866, 4
  %s871 = smul.u32 %s870, 8
  %s872 = sadd.s32 %s871, %s869
  %s873 = scalar_lea.vmem [#allocation4], %s872
  %v874 = vld [vmem:[%s873] ss:$8 sm:$0xf]
  %s875 = scalar_lea.vmem [#allocation3], 65
  %876 = vst.msk [vmem:[%s875] ss:$8 sm:$0xf] %vm810, %v874
  %877 = vst.msk [vmem:[%s875] ss:$8 sm:$0x0] %vm810, %v874
  %s878 = sld [smem:[#allocation6 + $0x3]]
  %s879 = sshra.s32 %s878, 3
  %s880 = sand.u32 %s878, 7
  %s881 = sshra.s32 %s878, 3
  %s882 = sand.u32 %s878, 7
  %s883 = smul.u32 %s879, 4
  %s884 = smul.u32 %s883, 8
  %s885 = sadd.s32 %s884, %s882
  %s886 = scalar_lea.vmem [#allocation4], %s885
  %v887 = vld [vmem:[%s886] ss:$8 sm:$0xf]
  %s888 = scalar_lea.vmem [#allocation3], 96
  %889 = vst.msk [vmem:[%s888] ss:$8 sm:$0xf] %vm810, %v887
  %890 = vst.msk [vmem:[%s888] ss:$8 sm:$0x0] %vm810, %v887
  %s891 = sld [smem:[#allocation6 + $0xa]]
  %s892 = sshra.s32 %s891, 3
  %s893 = sand.u32 %s891, 7
  %s894 = sshra.s32 %s891, 3
  %s895 = sand.u32 %s891, 7
  %s896 = smul.u32 %s892, 4
  %s897 = smul.u32 %s896, 8
  %s898 = sadd.s32 %s897, %s895
  %s899 = scalar_lea.vmem [#allocation4], %s898
  %v900 = vld [vmem:[%s899] ss:$8 sm:$0xf]
  %s901 = scalar_lea.vmem [#allocation3], 97
  %902 = vst.msk [vmem:[%s901] ss:$8 sm:$0xf] %vm810, %v900
  %903 = vst.msk [vmem:[%s901] ss:$8 sm:$0x0] %vm810, %v900
  %s904 = sld [smem:[#allocation6 + $0x4]]
  %s905 = sshra.s32 %s904, 3
  %s906 = sand.u32 %s904, 7
  %s907 = sshra.s32 %s904, 3
  %s908 = sand.u32 %s904, 7
  %s909 = smul.u32 %s905, 4
  %s910 = smul.u32 %s909, 8
  %s911 = sadd.s32 %s910, %s908
  %s912 = scalar_lea.vmem [#allocation4], %s911
  %v913 = vld [vmem:[%s912] ss:$8 sm:$0xf]
  %s914 = scalar_lea.vmem [#allocation3], 128
  %915 = vst.msk [vmem:[%s914] ss:$8 sm:$0xf] %vm810, %v913
  %916 = vst.msk [vmem:[%s914] ss:$8 sm:$0x0] %vm810, %v913
  %s917 = sld [smem:[#allocation6 + $0xb]]
  %s918 = sshra.s32 %s917, 3
  %s919 = sand.u32 %s917, 7
  %s920 = sshra.s32 %s917, 3
  %s921 = sand.u32 %s917, 7
  %s922 = smul.u32 %s918, 4
  %s923 = smul.u32 %s922, 8
  %s924 = sadd.s32 %s923, %s921
  %s925 = scalar_lea.vmem [#allocation4], %s924
  %v926 = vld [vmem:[%s925] ss:$8 sm:$0xf]
  %s927 = scalar_lea.vmem [#allocation3], 129
  %928 = vst.msk [vmem:[%s927] ss:$8 sm:$0xf] %vm810, %v926
  %929 = vst.msk [vmem:[%s927] ss:$8 sm:$0x0] %vm810, %v926
  %s930 = sld [smem:[#allocation6 + $0x5]]
  %s931 = sshra.s32 %s930, 3
  %s932 = sand.u32 %s930, 7
  %s933 = sshra.s32 %s930, 3
  %s934 = sand.u32 %s930, 7
  %s935 = smul.u32 %s931, 4
  %s936 = smul.u32 %s935, 8
  %s937 = sadd.s32 %s936, %s934
  %s938 = scalar_lea.vmem [#allocation4], %s937
  %v939 = vld [vmem:[%s938] ss:$8 sm:$0xf]
  %s940 = scalar_lea.vmem [#allocation3], 160
  %941 = vst.msk [vmem:[%s940] ss:$8 sm:$0xf] %vm810, %v939
  %942 = vst.msk [vmem:[%s940] ss:$8 sm:$0x0] %vm810, %v939
  %s943 = sld [smem:[#allocation6 + $0xc]]
  %s944 = sshra.s32 %s943, 3
  %s945 = sand.u32 %s943, 7
  %s946 = sshra.s32 %s943, 3
  %s947 = sand.u32 %s943, 7
  %s948 = smul.u32 %s944, 4
  %s949 = smul.u32 %s948, 8
  %s950 = sadd.s32 %s949, %s947
  %s951 = scalar_lea.vmem [#allocation4], %s950
  %v952 = vld [vmem:[%s951] ss:$8 sm:$0xf]
  %s953 = scalar_lea.vmem [#allocation3], 161
  %954 = vst.msk [vmem:[%s953] ss:$8 sm:$0xf] %vm810, %v952
  %955 = vst.msk [vmem:[%s953] ss:$8 sm:$0x0] %vm810, %v952
  %s956 = sld [smem:[#allocation6 + $0x6]]
  %s957 = sshra.s32 %s956, 3
  %s958 = sand.u32 %s956, 7
  %s959 = sshra.s32 %s956, 3
  %s960 = sand.u32 %s956, 7
  %s961 = smul.u32 %s957, 4
  %s962 = smul.u32 %s961, 8
  %s963 = sadd.s32 %s962, %s960
  %s964 = scalar_lea.vmem [#allocation4], %s963
  %v965 = vld [vmem:[%s964] ss:$8 sm:$0xf]
  %s966 = scalar_lea.vmem [#allocation3], 192
  %967 = vst.msk [vmem:[%s966] ss:$8 sm:$0xf] %vm810, %v965
  %968 = vst.msk [vmem:[%s966] ss:$8 sm:$0x0] %vm810, %v965
  %s969 = sld [smem:[#allocation6 + $0xd]]
  %s970 = sshra.s32 %s969, 3
  %s971 = sand.u32 %s969, 7
  %s972 = sshra.s32 %s969, 3
  %s973 = sand.u32 %s969, 7
  %s974 = smul.u32 %s970, 4
  %s975 = smul.u32 %s974, 8
  %s976 = sadd.s32 %s975, %s973
  %s977 = scalar_lea.vmem [#allocation4], %s976
  %v978 = vld [vmem:[%s977] ss:$8 sm:$0xf]
  %s979 = scalar_lea.vmem [#allocation3], 193
  %980 = vst.msk [vmem:[%s979] ss:$8 sm:$0xf] %vm810, %v978
  %981 = vst.msk [vmem:[%s979] ss:$8 sm:$0x0] %vm810, %v978
  %v982 = vld [vmem:[#allocation2] sm:$0xff]
  %v983 = vld [vmem:[#allocation2 + $0x8] sm:$0xff]
  %v984 = vld [vmem:[#allocation2 + $0x10] sm:$0xff]
  %v985 = vld [vmem:[#allocation2 + $0x18] sm:$0xff]
  %v986 = vld [vmem:[%s3] sm:$0xff]
  %v987 = vld [vmem:[%s3 + $0x8] sm:$0xff]
  %v988 = vld [vmem:[%s3 + $0x10] sm:$0xff]
  %v989 = vld [vmem:[%s3 + $0x18] sm:$0xff]
  %v990 = vld [vmem:[%s3 + $0x20] sm:$0xff]
  %v991 = vld [vmem:[%s3 + $0x28] sm:$0xff]
  %v992 = vld [vmem:[%s3 + $0x30] sm:$0xff]
  %v993 = vld [vmem:[%s3 + $0x38] sm:$0xff]
  %v994 = vld [vmem:[%s3 + $0x40] sm:$0xff]
  %v995 = vld [vmem:[%s3 + $0x48] sm:$0xff]
  %v996 = vld [vmem:[%s3 + $0x50] sm:$0xff]
  %v997 = vld [vmem:[%s3 + $0x58] sm:$0xff]
  %v998 = vld [vmem:[%s3 + $0x60] sm:$0xff]
  %v999 = vld [vmem:[%s3 + $0x68] sm:$0xff]
  %v1000 = vld [vmem:[%s3 + $0x70] sm:$0xff]
  %v1001 = vld [vmem:[%s3 + $0x78] sm:$0xff]
  %v1002 = vld [vmem:[%s3 + $0x80] sm:$0xff]
  %v1003 = vld [vmem:[%s3 + $0x88] sm:$0xff]
  %v1004 = vld [vmem:[%s3 + $0x90] sm:$0xff]
  %v1005 = vld [vmem:[%s3 + $0x98] sm:$0xff]
  %v1006 = vld [vmem:[%s3 + $0xa0] sm:$0xff]
  %v1007 = vld [vmem:[%s3 + $0xa8] sm:$0xff]
  %v1008 = vld [vmem:[%s3 + $0xb0] sm:$0xff]
  %v1009 = vld [vmem:[%s3 + $0xb8] sm:$0xff]
  %v1010 = vld [vmem:[%s3 + $0xc0] sm:$0xff]
  %v1011 = vld [vmem:[%s3 + $0xc8] sm:$0xff]
  %v1012 = vld [vmem:[%s3 + $0xd0] sm:$0xff]
  %v1013 = vld [vmem:[%s3 + $0xd8] sm:$0xff]
  %v1014 = vld [vmem:[%s3 + $0xe0] sm:$0xff]
  %v1015 = vld [vmem:[%s3 + $0xe8] sm:$0xff]
  %v1016 = vld [vmem:[%s3 + $0xf0] sm:$0xff]
  %v1017 = vld [vmem:[%s3 + $0xf8] sm:$0xff]
  %v1050 = vunpack.c.l.b16 %v986
  %v1051 = vunpack.c.h.b16 %v986
  %v1052 = vunpack.c.l.b16 %v987
  %v1053 = vunpack.c.h.b16 %v987
  %v1054 = vunpack.c.l.b16 %v988
  %v1055 = vunpack.c.h.b16 %v988
  %v1056 = vunpack.c.l.b16 %v989
  %v1057 = vunpack.c.h.b16 %v989
  %v1058 = vunpack.c.l.b16 %v990
  %v1059 = vunpack.c.h.b16 %v990
  %v1060 = vunpack.c.l.b16 %v991
  %v1061 = vunpack.c.h.b16 %v991
  %v1062 = vunpack.c.l.b16 %v992
  %v1063 = vunpack.c.h.b16 %v992
  %v1064 = vunpack.c.l.b16 %v993
  %v1065 = vunpack.c.h.b16 %v993
  %v1066 = vunpack.c.l.b16 %v994
  %v1067 = vunpack.c.h.b16 %v994
  %v1068 = vunpack.c.l.b16 %v995
  %v1069 = vunpack.c.h.b16 %v995
  %v1070 = vunpack.c.l.b16 %v996
  %v1071 = vunpack.c.h.b16 %v996
  %v1072 = vunpack.c.l.b16 %v997
  %v1073 = vunpack.c.h.b16 %v997
  %v1074 = vunpack.c.l.b16 %v998
  %v1075 = vunpack.c.h.b16 %v998
  %v1076 = vunpack.c.l.b16 %v999
  %v1077 = vunpack.c.h.b16 %v999
  %v1078 = vunpack.c.l.b16 %v1000
  %v1079 = vunpack.c.h.b16 %v1000
  %v1080 = vunpack.c.l.b16 %v1001
  %v1081 = vunpack.c.h.b16 %v1001
  %v1082 = vunpack.c.l.b16 %v1002
  %v1083 = vunpack.c.h.b16 %v1002
  %v1084 = vunpack.c.l.b16 %v1003
  %v1085 = vunpack.c.h.b16 %v1003
  %v1086 = vunpack.c.l.b16 %v1004
  %v1087 = vunpack.c.h.b16 %v1004
  %v1088 = vunpack.c.l.b16 %v1005
  %v1089 = vunpack.c.h.b16 %v1005
  %v1090 = vunpack.c.l.b16 %v1006
  %v1091 = vunpack.c.h.b16 %v1006
  %v1092 = vunpack.c.l.b16 %v1007
  %v1093 = vunpack.c.h.b16 %v1007
  %v1094 = vunpack.c.l.b16 %v1008
  %v1095 = vunpack.c.h.b16 %v1008
  %v1096 = vunpack.c.l.b16 %v1009
  %v1097 = vunpack.c.h.b16 %v1009
  %v1098 = vunpack.c.l.b16 %v1010
  %v1099 = vunpack.c.h.b16 %v1010
  %v1100 = vunpack.c.l.b16 %v1011
  %v1101 = vunpack.c.h.b16 %v1011
  %v1102 = vunpack.c.l.b16 %v1012
  %v1103 = vunpack.c.h.b16 %v1012
  %v1104 = vunpack.c.l.b16 %v1013
  %v1105 = vunpack.c.h.b16 %v1013
  %v1106 = vunpack.c.l.b16 %v1014
  %v1107 = vunpack.c.h.b16 %v1014
  %v1108 = vunpack.c.l.b16 %v1015
  %v1109 = vunpack.c.h.b16 %v1015
  %v1110 = vunpack.c.l.b16 %v1016
  %v1111 = vunpack.c.h.b16 %v1016
  %v1112 = vunpack.c.l.b16 %v1017
  %v1113 = vunpack.c.h.b16 %v1017
  %v1114 = vpack.c.b16 %v1054, %v1050
  %v1115 = vpack.c.b16 %v1055, %v1051
  %v1116 = vpack.c.b16 %v1056, %v1052
  %v1117 = vpack.c.b16 %v1057, %v1053
  %v1118 = vpack.c.b16 %v1062, %v1058
  %v1119 = vpack.c.b16 %v1063, %v1059
  %v1120 = vpack.c.b16 %v1064, %v1060
  %v1121 = vpack.c.b16 %v1065, %v1061
  %v1122 = vpack.c.b16 %v1070, %v1066
  %v1123 = vpack.c.b16 %v1071, %v1067
  %v1124 = vpack.c.b16 %v1072, %v1068
  %v1125 = vpack.c.b16 %v1073, %v1069
  %v1126 = vpack.c.b16 %v1078, %v1074
  %v1127 = vpack.c.b16 %v1079, %v1075
  %v1128 = vpack.c.b16 %v1080, %v1076
  %v1129 = vpack.c.b16 %v1081, %v1077
  %v1130 = vpack.c.b16 %v1086, %v1082
  %v1131 = vpack.c.b16 %v1087, %v1083
  %v1132 = vpack.c.b16 %v1088, %v1084
  %v1133 = vpack.c.b16 %v1089, %v1085
  %v1134 = vpack.c.b16 %v1094, %v1090
  %v1135 = vpack.c.b16 %v1095, %v1091
  %v1136 = vpack.c.b16 %v1096, %v1092
  %v1137 = vpack.c.b16 %v1097, %v1093
  %v1138 = vpack.c.b16 %v1102, %v1098
  %v1139 = vpack.c.b16 %v1103, %v1099
  %v1140 = vpack.c.b16 %v1104, %v1100
  %v1141 = vpack.c.b16 %v1105, %v1101
  %v1142 = vpack.c.b16 %v1110, %v1106
  %v1143 = vpack.c.b16 %v1111, %v1107
  %v1144 = vpack.c.b16 %v1112, %v1108
  %v1145 = vpack.c.b16 %v1113, %v1109
  %1178 = vmatprep.subr.bf16.mxu0 %v1143
  %1179 = vmatpush1.bf16.msra.mxu0 %v1142
  %1180 = vmatprep.subr.bf16.mxu0 %v1139
  %1181 = vmatpush1.bf16.msra.mxu0 %v1138
  %1182 = vmatprep.subr.bf16.mxu0 %v1135
  %1183 = vmatpush1.bf16.msra.mxu0 %v1134
  %1184 = vmatprep.subr.bf16.mxu0 %v1131
  %1185 = vmatpush1.bf16.msra.mxu0 %v1130
  %1186 = vmatprep.subr.bf16.mxu0 %v1127
  %1187 = vmatpush1.bf16.msra.mxu0 %v1126
  %1188 = vmatprep.subr.bf16.mxu0 %v1123
  %1189 = vmatpush1.bf16.msra.mxu0 %v1122
  %1190 = vmatprep.subr.bf16.mxu0 %v1119
  %1191 = vmatpush1.bf16.msra.mxu0 %v1118
  %1192 = vmatprep.subr.bf16.mxu0 %v1115
  %1193 = vmatpush1.bf16.msra.mxu0 %v1114
  %1194 = vmatprep.subr.bf16.mxu0 0
  %1195 = vmatpush2.bf16.msra.mxu0 0
  %1196 = vmatprep.subr.bf16.mxu0 0
  %1197 = vmatpush2.bf16.msra.mxu0 0
  %1198 = vmatprep.subr.bf16.mxu0 0
  %1199 = vmatpush2.bf16.msra.mxu0 0
  %1200 = vmatprep.subr.bf16.mxu0 0
  %1201 = vmatpush2.bf16.msra.mxu0 0
  %1202 = vmatprep.subr.bf16.mxu0 0
  %1203 = vmatpush2.bf16.msra.mxu0 0
  %1204 = vmatprep.subr.bf16.mxu0 0
  %1205 = vmatpush2.bf16.msra.mxu0 0
  %1206 = vmatprep.subr.bf16.mxu0 0
  %1207 = vmatpush2.bf16.msra.mxu0 0
  %1208 = vmatprep.subr.bf16.mxu0 0
  %1209 = vmatpush2.bf16.msra.mxu0 0
  %1210 = vmatprep.mubr.bf16.mxu0 0
  %1211 = vmatmul.mubr.bf16.gmra.mxu0 0
  %v1212 = vpop.f32.mrf.mxu0
  %v1213 = vadd.f32 0.0, %v1212
  %v1214 = vpop.f32.mrf.mxu0
  %v1215 = vadd.f32 0.0, %v1214
  %v1216 = vpop.f32.mrf.mxu0
  %v1217 = vpop.f32.mrf.mxu0
  %1218 = vdwg.mxu0
  %1219 = vmatprep.subr.bf16.mxu0 %v1145
  %1220 = vmatpush1.bf16.msra.mxu0 %v1144
  %1221 = vmatprep.subr.bf16.mxu0 %v1141
  %1222 = vmatpush1.bf16.msra.mxu0 %v1140
  %1223 = vmatprep.subr.bf16.mxu0 %v1137
  %1224 = vmatpush1.bf16.msra.mxu0 %v1136
  %1225 = vmatprep.subr.bf16.mxu0 %v1133
  %1226 = vmatpush1.bf16.msra.mxu0 %v1132
  %1227 = vmatprep.subr.bf16.mxu0 %v1129
  %1228 = vmatpush1.bf16.msra.mxu0 %v1128
  %1229 = vmatprep.subr.bf16.mxu0 %v1125
  %1230 = vmatpush1.bf16.msra.mxu0 %v1124
  %1231 = vmatprep.subr.bf16.mxu0 %v1121
  %1232 = vmatpush1.bf16.msra.mxu0 %v1120
  %1233 = vmatprep.subr.bf16.mxu0 %v1117
  %1234 = vmatpush1.bf16.msra.mxu0 %v1116
  %1235 = vmatprep.subr.bf16.mxu0 0
  %1236 = vmatpush2.bf16.msra.mxu0 0
  %1237 = vmatprep.subr.bf16.mxu0 0
  %1238 = vmatpush2.bf16.msra.mxu0 0
  %1239 = vmatprep.subr.bf16.mxu0 0
  %1240 = vmatpush2.bf16.msra.mxu0 0
  %1241 = vmatprep.subr.bf16.mxu0 0
  %1242 = vmatpush2.bf16.msra.mxu0 0
  %1243 = vmatprep.subr.bf16.mxu0 0
  %1244 = vmatpush2.bf16.msra.mxu0 0
  %1245 = vmatprep.subr.bf16.mxu0 0
  %1246 = vmatpush2.bf16.msra.mxu0 0
  %1247 = vmatprep.subr.bf16.mxu0 0
  %1248 = vmatpush2.bf16.msra.mxu0 0
  %1249 = vmatprep.subr.bf16.mxu0 0
  %1250 = vmatpush2.bf16.msra.mxu0 0
  %1251 = vmatprep.mubr.bf16.mxu0 0
  %1252 = vmatmul.mubr.bf16.gmra.mxu0 0
  %v1253 = vpop.f32.mrf.mxu0
  %v1254 = vadd.f32 0.0, %v1253
  %v1255 = vpop.f32.mrf.mxu0
  %v1256 = vadd.f32 0.0, %v1255
  %v1257 = vpop.f32.mrf.mxu0
  %v1258 = vpop.f32.mrf.mxu0
  %1259 = vdwg.mxu0
  %v1260 = vadd.f32 %v982, %v1213
  %v1261 = vadd.f32 %v983, %v1215
  %v1262 = vadd.f32 %v984, %v1254
  %v1263 = vadd.f32 %v985, %v1256
  %v1264 = vmul.f32 %v1260, 0.5
  %v1265 = vmul.f32 %v1261, 0.5
  %v1266 = vmul.f32 %v1262, 0.5
  %v1267 = vtanh.pop %v1264
  %v1268 = vtanh.pop %v1265
  %v1269 = vtanh.pop %v1266
  %v1270 = vmul.f32 %v1267, 0.5
  %v1271 = vmul.f32 %v1268, 0.5
  %v1272 = vmul.f32 %v1269, 0.5
  %v1273 = vadd.f32 %v1270, 0.5
  %v1274 = vadd.f32 %v1271, 0.5
  %v1275 = vadd.f32 %v1272, 0.5
  %v1276 = vtanh.pop %v1263
  %v1277 = vmul.f32 %v1274, 0.0
  %v1278 = vmul.f32 %v1273, %v1276
  %v1279 = vadd.f32 %v1277, %v1278
  %v1280 = vtanh.pop %v1279
  %v1281 = vmul.f32 %v1275, %v1280
  %v1282 = vld [vmem:[#allocation2 + $0x20] sm:$0xff]
  %v1283 = vld [vmem:[#allocation2 + $0x28] sm:$0xff]
  %v1284 = vld [vmem:[#allocation2 + $0x30] sm:$0xff]
  %v1285 = vld [vmem:[#allocation2 + $0x38] sm:$0xff]
  %v1286 = vpack.c.bf16 %v1281, %v1281
  %1287 = vmatprep.subr.bf16.mxu0 %v1143
  %1288 = vmatpush1.bf16.msra.mxu0 %v1142
  %1289 = vmatprep.subr.bf16.mxu0 %v1139
  %1290 = vmatpush1.bf16.msra.mxu0 %v1138
  %1291 = vmatprep.subr.bf16.mxu0 %v1135
  %1292 = vmatpush1.bf16.msra.mxu0 %v1134
  %1293 = vmatprep.subr.bf16.mxu0 %v1131
  %1294 = vmatpush1.bf16.msra.mxu0 %v1130
  %1295 = vmatprep.subr.bf16.mxu0 %v1127
  %1296 = vmatpush1.bf16.msra.mxu0 %v1126
  %1297 = vmatprep.subr.bf16.mxu0 %v1123
  %1298 = vmatpush1.bf16.msra.mxu0 %v1122
  %1299 = vmatprep.subr.bf16.mxu0 %v1119
  %1300 = vmatpush1.bf16.msra.mxu0 %v1118
  %1301 = vmatprep.subr.bf16.mxu0 %v1115
  %1302 = vmatpush1.bf16.msra.mxu0 %v1114
  %1303 = vmatprep.subr.bf16.mxu0 0
  %1304 = vmatpush2.bf16.msra.mxu0 0
  %1305 = vmatprep.subr.bf16.mxu0 0
  %1306 = vmatpush2.bf16.msra.mxu0 0
  %1307 = vmatprep.subr.bf16.mxu0 0
  %1308 = vmatpush2.bf16.msra.mxu0 0
  %1309 = vmatprep.subr.bf16.mxu0 0
  %1310 = vmatpush2.bf16.msra.mxu0 0
  %1311 = vmatprep.subr.bf16.mxu0 0
  %1312 = vmatpush2.bf16.msra.mxu0 0
  %1313 = vmatprep.subr.bf16.mxu0 0
  %1314 = vmatpush2.bf16.msra.mxu0 0
  %1315 = vmatprep.subr.bf16.mxu0 0
  %1316 = vmatpush2.bf16.msra.mxu0 0
  %1317 = vmatprep.subr.bf16.mxu0 0
  %1318 = vmatpush2.bf16.msra.mxu0 0
  %1319 = vmatprep.mubr.bf16.mxu0 0
  %1320 = vmatmul.mubr.bf16.gmra.mxu0 %v1286
  %v1321 = vpop.f32.mrf.mxu0
  %v1322 = vadd.f32 0.0, %v1321
  %v1323 = vpop.f32.mrf.mxu0
  %v1324 = vadd.f32 0.0, %v1323
  %v1325 = vpop.f32.mrf.mxu0
  %v1326 = vpop.f32.mrf.mxu0
  %1327 = vdwg.mxu0
  %1328 = vmatprep.subr.bf16.mxu0 %v1145
  %1329 = vmatpush1.bf16.msra.mxu0 %v1144
  %1330 = vmatprep.subr.bf16.mxu0 %v1141
  %1331 = vmatpush1.bf16.msra.mxu0 %v1140
  %1332 = vmatprep.subr.bf16.mxu0 %v1137
  %1333 = vmatpush1.bf16.msra.mxu0 %v1136
  %1334 = vmatprep.subr.bf16.mxu0 %v1133
  %1335 = vmatpush1.bf16.msra.mxu0 %v1132
  %1336 = vmatprep.subr.bf16.mxu0 %v1129
  %1337 = vmatpush1.bf16.msra.mxu0 %v1128
  %1338 = vmatprep.subr.bf16.mxu0 %v1125
  %1339 = vmatpush1.bf16.msra.mxu0 %v1124
  %1340 = vmatprep.subr.bf16.mxu0 %v1121
  %1341 = vmatpush1.bf16.msra.mxu0 %v1120
  %1342 = vmatprep.subr.bf16.mxu0 %v1117
  %1343 = vmatpush1.bf16.msra.mxu0 %v1116
  %1344 = vmatprep.subr.bf16.mxu0 0
  %1345 = vmatpush2.bf16.msra.mxu0 0
  %1346 = vmatprep.subr.bf16.mxu0 0
  %1347 = vmatpush2.bf16.msra.mxu0 0
  %1348 = vmatprep.subr.bf16.mxu0 0
  %1349 = vmatpush2.bf16.msra.mxu0 0
  %1350 = vmatprep.subr.bf16.mxu0 0
  %1351 = vmatpush2.bf16.msra.mxu0 0
  %1352 = vmatprep.subr.bf16.mxu0 0
  %1353 = vmatpush2.bf16.msra.mxu0 0
  %1354 = vmatprep.subr.bf16.mxu0 0
  %1355 = vmatpush2.bf16.msra.mxu0 0
  %1356 = vmatprep.subr.bf16.mxu0 0
  %1357 = vmatpush2.bf16.msra.mxu0 0
  %1358 = vmatprep.subr.bf16.mxu0 0
  %1359 = vmatpush2.bf16.msra.mxu0 0
  %1360 = vmatprep.mubr.bf16.mxu0 0
  %1361 = vmatmul.mubr.bf16.gmra.mxu0 %v1286
  %v1362 = vpop.f32.mrf.mxu0
  %v1363 = vadd.f32 0.0, %v1362
  %v1364 = vpop.f32.mrf.mxu0
  %v1365 = vadd.f32 0.0, %v1364
  %v1366 = vpop.f32.mrf.mxu0
  %v1367 = vpop.f32.mrf.mxu0
  %1368 = vdwg.mxu0
  %v1369 = vadd.f32 %v1282, %v1322
  %v1370 = vadd.f32 %v1283, %v1324
  %v1371 = vadd.f32 %v1284, %v1363
  %v1372 = vadd.f32 %v1285, %v1365
  %v1373 = vmul.f32 %v1369, 0.5
  %v1374 = vmul.f32 %v1370, 0.5
  %v1375 = vmul.f32 %v1371, 0.5
  %v1376 = vtanh.pop %v1373
  %v1377 = vtanh.pop %v1374
  %v1378 = vtanh.pop %v1375
  %v1379 = vmul.f32 %v1376, 0.5
  %v1380 = vmul.f32 %v1377, 0.5
  %v1381 = vmul.f32 %v1378, 0.5
  %v1382 = vadd.f32 %v1379, 0.5
  %v1383 = vadd.f32 %v1380, 0.5
  %v1384 = vadd.f32 %v1381, 0.5
  %v1385 = vtanh.pop %v1372
  %v1386 = vmul.f32 %v1383, %v1279
  %v1387 = vmul.f32 %v1382, %v1385
  %v1388 = vadd.f32 %v1386, %v1387
  %v1389 = vtanh.pop %v1388
  %v1390 = vmul.f32 %v1384, %v1389
  %v1391 = vld [vmem:[#allocation2 + $0x40] sm:$0xff]
  %v1392 = vld [vmem:[#allocation2 + $0x48] sm:$0xff]
  %v1393 = vld [vmem:[#allocation2 + $0x50] sm:$0xff]
  %v1394 = vld [vmem:[#allocation2 + $0x58] sm:$0xff]
  %v1395 = vpack.c.bf16 %v1390, %v1390
  %1396 = vmatprep.subr.bf16.mxu0 %v1143
  %1397 = vmatpush1.bf16.msra.mxu0 %v1142
  %1398 = vmatprep.subr.bf16.mxu0 %v1139
  %1399 = vmatpush1.bf16.msra.mxu0 %v1138
  %1400 = vmatprep.subr.bf16.mxu0 %v1135
  %1401 = vmatpush1.bf16.msra.mxu0 %v1134
  %1402 = vmatprep.subr.bf16.mxu0 %v1131
  %1403 = vmatpush1.bf16.msra.mxu0 %v1130
  %1404 = vmatprep.subr.bf16.mxu0 %v1127
  %1405 = vmatpush1.bf16.msra.mxu0 %v1126
  %1406 = vmatprep.subr.bf16.mxu0 %v1123
  %1407 = vmatpush1.bf16.msra.mxu0 %v1122
  %1408 = vmatprep.subr.bf16.mxu0 %v1119
  %1409 = vmatpush1.bf16.msra.mxu0 %v1118
  %1410 = vmatprep.subr.bf16.mxu0 %v1115
  %1411 = vmatpush1.bf16.msra.mxu0 %v1114
  %1412 = vmatprep.subr.bf16.mxu0 0
  %1413 = vmatpush2.bf16.msra.mxu0 0
  %1414 = vmatprep.subr.bf16.mxu0 0
  %1415 = vmatpush2.bf16.msra.mxu0 0
  %1416 = vmatprep.subr.bf16.mxu0 0
  %1417 = vmatpush2.bf16.msra.mxu0 0
  %1418 = vmatprep.subr.bf16.mxu0 0
  %1419 = vmatpush2.bf16.msra.mxu0 0
  %1420 = vmatprep.subr.bf16.mxu0 0
  %1421 = vmatpush2.bf16.msra.mxu0 0
  %1422 = vmatprep.subr.bf16.mxu0 0
  %1423 = vmatpush2.bf16.msra.mxu0 0
  %1424 = vmatprep.subr.bf16.mxu0 0
  %1425 = vmatpush2.bf16.msra.mxu0 0
  %1426 = vmatprep.subr.bf16.mxu0 0
  %1427 = vmatpush2.bf16.msra.mxu0 0
  %1428 = vmatprep.mubr.bf16.mxu0 0
  %1429 = vmatmul.mubr.bf16.gmra.mxu0 %v1395
  %v1430 = vpop.f32.mrf.mxu0
  %v1431 = vadd.f32 0.0, %v1430
  %v1432 = vpop.f32.mrf.mxu0
  %v1433 = vadd.f32 0.0, %v1432
  %v1434 = vpop.f32.mrf.mxu0
  %v1435 = vpop.f32.mrf.mxu0
  %1436 = vdwg.mxu0
  %1437 = vmatprep.subr.bf16.mxu0 %v1145
  %1438 = vmatpush1.bf16.msra.mxu0 %v1144
  %1439 = vmatprep.subr.bf16.mxu0 %v1141
  %1440 = vmatpush1.bf16.msra.mxu0 %v1140
  %1441 = vmatprep.subr.bf16.mxu0 %v1137
  %1442 = vmatpush1.bf16.msra.mxu0 %v1136
  %1443 = vmatprep.subr.bf16.mxu0 %v1133
  %1444 = vmatpush1.bf16.msra.mxu0 %v1132
  %1445 = vmatprep.subr.bf16.mxu0 %v1129
  %1446 = vmatpush1.bf16.msra.mxu0 %v1128
  %1447 = vmatprep.subr.bf16.mxu0 %v1125
  %1448 = vmatpush1.bf16.msra.mxu0 %v1124
  %1449 = vmatprep.subr.bf16.mxu0 %v1121
  %1450 = vmatpush1.bf16.msra.mxu0 %v1120
  %1451 = vmatprep.subr.bf16.mxu0 %v1117
  %1452 = vmatpush1.bf16.msra.mxu0 %v1116
  %1453 = vmatprep.subr.bf16.mxu0 0
  %1454 = vmatpush2.bf16.msra.mxu0 0
  %1455 = vmatprep.subr.bf16.mxu0 0
  %1456 = vmatpush2.bf16.msra.mxu0 0
  %1457 = vmatprep.subr.bf16.mxu0 0
  %1458 = vmatpush2.bf16.msra.mxu0 0
  %1459 = vmatprep.subr.bf16.mxu0 0
  %1460 = vmatpush2.bf16.msra.mxu0 0
  %1461 = vmatprep.subr.bf16.mxu0 0
  %1462 = vmatpush2.bf16.msra.mxu0 0
  %1463 = vmatprep.subr.bf16.mxu0 0
  %1464 = vmatpush2.bf16.msra.mxu0 0
  %1465 = vmatprep.subr.bf16.mxu0 0
  %1466 = vmatpush2.bf16.msra.mxu0 0
  %1467 = vmatprep.subr.bf16.mxu0 0
  %1468 = vmatpush2.bf16.msra.mxu0 0
  %1469 = vmatprep.mubr.bf16.mxu0 0
  %1470 = vmatmul.mubr.bf16.gmra.mxu0 %v1395
  %v1471 = vpop.f32.mrf.mxu0
  %v1472 = vadd.f32 0.0, %v1471
  %v1473 = vpop.f32.mrf.mxu0
  %v1474 = vadd.f32 0.0, %v1473
  %v1475 = vpop.f32.mrf.mxu0
  %v1476 = vpop.f32.mrf.mxu0
  %1477 = vdwg.mxu0
  %v1478 = vadd.f32 %v1391, %v1431
  %v1479 = vadd.f32 %v1392, %v1433
  %v1480 = vadd.f32 %v1393, %v1472
  %v1481 = vadd.f32 %v1394, %v1474
  %v1482 = vmul.f32 %v1478, 0.5
  %v1483 = vmul.f32 %v1479, 0.5
  %v1484 = vmul.f32 %v1480, 0.5
  %v1485 = vtanh.pop %v1482
  %v1486 = vtanh.pop %v1483
  %v1487 = vtanh.pop %v1484
  %v1488 = vmul.f32 %v1485, 0.5
  %v1489 = vmul.f32 %v1486, 0.5
  %v1490 = vmul.f32 %v1487, 0.5
  %v1491 = vadd.f32 %v1488, 0.5
  %v1492 = vadd.f32 %v1489, 0.5
  %v1493 = vadd.f32 %v1490, 0.5
  %v1494 = vtanh.pop %v1481
  %v1495 = vmul.f32 %v1492, %v1388
  %v1496 = vmul.f32 %v1491, %v1494
  %v1497 = vadd.f32 %v1495, %v1496
  %v1498 = vtanh.pop %v1497
  %v1499 = vmul.f32 %v1493, %v1498
  %v1500 = vld [vmem:[#allocation2 + $0x60] sm:$0xff]
  %v1501 = vld [vmem:[#allocation2 + $0x68] sm:$0xff]
  %v1502 = vld [vmem:[#allocation2 + $0x70] sm:$0xff]
  %v1503 = vld [vmem:[#allocation2 + $0x78] sm:$0xff]
  %v1504 = vpack.c.bf16 %v1499, %v1499
  %1505 = vmatprep.subr.bf16.mxu0 %v1143
  %1506 = vmatpush1.bf16.msra.mxu0 %v1142
  %1507 = vmatprep.subr.bf16.mxu0 %v1139
  %1508 = vmatpush1.bf16.msra.mxu0 %v1138
  %1509 = vmatprep.subr.bf16.mxu0 %v1135
  %1510 = vmatpush1.bf16.msra.mxu0 %v1134
  %1511 = vmatprep.subr.bf16.mxu0 %v1131
  %1512 = vmatpush1.bf16.msra.mxu0 %v1130
  %1513 = vmatprep.subr.bf16.mxu0 %v1127
  %1514 = vmatpush1.bf16.msra.mxu0 %v1126
  %1515 = vmatprep.subr.bf16.mxu0 %v1123
  %1516 = vmatpush1.bf16.msra.mxu0 %v1122
  %1517 = vmatprep.subr.bf16.mxu0 %v1119
  %1518 = vmatpush1.bf16.msra.mxu0 %v1118
  %1519 = vmatprep.subr.bf16.mxu0 %v1115
  %1520 = vmatpush1.bf16.msra.mxu0 %v1114
  %1521 = vmatprep.subr.bf16.mxu0 0
  %1522 = vmatpush2.bf16.msra.mxu0 0
  %1523 = vmatprep.subr.bf16.mxu0 0
  %1524 = vmatpush2.bf16.msra.mxu0 0
  %1525 = vmatprep.subr.bf16.mxu0 0
  %1526 = vmatpush2.bf16.msra.mxu0 0
  %1527 = vmatprep.subr.bf16.mxu0 0
  %1528 = vmatpush2.bf16.msra.mxu0 0
  %1529 = vmatprep.subr.bf16.mxu0 0
  %1530 = vmatpush2.bf16.msra.mxu0 0
  %1531 = vmatprep.subr.bf16.mxu0 0
  %1532 = vmatpush2.bf16.msra.mxu0 0
  %1533 = vmatprep.subr.bf16.mxu0 0
  %1534 = vmatpush2.bf16.msra.mxu0 0
  %1535 = vmatprep.subr.bf16.mxu0 0
  %1536 = vmatpush2.bf16.msra.mxu0 0
  %1537 = vmatprep.mubr.bf16.mxu0 0
  %1538 = vmatmul.mubr.bf16.gmra.mxu0 %v1504
  %v1539 = vpop.f32.mrf.mxu0
  %v1540 = vadd.f32 0.0, %v1539
  %v1541 = vpop.f32.mrf.mxu0
  %v1542 = vadd.f32 0.0, %v1541
  %v1543 = vpop.f32.mrf.mxu0
  %v1544 = vpop.f32.mrf.mxu0
  %1545 = vdwg.mxu0
  %1546 = vmatprep.subr.bf16.mxu0 %v1145
  %1547 = vmatpush1.bf16.msra.mxu0 %v1144
  %1548 = vmatprep.subr.bf16.mxu0 %v1141
  %1549 = vmatpush1.bf16.msra.mxu0 %v1140
  %1550 = vmatprep.subr.bf16.mxu0 %v1137
  %1551 = vmatpush1.bf16.msra.mxu0 %v1136
  %1552 = vmatprep.subr.bf16.mxu0 %v1133
  %1553 = vmatpush1.bf16.msra.mxu0 %v1132
  %1554 = vmatprep.subr.bf16.mxu0 %v1129
  %1555 = vmatpush1.bf16.msra.mxu0 %v1128
  %1556 = vmatprep.subr.bf16.mxu0 %v1125
  %1557 = vmatpush1.bf16.msra.mxu0 %v1124
  %1558 = vmatprep.subr.bf16.mxu0 %v1121
  %1559 = vmatpush1.bf16.msra.mxu0 %v1120
  %1560 = vmatprep.subr.bf16.mxu0 %v1117
  %1561 = vmatpush1.bf16.msra.mxu0 %v1116
  %1562 = vmatprep.subr.bf16.mxu0 0
  %1563 = vmatpush2.bf16.msra.mxu0 0
  %1564 = vmatprep.subr.bf16.mxu0 0
  %1565 = vmatpush2.bf16.msra.mxu0 0
  %1566 = vmatprep.subr.bf16.mxu0 0
  %1567 = vmatpush2.bf16.msra.mxu0 0
  %1568 = vmatprep.subr.bf16.mxu0 0
  %1569 = vmatpush2.bf16.msra.mxu0 0
  %1570 = vmatprep.subr.bf16.mxu0 0
  %1571 = vmatpush2.bf16.msra.mxu0 0
  %1572 = vmatprep.subr.bf16.mxu0 0
  %1573 = vmatpush2.bf16.msra.mxu0 0
  %1574 = vmatprep.subr.bf16.mxu0 0
  %1575 = vmatpush2.bf16.msra.mxu0 0
  %1576 = vmatprep.subr.bf16.mxu0 0
  %1577 = vmatpush2.bf16.msra.mxu0 0
  %1578 = vmatprep.mubr.bf16.mxu0 0
  %1579 = vmatmul.mubr.bf16.gmra.mxu0 %v1504
  %v1580 = vpop.f32.mrf.mxu0
  %v1581 = vadd.f32 0.0, %v1580
  %v1582 = vpop.f32.mrf.mxu0
  %v1583 = vadd.f32 0.0, %v1582
  %v1584 = vpop.f32.mrf.mxu0
  %v1585 = vpop.f32.mrf.mxu0
  %1586 = vdwg.mxu0
  %v1587 = vadd.f32 %v1500, %v1540
  %v1588 = vadd.f32 %v1501, %v1542
  %v1589 = vadd.f32 %v1502, %v1581
  %v1590 = vadd.f32 %v1503, %v1583
  %v1591 = vmul.f32 %v1587, 0.5
  %v1592 = vmul.f32 %v1588, 0.5
  %v1593 = vmul.f32 %v1589, 0.5
  %v1594 = vtanh.pop %v1591
  %v1595 = vtanh.pop %v1592
  %v1596 = vtanh.pop %v1593
  %v1597 = vmul.f32 %v1594, 0.5
  %v1598 = vmul.f32 %v1595, 0.5
  %v1599 = vmul.f32 %v1596, 0.5
  %v1600 = vadd.f32 %v1597, 0.5
  %v1601 = vadd.f32 %v1598, 0.5
  %v1602 = vadd.f32 %v1599, 0.5
  %v1603 = vtanh.pop %v1590
  %v1604 = vmul.f32 %v1601, %v1497
  %v1605 = vmul.f32 %v1600, %v1603
  %v1606 = vadd.f32 %v1604, %v1605
  %v1607 = vtanh.pop %v1606
  %v1608 = vmul.f32 %v1602, %v1607
  %v1609 = vld [vmem:[#allocation2 + $0x80] sm:$0xff]
  %v1610 = vld [vmem:[#allocation2 + $0x88] sm:$0xff]
  %v1611 = vld [vmem:[#allocation2 + $0x90] sm:$0xff]
  %v1612 = vld [vmem:[#allocation2 + $0x98] sm:$0xff]
  %v1613 = vpack.c.bf16 %v1608, %v1608
  %1614 = vmatprep.subr.bf16.mxu0 %v1143
  %1615 = vmatpush1.bf16.msra.mxu0 %v1142
  %1616 = vmatprep.subr.bf16.mxu0 %v1139
  %1617 = vmatpush1.bf16.msra.mxu0 %v1138
  %1618 = vmatprep.subr.bf16.mxu0 %v1135
  %1619 = vmatpush1.bf16.msra.mxu0 %v1134
  %1620 = vmatprep.subr.bf16.mxu0 %v1131
  %1621 = vmatpush1.bf16.msra.mxu0 %v1130
  %1622 = vmatprep.subr.bf16.mxu0 %v1127
  %1623 = vmatpush1.bf16.msra.mxu0 %v1126
  %1624 = vmatprep.subr.bf16.mxu0 %v1123
  %1625 = vmatpush1.bf16.msra.mxu0 %v1122
  %1626 = vmatprep.subr.bf16.mxu0 %v1119
  %1627 = vmatpush1.bf16.msra.mxu0 %v1118
  %1628 = vmatprep.subr.bf16.mxu0 %v1115
  %1629 = vmatpush1.bf16.msra.mxu0 %v1114
  %1630 = vmatprep.subr.bf16.mxu0 0
  %1631 = vmatpush2.bf16.msra.mxu0 0
  %1632 = vmatprep.subr.bf16.mxu0 0
  %1633 = vmatpush2.bf16.msra.mxu0 0
  %1634 = vmatprep.subr.bf16.mxu0 0
  %1635 = vmatpush2.bf16.msra.mxu0 0
  %1636 = vmatprep.subr.bf16.mxu0 0
  %1637 = vmatpush2.bf16.msra.mxu0 0
  %1638 = vmatprep.subr.bf16.mxu0 0
  %1639 = vmatpush2.bf16.msra.mxu0 0
  %1640 = vmatprep.subr.bf16.mxu0 0
  %1641 = vmatpush2.bf16.msra.mxu0 0
  %1642 = vmatprep.subr.bf16.mxu0 0
  %1643 = vmatpush2.bf16.msra.mxu0 0
  %1644 = vmatprep.subr.bf16.mxu0 0
  %1645 = vmatpush2.bf16.msra.mxu0 0
  %1646 = vmatprep.mubr.bf16.mxu0 0
  %1647 = vmatmul.mubr.bf16.gmra.mxu0 %v1613
  %v1648 = vpop.f32.mrf.mxu0
  %v1649 = vadd.f32 0.0, %v1648
  %v1650 = vpop.f32.mrf.mxu0
  %v1651 = vadd.f32 0.0, %v1650
  %v1652 = vpop.f32.mrf.mxu0
  %v1653 = vpop.f32.mrf.mxu0
  %1654 = vdwg.mxu0
  %1655 = vmatprep.subr.bf16.mxu0 %v1145
  %1656 = vmatpush1.bf16.msra.mxu0 %v1144
  %1657 = vmatprep.subr.bf16.mxu0 %v1141
  %1658 = vmatpush1.bf16.msra.mxu0 %v1140
  %1659 = vmatprep.subr.bf16.mxu0 %v1137
  %1660 = vmatpush1.bf16.msra.mxu0 %v1136
  %1661 = vmatprep.subr.bf16.mxu0 %v1133
  %1662 = vmatpush1.bf16.msra.mxu0 %v1132
  %1663 = vmatprep.subr.bf16.mxu0 %v1129
  %1664 = vmatpush1.bf16.msra.mxu0 %v1128
  %1665 = vmatprep.subr.bf16.mxu0 %v1125
  %1666 = vmatpush1.bf16.msra.mxu0 %v1124
  %1667 = vmatprep.subr.bf16.mxu0 %v1121
  %1668 = vmatpush1.bf16.msra.mxu0 %v1120
  %1669 = vmatprep.subr.bf16.mxu0 %v1117
  %1670 = vmatpush1.bf16.msra.mxu0 %v1116
  %1671 = vmatprep.subr.bf16.mxu0 0
  %1672 = vmatpush2.bf16.msra.mxu0 0
  %1673 = vmatprep.subr.bf16.mxu0 0
  %1674 = vmatpush2.bf16.msra.mxu0 0
  %1675 = vmatprep.subr.bf16.mxu0 0
  %1676 = vmatpush2.bf16.msra.mxu0 0
  %1677 = vmatprep.subr.bf16.mxu0 0
  %1678 = vmatpush2.bf16.msra.mxu0 0
  %1679 = vmatprep.subr.bf16.mxu0 0
  %1680 = vmatpush2.bf16.msra.mxu0 0
  %1681 = vmatprep.subr.bf16.mxu0 0
  %1682 = vmatpush2.bf16.msra.mxu0 0
  %1683 = vmatprep.subr.bf16.mxu0 0
  %1684 = vmatpush2.bf16.msra.mxu0 0
  %1685 = vmatprep.subr.bf16.mxu0 0
  %1686 = vmatpush2.bf16.msra.mxu0 0
  %1687 = vmatprep.mubr.bf16.mxu0 0
  %1688 = vmatmul.mubr.bf16.gmra.mxu0 %v1613
  %v1689 = vpop.f32.mrf.mxu0
  %v1690 = vadd.f32 0.0, %v1689
  %v1691 = vpop.f32.mrf.mxu0
  %v1692 = vadd.f32 0.0, %v1691
  %v1693 = vpop.f32.mrf.mxu0
  %v1694 = vpop.f32.mrf.mxu0
  %1695 = vdwg.mxu0
  %v1696 = vadd.f32 %v1609, %v1649
  %v1697 = vadd.f32 %v1610, %v1651
  %v1698 = vadd.f32 %v1611, %v1690
  %v1699 = vadd.f32 %v1612, %v1692
  %v1700 = vmul.f32 %v1696, 0.5
  %v1701 = vmul.f32 %v1697, 0.5
  %v1702 = vmul.f32 %v1698, 0.5
  %v1703 = vtanh.pop %v1700
  %v1704 = vtanh.pop %v1701
  %v1705 = vtanh.pop %v1702
  %v1706 = vmul.f32 %v1703, 0.5
  %v1707 = vmul.f32 %v1704, 0.5
  %v1708 = vmul.f32 %v1705, 0.5
  %v1709 = vadd.f32 %v1706, 0.5
  %v1710 = vadd.f32 %v1707, 0.5
  %v1711 = vadd.f32 %v1708, 0.5
  %v1712 = vtanh.pop %v1699
  %v1713 = vmul.f32 %v1710, %v1606
  %v1714 = vmul.f32 %v1709, %v1712
  %v1715 = vadd.f32 %v1713, %v1714
  %v1716 = vtanh.pop %v1715
  %v1717 = vmul.f32 %v1711, %v1716
  %v1718 = vld [vmem:[#allocation2 + $0xa0] sm:$0xff]
  %v1719 = vld [vmem:[#allocation2 + $0xa8] sm:$0xff]
  %v1720 = vld [vmem:[#allocation2 + $0xb0] sm:$0xff]
  %v1721 = vld [vmem:[#allocation2 + $0xb8] sm:$0xff]
  %v1722 = vpack.c.bf16 %v1717, %v1717
  %1723 = vmatprep.subr.bf16.mxu0 %v1143
  %1724 = vmatpush1.bf16.msra.mxu0 %v1142
  %1725 = vmatprep.subr.bf16.mxu0 %v1139
  %1726 = vmatpush1.bf16.msra.mxu0 %v1138
  %1727 = vmatprep.subr.bf16.mxu0 %v1135
  %1728 = vmatpush1.bf16.msra.mxu0 %v1134
  %1729 = vmatprep.subr.bf16.mxu0 %v1131
  %1730 = vmatpush1.bf16.msra.mxu0 %v1130
  %1731 = vmatprep.subr.bf16.mxu0 %v1127
  %1732 = vmatpush1.bf16.msra.mxu0 %v1126
  %1733 = vmatprep.subr.bf16.mxu0 %v1123
  %1734 = vmatpush1.bf16.msra.mxu0 %v1122
  %1735 = vmatprep.subr.bf16.mxu0 %v1119
  %1736 = vmatpush1.bf16.msra.mxu0 %v1118
  %1737 = vmatprep.subr.bf16.mxu0 %v1115
  %1738 = vmatpush1.bf16.msra.mxu0 %v1114
  %1739 = vmatprep.subr.bf16.mxu0 0
  %1740 = vmatpush2.bf16.msra.mxu0 0
  %1741 = vmatprep.subr.bf16.mxu0 0
  %1742 = vmatpush2.bf16.msra.mxu0 0
  %1743 = vmatprep.subr.bf16.mxu0 0
  %1744 = vmatpush2.bf16.msra.mxu0 0
  %1745 = vmatprep.subr.bf16.mxu0 0
  %1746 = vmatpush2.bf16.msra.mxu0 0
  %1747 = vmatprep.subr.bf16.mxu0 0
  %1748 = vmatpush2.bf16.msra.mxu0 0
  %1749 = vmatprep.subr.bf16.mxu0 0
  %1750 = vmatpush2.bf16.msra.mxu0 0
  %1751 = vmatprep.subr.bf16.mxu0 0
  %1752 = vmatpush2.bf16.msra.mxu0 0
  %1753 = vmatprep.subr.bf16.mxu0 0
  %1754 = vmatpush2.bf16.msra.mxu0 0
  %1755 = vmatprep.mubr.bf16.mxu0 0
  %1756 = vmatmul.mubr.bf16.gmra.mxu0 %v1722
  %v1757 = vpop.f32.mrf.mxu0
  %v1758 = vadd.f32 0.0, %v1757
  %v1759 = vpop.f32.mrf.mxu0
  %v1760 = vadd.f32 0.0, %v1759
  %v1761 = vpop.f32.mrf.mxu0
  %v1762 = vpop.f32.mrf.mxu0
  %1763 = vdwg.mxu0
  %1764 = vmatprep.subr.bf16.mxu0 %v1145
  %1765 = vmatpush1.bf16.msra.mxu0 %v1144
  %1766 = vmatprep.subr.bf16.mxu0 %v1141
  %1767 = vmatpush1.bf16.msra.mxu0 %v1140
  %1768 = vmatprep.subr.bf16.mxu0 %v1137
  %1769 = vmatpush1.bf16.msra.mxu0 %v1136
  %1770 = vmatprep.subr.bf16.mxu0 %v1133
  %1771 = vmatpush1.bf16.msra.mxu0 %v1132
  %1772 = vmatprep.subr.bf16.mxu0 %v1129
  %1773 = vmatpush1.bf16.msra.mxu0 %v1128
  %1774 = vmatprep.subr.bf16.mxu0 %v1125
  %1775 = vmatpush1.bf16.msra.mxu0 %v1124
  %1776 = vmatprep.subr.bf16.mxu0 %v1121
  %1777 = vmatpush1.bf16.msra.mxu0 %v1120
  %1778 = vmatprep.subr.bf16.mxu0 %v1117
  %1779 = vmatpush1.bf16.msra.mxu0 %v1116
  %1780 = vmatprep.subr.bf16.mxu0 0
  %1781 = vmatpush2.bf16.msra.mxu0 0
  %1782 = vmatprep.subr.bf16.mxu0 0
  %1783 = vmatpush2.bf16.msra.mxu0 0
  %1784 = vmatprep.subr.bf16.mxu0 0
  %1785 = vmatpush2.bf16.msra.mxu0 0
  %1786 = vmatprep.subr.bf16.mxu0 0
  %1787 = vmatpush2.bf16.msra.mxu0 0
  %1788 = vmatprep.subr.bf16.mxu0 0
  %1789 = vmatpush2.bf16.msra.mxu0 0
  %1790 = vmatprep.subr.bf16.mxu0 0
  %1791 = vmatpush2.bf16.msra.mxu0 0
  %1792 = vmatprep.subr.bf16.mxu0 0
  %1793 = vmatpush2.bf16.msra.mxu0 0
  %1794 = vmatprep.subr.bf16.mxu0 0
  %1795 = vmatpush2.bf16.msra.mxu0 0
  %1796 = vmatprep.mubr.bf16.mxu0 0
  %1797 = vmatmul.mubr.bf16.gmra.mxu0 %v1722
  %v1798 = vpop.f32.mrf.mxu0
  %v1799 = vadd.f32 0.0, %v1798
  %v1800 = vpop.f32.mrf.mxu0
  %v1801 = vadd.f32 0.0, %v1800
  %v1802 = vpop.f32.mrf.mxu0
  %v1803 = vpop.f32.mrf.mxu0
  %1804 = vdwg.mxu0
  %v1805 = vadd.f32 %v1718, %v1758
  %v1806 = vadd.f32 %v1719, %v1760
  %v1807 = vadd.f32 %v1720, %v1799
  %v1808 = vadd.f32 %v1721, %v1801
  %v1809 = vmul.f32 %v1805, 0.5
  %v1810 = vmul.f32 %v1806, 0.5
  %v1811 = vmul.f32 %v1807, 0.5
  %v1812 = vtanh.pop %v1809
  %v1813 = vtanh.pop %v1810
  %v1814 = vtanh.pop %v1811
  %v1815 = vmul.f32 %v1812, 0.5
  %v1816 = vmul.f32 %v1813, 0.5
  %v1817 = vmul.f32 %v1814, 0.5
  %v1818 = vadd.f32 %v1815, 0.5
  %v1819 = vadd.f32 %v1816, 0.5
  %v1820 = vadd.f32 %v1817, 0.5
  %v1821 = vtanh.pop %v1808
  %v1822 = vmul.f32 %v1819, %v1715
  %v1823 = vmul.f32 %v1818, %v1821
  %v1824 = vadd.f32 %v1822, %v1823
  %v1825 = vtanh.pop %v1824
  %v1826 = vmul.f32 %v1820, %v1825
  %v1827 = vld [vmem:[#allocation2 + $0xc0] sm:$0xff]
  %v1828 = vld [vmem:[#allocation2 + $0xc8] sm:$0xff]
  %v1829 = vld [vmem:[#allocation2 + $0xd0] sm:$0xff]
  %v1830 = vld [vmem:[#allocation2 + $0xd8] sm:$0xff]
  %v1831 = vpack.c.bf16 %v1826, %v1826
  %1832 = vmatprep.subr.bf16.mxu0 %v1143
  %1833 = vmatpush1.bf16.msra.mxu0 %v1142
  %1834 = vmatprep.subr.bf16.mxu0 %v1139
  %1835 = vmatpush1.bf16.msra.mxu0 %v1138
  %1836 = vmatprep.subr.bf16.mxu0 %v1135
  %1837 = vmatpush1.bf16.msra.mxu0 %v1134
  %1838 = vmatprep.subr.bf16.mxu0 %v1131
  %1839 = vmatpush1.bf16.msra.mxu0 %v1130
  %1840 = vmatprep.subr.bf16.mxu0 %v1127
  %1841 = vmatpush1.bf16.msra.mxu0 %v1126
  %1842 = vmatprep.subr.bf16.mxu0 %v1123
  %1843 = vmatpush1.bf16.msra.mxu0 %v1122
  %1844 = vmatprep.subr.bf16.mxu0 %v1119
  %1845 = vmatpush1.bf16.msra.mxu0 %v1118
  %1846 = vmatprep.subr.bf16.mxu0 %v1115
  %1847 = vmatpush1.bf16.msra.mxu0 %v1114
  %1848 = vmatprep.subr.bf16.mxu0 0
  %1849 = vmatpush2.bf16.msra.mxu0 0
  %1850 = vmatprep.subr.bf16.mxu0 0
  %1851 = vmatpush2.bf16.msra.mxu0 0
  %1852 = vmatprep.subr.bf16.mxu0 0
  %1853 = vmatpush2.bf16.msra.mxu0 0
  %1854 = vmatprep.subr.bf16.mxu0 0
  %1855 = vmatpush2.bf16.msra.mxu0 0
  %1856 = vmatprep.subr.bf16.mxu0 0
  %1857 = vmatpush2.bf16.msra.mxu0 0
  %1858 = vmatprep.subr.bf16.mxu0 0
  %1859 = vmatpush2.bf16.msra.mxu0 0
  %1860 = vmatprep.subr.bf16.mxu0 0
  %1861 = vmatpush2.bf16.msra.mxu0 0
  %1862 = vmatprep.subr.bf16.mxu0 0
  %1863 = vmatpush2.bf16.msra.mxu0 0
  %1864 = vmatprep.mubr.bf16.mxu0 0
  %1865 = vmatmul.mubr.bf16.gmra.mxu0 %v1831
  %v1866 = vpop.f32.mrf.mxu0
  %v1867 = vadd.f32 0.0, %v1866
  %v1868 = vpop.f32.mrf.mxu0
  %v1869 = vadd.f32 0.0, %v1868
  %v1870 = vpop.f32.mrf.mxu0
  %v1871 = vpop.f32.mrf.mxu0
  %1872 = vdwg.mxu0
  %1873 = vmatprep.subr.bf16.mxu0 %v1145
  %1874 = vmatpush1.bf16.msra.mxu0 %v1144
  %1875 = vmatprep.subr.bf16.mxu0 %v1141
  %1876 = vmatpush1.bf16.msra.mxu0 %v1140
  %1877 = vmatprep.subr.bf16.mxu0 %v1137
  %1878 = vmatpush1.bf16.msra.mxu0 %v1136
  %1879 = vmatprep.subr.bf16.mxu0 %v1133
  %1880 = vmatpush1.bf16.msra.mxu0 %v1132
  %1881 = vmatprep.subr.bf16.mxu0 %v1129
  %1882 = vmatpush1.bf16.msra.mxu0 %v1128
  %1883 = vmatprep.subr.bf16.mxu0 %v1125
  %1884 = vmatpush1.bf16.msra.mxu0 %v1124
  %1885 = vmatprep.subr.bf16.mxu0 %v1121
  %1886 = vmatpush1.bf16.msra.mxu0 %v1120
  %1887 = vmatprep.subr.bf16.mxu0 %v1117
  %1888 = vmatpush1.bf16.msra.mxu0 %v1116
  %1889 = vmatprep.subr.bf16.mxu0 0
  %1890 = vmatpush2.bf16.msra.mxu0 0
  %1891 = vmatprep.subr.bf16.mxu0 0
  %1892 = vmatpush2.bf16.msra.mxu0 0
  %1893 = vmatprep.subr.bf16.mxu0 0
  %1894 = vmatpush2.bf16.msra.mxu0 0
  %1895 = vmatprep.subr.bf16.mxu0 0
  %1896 = vmatpush2.bf16.msra.mxu0 0
  %1897 = vmatprep.subr.bf16.mxu0 0
  %1898 = vmatpush2.bf16.msra.mxu0 0
  %1899 = vmatprep.subr.bf16.mxu0 0
  %1900 = vmatpush2.bf16.msra.mxu0 0
  %1901 = vmatprep.subr.bf16.mxu0 0
  %1902 = vmatpush2.bf16.msra.mxu0 0
  %1903 = vmatprep.subr.bf16.mxu0 0
  %1904 = vmatpush2.bf16.msra.mxu0 0
  %1905 = vmatprep.mubr.bf16.mxu0 0
  %1906 = vmatmul.mubr.bf16.gmra.mxu0 %v1831
  %v1907 = vpop.f32.mrf.mxu0
  %v1908 = vadd.f32 0.0, %v1907
  %v1909 = vpop.f32.mrf.mxu0
  %v1910 = vadd.f32 0.0, %v1909
  %v1911 = vpop.f32.mrf.mxu0
  %v1912 = vpop.f32.mrf.mxu0
  %1913 = vdwg.mxu0
  %v1914 = vadd.f32 %v1827, %v1867
  %v1915 = vadd.f32 %v1828, %v1869
  %v1916 = vadd.f32 %v1829, %v1908
  %v1917 = vadd.f32 %v1830, %v1910
  %v1918 = vmul.f32 %v1914, 0.5
  %v1919 = vmul.f32 %v1915, 0.5
  %v1920 = vmul.f32 %v1916, 0.5
  %v1921 = vtanh.pop %v1918
  %v1922 = vtanh.pop %v1919
  %v1923 = vtanh.pop %v1920
  %v1924 = vmul.f32 %v1921, 0.5
  %v1925 = vmul.f32 %v1922, 0.5
  %v1926 = vmul.f32 %v1923, 0.5
  %v1927 = vadd.f32 %v1924, 0.5
  %v1928 = vadd.f32 %v1925, 0.5
  %v1929 = vadd.f32 %v1926, 0.5
  %v1930 = vtanh.pop %v1917
  %v1931 = vmul.f32 %v1928, %v1824
  %v1932 = vmul.f32 %v1927, %v1930
  %v1933 = vadd.f32 %v1931, %v1932
  %v1934 = vtanh.pop %v1933
  %v1935 = vmul.f32 %v1929, %v1934
  %v1936 = vld [vmem:[#allocation2 + $0xe0] sm:$0xff]
  %v1937 = vld [vmem:[#allocation2 + $0xe8] sm:$0xff]
  %v1938 = vld [vmem:[#allocation2 + $0xf0] sm:$0xff]
  %v1939 = vld [vmem:[#allocation2 + $0xf8] sm:$0xff]
  %v1940 = vpack.c.bf16 %v1935, %v1935
  %1941 = vmatprep.subr.bf16.mxu0 %v1143
  %1942 = vmatpush1.bf16.msra.mxu0 %v1142
  %1943 = vmatprep.subr.bf16.mxu0 %v1139
  %1944 = vmatpush1.bf16.msra.mxu0 %v1138
  %1945 = vmatprep.subr.bf16.mxu0 %v1135
  %1946 = vmatpush1.bf16.msra.mxu0 %v1134
  %1947 = vmatprep.subr.bf16.mxu0 %v1131
  %1948 = vmatpush1.bf16.msra.mxu0 %v1130
  %1949 = vmatprep.subr.bf16.mxu0 %v1127
  %1950 = vmatpush1.bf16.msra.mxu0 %v1126
  %1951 = vmatprep.subr.bf16.mxu0 %v1123
  %1952 = vmatpush1.bf16.msra.mxu0 %v1122
  %1953 = vmatprep.subr.bf16.mxu0 %v1119
  %1954 = vmatpush1.bf16.msra.mxu0 %v1118
  %1955 = vmatprep.subr.bf16.mxu0 %v1115
  %1956 = vmatpush1.bf16.msra.mxu0 %v1114
  %1957 = vmatprep.subr.bf16.mxu0 0
  %1958 = vmatpush2.bf16.msra.mxu0 0
  %1959 = vmatprep.subr.bf16.mxu0 0
  %1960 = vmatpush2.bf16.msra.mxu0 0
  %1961 = vmatprep.subr.bf16.mxu0 0
  %1962 = vmatpush2.bf16.msra.mxu0 0
  %1963 = vmatprep.subr.bf16.mxu0 0
  %1964 = vmatpush2.bf16.msra.mxu0 0
  %1965 = vmatprep.subr.bf16.mxu0 0
  %1966 = vmatpush2.bf16.msra.mxu0 0
  %1967 = vmatprep.subr.bf16.mxu0 0
  %1968 = vmatpush2.bf16.msra.mxu0 0
  %1969 = vmatprep.subr.bf16.mxu0 0
  %1970 = vmatpush2.bf16.msra.mxu0 0
  %1971 = vmatprep.subr.bf16.mxu0 0
  %1972 = vmatpush2.bf16.msra.mxu0 0
  %1973 = vmatprep.mubr.bf16.mxu0 0
  %1974 = vmatmul.mubr.bf16.gmra.mxu0 %v1940
  %v1975 = vpop.f32.mrf.mxu0
  %v1976 = vadd.f32 0.0, %v1975
  %v1977 = vpop.f32.mrf.mxu0
  %v1978 = vadd.f32 0.0, %v1977
  %v1979 = vpop.f32.mrf.mxu0
  %v1980 = vpop.f32.mrf.mxu0
  %1981 = vdwg.mxu0
  %1982 = vmatprep.subr.bf16.mxu0 %v1145
  %1983 = vmatpush1.bf16.msra.mxu0 %v1144
  %1984 = vmatprep.subr.bf16.mxu0 %v1141
  %1985 = vmatpush1.bf16.msra.mxu0 %v1140
  %1986 = vmatprep.subr.bf16.mxu0 %v1137
  %1987 = vmatpush1.bf16.msra.mxu0 %v1136
  %1988 = vmatprep.subr.bf16.mxu0 %v1133
  %1989 = vmatpush1.bf16.msra.mxu0 %v1132
  %1990 = vmatprep.subr.bf16.mxu0 %v1129
  %1991 = vmatpush1.bf16.msra.mxu0 %v1128
  %1992 = vmatprep.subr.bf16.mxu0 %v1125
  %1993 = vmatpush1.bf16.msra.mxu0 %v1124
  %1994 = vmatprep.subr.bf16.mxu0 %v1121
  %1995 = vmatpush1.bf16.msra.mxu0 %v1120
  %1996 = vmatprep.subr.bf16.mxu0 %v1117
  %1997 = vmatpush1.bf16.msra.mxu0 %v1116
  %1998 = vmatprep.subr.bf16.mxu0 0
  %1999 = vmatpush2.bf16.msra.mxu0 0
  %2000 = vmatprep.subr.bf16.mxu0 0
  %2001 = vmatpush2.bf16.msra.mxu0 0
  %2002 = vmatprep.subr.bf16.mxu0 0
  %2003 = vmatpush2.bf16.msra.mxu0 0
  %2004 = vmatprep.subr.bf16.mxu0 0
  %2005 = vmatpush2.bf16.msra.mxu0 0
  %2006 = vmatprep.subr.bf16.mxu0 0
  %2007 = vmatpush2.bf16.msra.mxu0 0
  %2008 = vmatprep.subr.bf16.mxu0 0
  %2009 = vmatpush2.bf16.msra.mxu0 0
  %2010 = vmatprep.subr.bf16.mxu0 0
  %2011 = vmatpush2.bf16.msra.mxu0 0
  %2012 = vmatprep.subr.bf16.mxu0 0
  %2013 = vmatpush2.bf16.msra.mxu0 0
  %2014 = vmatprep.mubr.bf16.mxu0 0
  %2015 = vmatmul.mubr.bf16.gmra.mxu0 %v1940
  %v2016 = vpop.f32.mrf.mxu0
  %v2017 = vadd.f32 0.0, %v2016
  %v2018 = vpop.f32.mrf.mxu0
  %v2019 = vadd.f32 0.0, %v2018
  %v2020 = vpop.f32.mrf.mxu0
  %v2021 = vpop.f32.mrf.mxu0
  %2022 = vdwg.mxu0
  %v2023 = vadd.f32 %v1936, %v1976
  %v2024 = vadd.f32 %v1937, %v1978
  %v2025 = vadd.f32 %v1938, %v2017
  %v2026 = vadd.f32 %v1939, %v2019
  %v2027 = vmul.f32 %v2023, 0.5
  %v2028 = vmul.f32 %v2024, 0.5
  %v2029 = vmul.f32 %v2025, 0.5
  %v2030 = vtanh.pop %v2027
  %v2031 = vtanh.pop %v2028
  %v2032 = vtanh.pop %v2029
  %v2033 = vmul.f32 %v2030, 0.5
  %v2034 = vmul.f32 %v2031, 0.5
  %v2035 = vmul.f32 %v2032, 0.5
  %v2036 = vadd.f32 %v2033, 0.5
  %v2037 = vadd.f32 %v2034, 0.5
  %v2038 = vadd.f32 %v2035, 0.5
  %v2039 = vtanh.pop %v2026
  %v2040 = vmul.f32 %v2037, %v1933
  %v2041 = vmul.f32 %v2036, %v2039
  %v2042 = vadd.f32 %v2040, %v2041
  %v2043 = vtanh.pop %v2042
  %v2044 = vmul.f32 %v2038, %v2043
  %v2045 = vld [vmem:[#allocation3] sm:$0xff]
  %v2046 = vld [vmem:[#allocation3 + $0x8] sm:$0xff]
  %v2047 = vld [vmem:[#allocation3 + $0x10] sm:$0xff]
  %v2048 = vld [vmem:[#allocation3 + $0x18] sm:$0xff]
  %v2049 = vpack.c.bf16 %v2044, %v2044
  %v2050 = vld [vmem:[%s7] sm:$0xff]
  %v2051 = vld [vmem:[%s7 + $0x8] sm:$0xff]
  %v2052 = vld [vmem:[%s7 + $0x10] sm:$0xff]
  %v2053 = vld [vmem:[%s7 + $0x18] sm:$0xff]
  %v2054 = vld [vmem:[%s7 + $0x20] sm:$0xff]
  %v2055 = vld [vmem:[%s7 + $0x28] sm:$0xff]
  %v2056 = vld [vmem:[%s7 + $0x30] sm:$0xff]
  %v2057 = vld [vmem:[%s7 + $0x38] sm:$0xff]
  %v2058 = vld [vmem:[%s7 + $0x40] sm:$0xff]
  %v2059 = vld [vmem:[%s7 + $0x48] sm:$0xff]
  %v2060 = vld [vmem:[%s7 + $0x50] sm:$0xff]
  %v2061 = vld [vmem:[%s7 + $0x58] sm:$0xff]
  %v2062 = vld [vmem:[%s7 + $0x60] sm:$0xff]
  %v2063 = vld [vmem:[%s7 + $0x68] sm:$0xff]
  %v2064 = vld [vmem:[%s7 + $0x70] sm:$0xff]
  %v2065 = vld [vmem:[%s7 + $0x78] sm:$0xff]
  %v2066 = vld [vmem:[%s7 + $0x80] sm:$0xff]
  %v2067 = vld [vmem:[%s7 + $0x88] sm:$0xff]
  %v2068 = vld [vmem:[%s7 + $0x90] sm:$0xff]
  %v2069 = vld [vmem:[%s7 + $0x98] sm:$0xff]
  %v2070 = vld [vmem:[%s7 + $0xa0] sm:$0xff]
  %v2071 = vld [vmem:[%s7 + $0xa8] sm:$0xff]
  %v2072 = vld [vmem:[%s7 + $0xb0] sm:$0xff]
  %v2073 = vld [vmem:[%s7 + $0xb8] sm:$0xff]
  %v2074 = vld [vmem:[%s7 + $0xc0] sm:$0xff]
  %v2075 = vld [vmem:[%s7 + $0xc8] sm:$0xff]
  %v2076 = vld [vmem:[%s7 + $0xd0] sm:$0xff]
  %v2077 = vld [vmem:[%s7 + $0xd8] sm:$0xff]
  %v2078 = vld [vmem:[%s7 + $0xe0] sm:$0xff]
  %v2079 = vld [vmem:[%s7 + $0xe8] sm:$0xff]
  %v2080 = vld [vmem:[%s7 + $0xf0] sm:$0xff]
  %v2081 = vld [vmem:[%s7 + $0xf8] sm:$0xff]
  %v2114 = vunpack.c.l.b16 %v2050
  %v2115 = vunpack.c.h.b16 %v2050
  %v2116 = vunpack.c.l.b16 %v2051
  %v2117 = vunpack.c.h.b16 %v2051
  %v2118 = vunpack.c.l.b16 %v2052
  %v2119 = vunpack.c.h.b16 %v2052
  %v2120 = vunpack.c.l.b16 %v2053
  %v2121 = vunpack.c.h.b16 %v2053
  %v2122 = vunpack.c.l.b16 %v2054
  %v2123 = vunpack.c.h.b16 %v2054
  %v2124 = vunpack.c.l.b16 %v2055
  %v2125 = vunpack.c.h.b16 %v2055
  %v2126 = vunpack.c.l.b16 %v2056
  %v2127 = vunpack.c.h.b16 %v2056
  %v2128 = vunpack.c.l.b16 %v2057
  %v2129 = vunpack.c.h.b16 %v2057
  %v2130 = vunpack.c.l.b16 %v2058
  %v2131 = vunpack.c.h.b16 %v2058
  %v2132 = vunpack.c.l.b16 %v2059
  %v2133 = vunpack.c.h.b16 %v2059
  %v2134 = vunpack.c.l.b16 %v2060
  %v2135 = vunpack.c.h.b16 %v2060
  %v2136 = vunpack.c.l.b16 %v2061
  %v2137 = vunpack.c.h.b16 %v2061
  %v2138 = vunpack.c.l.b16 %v2062
  %v2139 = vunpack.c.h.b16 %v2062
  %v2140 = vunpack.c.l.b16 %v2063
  %v2141 = vunpack.c.h.b16 %v2063
  %v2142 = vunpack.c.l.b16 %v2064
  %v2143 = vunpack.c.h.b16 %v2064
  %v2144 = vunpack.c.l.b16 %v2065
  %v2145 = vunpack.c.h.b16 %v2065
  %v2146 = vunpack.c.l.b16 %v2066
  %v2147 = vunpack.c.h.b16 %v2066
  %v2148 = vunpack.c.l.b16 %v2067
  %v2149 = vunpack.c.h.b16 %v2067
  %v2150 = vunpack.c.l.b16 %v2068
  %v2151 = vunpack.c.h.b16 %v2068
  %v2152 = vunpack.c.l.b16 %v2069
  %v2153 = vunpack.c.h.b16 %v2069
  %v2154 = vunpack.c.l.b16 %v2070
  %v2155 = vunpack.c.h.b16 %v2070
  %v2156 = vunpack.c.l.b16 %v2071
  %v2157 = vunpack.c.h.b16 %v2071
  %v2158 = vunpack.c.l.b16 %v2072
  %v2159 = vunpack.c.h.b16 %v2072
  %v2160 = vunpack.c.l.b16 %v2073
  %v2161 = vunpack.c.h.b16 %v2073
  %v2162 = vunpack.c.l.b16 %v2074
  %v2163 = vunpack.c.h.b16 %v2074
  %v2164 = vunpack.c.l.b16 %v2075
  %v2165 = vunpack.c.h.b16 %v2075
  %v2166 = vunpack.c.l.b16 %v2076
  %v2167 = vunpack.c.h.b16 %v2076
  %v2168 = vunpack.c.l.b16 %v2077
  %v2169 = vunpack.c.h.b16 %v2077
  %v2170 = vunpack.c.l.b16 %v2078
  %v2171 = vunpack.c.h.b16 %v2078
  %v2172 = vunpack.c.l.b16 %v2079
  %v2173 = vunpack.c.h.b16 %v2079
  %v2174 = vunpack.c.l.b16 %v2080
  %v2175 = vunpack.c.h.b16 %v2080
  %v2176 = vunpack.c.l.b16 %v2081
  %v2177 = vunpack.c.h.b16 %v2081
  %v2178 = vpack.c.b16 %v2118, %v2114
  %v2179 = vpack.c.b16 %v2119, %v2115
  %v2180 = vpack.c.b16 %v2120, %v2116
  %v2181 = vpack.c.b16 %v2121, %v2117
  %v2182 = vpack.c.b16 %v2126, %v2122
  %v2183 = vpack.c.b16 %v2127, %v2123
  %v2184 = vpack.c.b16 %v2128, %v2124
  %v2185 = vpack.c.b16 %v2129, %v2125
  %v2186 = vpack.c.b16 %v2134, %v2130
  %v2187 = vpack.c.b16 %v2135, %v2131
  %v2188 = vpack.c.b16 %v2136, %v2132
  %v2189 = vpack.c.b16 %v2137, %v2133
  %v2190 = vpack.c.b16 %v2142, %v2138
  %v2191 = vpack.c.b16 %v2143, %v2139
  %v2192 = vpack.c.b16 %v2144, %v2140
  %v2193 = vpack.c.b16 %v2145, %v2141
  %v2194 = vpack.c.b16 %v2150, %v2146
  %v2195 = vpack.c.b16 %v2151, %v2147
  %v2196 = vpack.c.b16 %v2152, %v2148
  %v2197 = vpack.c.b16 %v2153, %v2149
  %v2198 = vpack.c.b16 %v2158, %v2154
  %v2199 = vpack.c.b16 %v2159, %v2155
  %v2200 = vpack.c.b16 %v2160, %v2156
  %v2201 = vpack.c.b16 %v2161, %v2157
  %v2202 = vpack.c.b16 %v2166, %v2162
  %v2203 = vpack.c.b16 %v2167, %v2163
  %v2204 = vpack.c.b16 %v2168, %v2164
  %v2205 = vpack.c.b16 %v2169, %v2165
  %v2206 = vpack.c.b16 %v2174, %v2170
  %v2207 = vpack.c.b16 %v2175, %v2171
  %v2208 = vpack.c.b16 %v2176, %v2172
  %v2209 = vpack.c.b16 %v2177, %v2173
  %2242 = vmatprep.subr.bf16.mxu0 %v2207
  %2243 = vmatpush1.bf16.msra.mxu0 %v2206
  %2244 = vmatprep.subr.bf16.mxu0 %v2203
  %2245 = vmatpush1.bf16.msra.mxu0 %v2202
  %2246 = vmatprep.subr.bf16.mxu0 %v2199
  %2247 = vmatpush1.bf16.msra.mxu0 %v2198
  %2248 = vmatprep.subr.bf16.mxu0 %v2195
  %2249 = vmatpush1.bf16.msra.mxu0 %v2194
  %2250 = vmatprep.subr.bf16.mxu0 %v2191
  %2251 = vmatpush1.bf16.msra.mxu0 %v2190
  %2252 = vmatprep.subr.bf16.mxu0 %v2187
  %2253 = vmatpush1.bf16.msra.mxu0 %v2186
  %2254 = vmatprep.subr.bf16.mxu0 %v2183
  %2255 = vmatpush1.bf16.msra.mxu0 %v2182
  %2256 = vmatprep.subr.bf16.mxu0 %v2179
  %2257 = vmatpush1.bf16.msra.mxu0 %v2178
  %2258 = vmatprep.subr.bf16.mxu0 0
  %2259 = vmatpush2.bf16.msra.mxu0 0
  %2260 = vmatprep.subr.bf16.mxu0 0
  %2261 = vmatpush2.bf16.msra.mxu0 0
  %2262 = vmatprep.subr.bf16.mxu0 0
  %2263 = vmatpush2.bf16.msra.mxu0 0
  %2264 = vmatprep.subr.bf16.mxu0 0
  %2265 = vmatpush2.bf16.msra.mxu0 0
  %2266 = vmatprep.subr.bf16.mxu0 0
  %2267 = vmatpush2.bf16.msra.mxu0 0
  %2268 = vmatprep.subr.bf16.mxu0 0
  %2269 = vmatpush2.bf16.msra.mxu0 0
  %2270 = vmatprep.subr.bf16.mxu0 0
  %2271 = vmatpush2.bf16.msra.mxu0 0
  %2272 = vmatprep.subr.bf16.mxu0 0
  %2273 = vmatpush2.bf16.msra.mxu0 0
  %2274 = vmatprep.mubr.bf16.mxu0 0
  %2275 = vmatmul.mubr.bf16.gmra.mxu0 %v2049
  %v2276 = vpop.f32.mrf.mxu0
  %v2277 = vadd.f32 0.0, %v2276
  %v2278 = vpop.f32.mrf.mxu0
  %v2279 = vadd.f32 0.0, %v2278
  %v2280 = vpop.f32.mrf.mxu0
  %v2281 = vpop.f32.mrf.mxu0
  %2282 = vdwg.mxu0
  %2283 = vmatprep.subr.bf16.mxu0 %v2209
  %2284 = vmatpush1.bf16.msra.mxu0 %v2208
  %2285 = vmatprep.subr.bf16.mxu0 %v2205
  %2286 = vmatpush1.bf16.msra.mxu0 %v2204
  %2287 = vmatprep.subr.bf16.mxu0 %v2201
  %2288 = vmatpush1.bf16.msra.mxu0 %v2200
  %2289 = vmatprep.subr.bf16.mxu0 %v2197
  %2290 = vmatpush1.bf16.msra.mxu0 %v2196
  %2291 = vmatprep.subr.bf16.mxu0 %v2193
  %2292 = vmatpush1.bf16.msra.mxu0 %v2192
  %2293 = vmatprep.subr.bf16.mxu0 %v2189
  %2294 = vmatpush1.bf16.msra.mxu0 %v2188
  %2295 = vmatprep.subr.bf16.mxu0 %v2185
  %2296 = vmatpush1.bf16.msra.mxu0 %v2184
  %2297 = vmatprep.subr.bf16.mxu0 %v2181
  %2298 = vmatpush1.bf16.msra.mxu0 %v2180
  %2299 = vmatprep.subr.bf16.mxu0 0
  %2300 = vmatpush2.bf16.msra.mxu0 0
  %2301 = vmatprep.subr.bf16.mxu0 0
  %2302 = vmatpush2.bf16.msra.mxu0 0
  %2303 = vmatprep.subr.bf16.mxu0 0
  %2304 = vmatpush2.bf16.msra.mxu0 0
  %2305 = vmatprep.subr.bf16.mxu0 0
  %2306 = vmatpush2.bf16.msra.mxu0 0
  %2307 = vmatprep.subr.bf16.mxu0 0
  %2308 = vmatpush2.bf16.msra.mxu0 0
  %2309 = vmatprep.subr.bf16.mxu0 0
  %2310 = vmatpush2.bf16.msra.mxu0 0
  %2311 = vmatprep.subr.bf16.mxu0 0
  %2312 = vmatpush2.bf16.msra.mxu0 0
  %2313 = vmatprep.subr.bf16.mxu0 0
  %2314 = vmatpush2.bf16.msra.mxu0 0
  %2315 = vmatprep.mubr.bf16.mxu0 0
  %2316 = vmatmul.mubr.bf16.gmra.mxu0 %v2049
  %v2317 = vpop.f32.mrf.mxu0
  %v2318 = vadd.f32 0.0, %v2317
  %v2319 = vpop.f32.mrf.mxu0
  %v2320 = vadd.f32 0.0, %v2319
  %v2321 = vpop.f32.mrf.mxu0
  %v2322 = vpop.f32.mrf.mxu0
  %2323 = vdwg.mxu0
  %v2324 = vadd.f32 %v2045, %v2277
  %v2325 = vadd.f32 %v2046, %v2279
  %v2326 = vadd.f32 %v2047, %v2318
  %v2327 = vadd.f32 %v2048, %v2320
  %v2328 = vmul.f32 %v2324, 0.5
  %v2329 = vmul.f32 %v2325, 0.5
  %v2330 = vmul.f32 %v2326, 0.5
  %v2331 = vtanh.pop %v2328
  %v2332 = vtanh.pop %v2329
  %v2333 = vtanh.pop %v2330
  %v2334 = vmul.f32 %v2331, 0.5
  %v2335 = vmul.f32 %v2332, 0.5
  %v2336 = vmul.f32 %v2333, 0.5
  %v2337 = vadd.f32 %v2334, 0.5
  %v2338 = vadd.f32 %v2335, 0.5
  %v2339 = vadd.f32 %v2336, 0.5
  %v2340 = vtanh.pop %v2327
  %v2341 = vmul.f32 %v2338, %v2042
  %v2342 = vmul.f32 %v2337, %v2340
  %v2343 = vadd.f32 %v2341, %v2342
  %v2344 = vtanh.pop %v2343
  %v2345 = vmul.f32 %v2339, %v2344
  %v2346 = vld [vmem:[#allocation3 + $0x20] sm:$0xff]
  %v2347 = vld [vmem:[#allocation3 + $0x28] sm:$0xff]
  %v2348 = vld [vmem:[#allocation3 + $0x30] sm:$0xff]
  %v2349 = vld [vmem:[#allocation3 + $0x38] sm:$0xff]
  %v2350 = vpack.c.bf16 %v2345, %v2345
  %2351 = vmatprep.subr.bf16.mxu0 %v2207
  %2352 = vmatpush1.bf16.msra.mxu0 %v2206
  %2353 = vmatprep.subr.bf16.mxu0 %v2203
  %2354 = vmatpush1.bf16.msra.mxu0 %v2202
  %2355 = vmatprep.subr.bf16.mxu0 %v2199
  %2356 = vmatpush1.bf16.msra.mxu0 %v2198
  %2357 = vmatprep.subr.bf16.mxu0 %v2195
  %2358 = vmatpush1.bf16.msra.mxu0 %v2194
  %2359 = vmatprep.subr.bf16.mxu0 %v2191
  %2360 = vmatpush1.bf16.msra.mxu0 %v2190
  %2361 = vmatprep.subr.bf16.mxu0 %v2187
  %2362 = vmatpush1.bf16.msra.mxu0 %v2186
  %2363 = vmatprep.subr.bf16.mxu0 %v2183
  %2364 = vmatpush1.bf16.msra.mxu0 %v2182
  %2365 = vmatprep.subr.bf16.mxu0 %v2179
  %2366 = vmatpush1.bf16.msra.mxu0 %v2178
  %2367 = vmatprep.subr.bf16.mxu0 0
  %2368 = vmatpush2.bf16.msra.mxu0 0
  %2369 = vmatprep.subr.bf16.mxu0 0
  %2370 = vmatpush2.bf16.msra.mxu0 0
  %2371 = vmatprep.subr.bf16.mxu0 0
  %2372 = vmatpush2.bf16.msra.mxu0 0
  %2373 = vmatprep.subr.bf16.mxu0 0
  %2374 = vmatpush2.bf16.msra.mxu0 0
  %2375 = vmatprep.subr.bf16.mxu0 0
  %2376 = vmatpush2.bf16.msra.mxu0 0
  %2377 = vmatprep.subr.bf16.mxu0 0
  %2378 = vmatpush2.bf16.msra.mxu0 0
  %2379 = vmatprep.subr.bf16.mxu0 0
  %2380 = vmatpush2.bf16.msra.mxu0 0
  %2381 = vmatprep.subr.bf16.mxu0 0
  %2382 = vmatpush2.bf16.msra.mxu0 0
  %2383 = vmatprep.mubr.bf16.mxu0 0
  %2384 = vmatmul.mubr.bf16.gmra.mxu0 %v2350
  %v2385 = vpop.f32.mrf.mxu0
  %v2386 = vadd.f32 0.0, %v2385
  %v2387 = vpop.f32.mrf.mxu0
  %v2388 = vadd.f32 0.0, %v2387
  %v2389 = vpop.f32.mrf.mxu0
  %v2390 = vpop.f32.mrf.mxu0
  %2391 = vdwg.mxu0
  %2392 = vmatprep.subr.bf16.mxu0 %v2209
  %2393 = vmatpush1.bf16.msra.mxu0 %v2208
  %2394 = vmatprep.subr.bf16.mxu0 %v2205
  %2395 = vmatpush1.bf16.msra.mxu0 %v2204
  %2396 = vmatprep.subr.bf16.mxu0 %v2201
  %2397 = vmatpush1.bf16.msra.mxu0 %v2200
  %2398 = vmatprep.subr.bf16.mxu0 %v2197
  %2399 = vmatpush1.bf16.msra.mxu0 %v2196
  %2400 = vmatprep.subr.bf16.mxu0 %v2193
  %2401 = vmatpush1.bf16.msra.mxu0 %v2192
  %2402 = vmatprep.subr.bf16.mxu0 %v2189
  %2403 = vmatpush1.bf16.msra.mxu0 %v2188
  %2404 = vmatprep.subr.bf16.mxu0 %v2185
  %2405 = vmatpush1.bf16.msra.mxu0 %v2184
  %2406 = vmatprep.subr.bf16.mxu0 %v2181
  %2407 = vmatpush1.bf16.msra.mxu0 %v2180
  %2408 = vmatprep.subr.bf16.mxu0 0
  %2409 = vmatpush2.bf16.msra.mxu0 0
  %2410 = vmatprep.subr.bf16.mxu0 0
  %2411 = vmatpush2.bf16.msra.mxu0 0
  %2412 = vmatprep.subr.bf16.mxu0 0
  %2413 = vmatpush2.bf16.msra.mxu0 0
  %2414 = vmatprep.subr.bf16.mxu0 0
  %2415 = vmatpush2.bf16.msra.mxu0 0
  %2416 = vmatprep.subr.bf16.mxu0 0
  %2417 = vmatpush2.bf16.msra.mxu0 0
  %2418 = vmatprep.subr.bf16.mxu0 0
  %2419 = vmatpush2.bf16.msra.mxu0 0
  %2420 = vmatprep.subr.bf16.mxu0 0
  %2421 = vmatpush2.bf16.msra.mxu0 0
  %2422 = vmatprep.subr.bf16.mxu0 0
  %2423 = vmatpush2.bf16.msra.mxu0 0
  %2424 = vmatprep.mubr.bf16.mxu0 0
  %2425 = vmatmul.mubr.bf16.gmra.mxu0 %v2350
  %v2426 = vpop.f32.mrf.mxu0
  %v2427 = vadd.f32 0.0, %v2426
  %v2428 = vpop.f32.mrf.mxu0
  %v2429 = vadd.f32 0.0, %v2428
  %v2430 = vpop.f32.mrf.mxu0
  %v2431 = vpop.f32.mrf.mxu0
  %2432 = vdwg.mxu0
  %v2433 = vadd.f32 %v2346, %v2386
  %v2434 = vadd.f32 %v2347, %v2388
  %v2435 = vadd.f32 %v2348, %v2427
  %v2436 = vadd.f32 %v2349, %v2429
  %v2437 = vmul.f32 %v2433, 0.5
  %v2438 = vmul.f32 %v2434, 0.5
  %v2439 = vmul.f32 %v2435, 0.5
  %v2440 = vtanh.pop %v2437
  %v2441 = vtanh.pop %v2438
  %v2442 = vtanh.pop %v2439
  %v2443 = vmul.f32 %v2440, 0.5
  %v2444 = vmul.f32 %v2441, 0.5
  %v2445 = vmul.f32 %v2442, 0.5
  %v2446 = vadd.f32 %v2443, 0.5
  %v2447 = vadd.f32 %v2444, 0.5
  %v2448 = vadd.f32 %v2445, 0.5
  %v2449 = vtanh.pop %v2436
  %v2450 = vmul.f32 %v2447, %v2343
  %v2451 = vmul.f32 %v2446, %v2449
  %v2452 = vadd.f32 %v2450, %v2451
  %v2453 = vtanh.pop %v2452
  %v2454 = vmul.f32 %v2448, %v2453
  %v2455 = vld [vmem:[#allocation3 + $0x40] sm:$0xff]
  %v2456 = vld [vmem:[#allocation3 + $0x48] sm:$0xff]
  %v2457 = vld [vmem:[#allocation3 + $0x50] sm:$0xff]
  %v2458 = vld [vmem:[#allocation3 + $0x58] sm:$0xff]
  %v2459 = vpack.c.bf16 %v2454, %v2454
  %2460 = vmatprep.subr.bf16.mxu0 %v2207
  %2461 = vmatpush1.bf16.msra.mxu0 %v2206
  %2462 = vmatprep.subr.bf16.mxu0 %v2203
  %2463 = vmatpush1.bf16.msra.mxu0 %v2202
  %2464 = vmatprep.subr.bf16.mxu0 %v2199
  %2465 = vmatpush1.bf16.msra.mxu0 %v2198
  %2466 = vmatprep.subr.bf16.mxu0 %v2195
  %2467 = vmatpush1.bf16.msra.mxu0 %v2194
  %2468 = vmatprep.subr.bf16.mxu0 %v2191
  %2469 = vmatpush1.bf16.msra.mxu0 %v2190
  %2470 = vmatprep.subr.bf16.mxu0 %v2187
  %2471 = vmatpush1.bf16.msra.mxu0 %v2186
  %2472 = vmatprep.subr.bf16.mxu0 %v2183
  %2473 = vmatpush1.bf16.msra.mxu0 %v2182
  %2474 = vmatprep.subr.bf16.mxu0 %v2179
  %2475 = vmatpush1.bf16.msra.mxu0 %v2178
  %2476 = vmatprep.subr.bf16.mxu0 0
  %2477 = vmatpush2.bf16.msra.mxu0 0
  %2478 = vmatprep.subr.bf16.mxu0 0
  %2479 = vmatpush2.bf16.msra.mxu0 0
  %2480 = vmatprep.subr.bf16.mxu0 0
  %2481 = vmatpush2.bf16.msra.mxu0 0
  %2482 = vmatprep.subr.bf16.mxu0 0
  %2483 = vmatpush2.bf16.msra.mxu0 0
  %2484 = vmatprep.subr.bf16.mxu0 0
  %2485 = vmatpush2.bf16.msra.mxu0 0
  %2486 = vmatprep.subr.bf16.mxu0 0
  %2487 = vmatpush2.bf16.msra.mxu0 0
  %2488 = vmatprep.subr.bf16.mxu0 0
  %2489 = vmatpush2.bf16.msra.mxu0 0
  %2490 = vmatprep.subr.bf16.mxu0 0
  %2491 = vmatpush2.bf16.msra.mxu0 0
  %2492 = vmatprep.mubr.bf16.mxu0 0
  %2493 = vmatmul.mubr.bf16.gmra.mxu0 %v2459
  %v2494 = vpop.f32.mrf.mxu0
  %v2495 = vadd.f32 0.0, %v2494
  %v2496 = vpop.f32.mrf.mxu0
  %v2497 = vadd.f32 0.0, %v2496
  %v2498 = vpop.f32.mrf.mxu0
  %v2499 = vpop.f32.mrf.mxu0
  %2500 = vdwg.mxu0
  %2501 = vmatprep.subr.bf16.mxu0 %v2209
  %2502 = vmatpush1.bf16.msra.mxu0 %v2208
  %2503 = vmatprep.subr.bf16.mxu0 %v2205
  %2504 = vmatpush1.bf16.msra.mxu0 %v2204
  %2505 = vmatprep.subr.bf16.mxu0 %v2201
  %2506 = vmatpush1.bf16.msra.mxu0 %v2200
  %2507 = vmatprep.subr.bf16.mxu0 %v2197
  %2508 = vmatpush1.bf16.msra.mxu0 %v2196
  %2509 = vmatprep.subr.bf16.mxu0 %v2193
  %2510 = vmatpush1.bf16.msra.mxu0 %v2192
  %2511 = vmatprep.subr.bf16.mxu0 %v2189
  %2512 = vmatpush1.bf16.msra.mxu0 %v2188
  %2513 = vmatprep.subr.bf16.mxu0 %v2185
  %2514 = vmatpush1.bf16.msra.mxu0 %v2184
  %2515 = vmatprep.subr.bf16.mxu0 %v2181
  %2516 = vmatpush1.bf16.msra.mxu0 %v2180
  %2517 = vmatprep.subr.bf16.mxu0 0
  %2518 = vmatpush2.bf16.msra.mxu0 0
  %2519 = vmatprep.subr.bf16.mxu0 0
  %2520 = vmatpush2.bf16.msra.mxu0 0
  %2521 = vmatprep.subr.bf16.mxu0 0
  %2522 = vmatpush2.bf16.msra.mxu0 0
  %2523 = vmatprep.subr.bf16.mxu0 0
  %2524 = vmatpush2.bf16.msra.mxu0 0
  %2525 = vmatprep.subr.bf16.mxu0 0
  %2526 = vmatpush2.bf16.msra.mxu0 0
  %2527 = vmatprep.subr.bf16.mxu0 0
  %2528 = vmatpush2.bf16.msra.mxu0 0
  %2529 = vmatprep.subr.bf16.mxu0 0
  %2530 = vmatpush2.bf16.msra.mxu0 0
  %2531 = vmatprep.subr.bf16.mxu0 0
  %2532 = vmatpush2.bf16.msra.mxu0 0
  %2533 = vmatprep.mubr.bf16.mxu0 0
  %2534 = vmatmul.mubr.bf16.gmra.mxu0 %v2459
  %v2535 = vpop.f32.mrf.mxu0
  %v2536 = vadd.f32 0.0, %v2535
  %v2537 = vpop.f32.mrf.mxu0
  %v2538 = vadd.f32 0.0, %v2537
  %v2539 = vpop.f32.mrf.mxu0
  %v2540 = vpop.f32.mrf.mxu0
  %2541 = vdwg.mxu0
  %v2542 = vadd.f32 %v2455, %v2495
  %v2543 = vadd.f32 %v2456, %v2497
  %v2544 = vadd.f32 %v2457, %v2536
  %v2545 = vadd.f32 %v2458, %v2538
  %v2546 = vmul.f32 %v2542, 0.5
  %v2547 = vmul.f32 %v2543, 0.5
  %v2548 = vmul.f32 %v2544, 0.5
  %v2549 = vtanh.pop %v2546
  %v2550 = vtanh.pop %v2547
  %v2551 = vtanh.pop %v2548
  %v2552 = vmul.f32 %v2549, 0.5
  %v2553 = vmul.f32 %v2550, 0.5
  %v2554 = vmul.f32 %v2551, 0.5
  %v2555 = vadd.f32 %v2552, 0.5
  %v2556 = vadd.f32 %v2553, 0.5
  %v2557 = vadd.f32 %v2554, 0.5
  %v2558 = vtanh.pop %v2545
  %v2559 = vmul.f32 %v2556, %v2452
  %v2560 = vmul.f32 %v2555, %v2558
  %v2561 = vadd.f32 %v2559, %v2560
  %v2562 = vtanh.pop %v2561
  %v2563 = vmul.f32 %v2557, %v2562
  %v2564 = vld [vmem:[#allocation3 + $0x60] sm:$0xff]
  %v2565 = vld [vmem:[#allocation3 + $0x68] sm:$0xff]
  %v2566 = vld [vmem:[#allocation3 + $0x70] sm:$0xff]
  %v2567 = vld [vmem:[#allocation3 + $0x78] sm:$0xff]
  %v2568 = vpack.c.bf16 %v2563, %v2563
  %2569 = vmatprep.subr.bf16.mxu0 %v2207
  %2570 = vmatpush1.bf16.msra.mxu0 %v2206
  %2571 = vmatprep.subr.bf16.mxu0 %v2203
  %2572 = vmatpush1.bf16.msra.mxu0 %v2202
  %2573 = vmatprep.subr.bf16.mxu0 %v2199
  %2574 = vmatpush1.bf16.msra.mxu0 %v2198
  %2575 = vmatprep.subr.bf16.mxu0 %v2195
  %2576 = vmatpush1.bf16.msra.mxu0 %v2194
  %2577 = vmatprep.subr.bf16.mxu0 %v2191
  %2578 = vmatpush1.bf16.msra.mxu0 %v2190
  %2579 = vmatprep.subr.bf16.mxu0 %v2187
  %2580 = vmatpush1.bf16.msra.mxu0 %v2186
  %2581 = vmatprep.subr.bf16.mxu0 %v2183
  %2582 = vmatpush1.bf16.msra.mxu0 %v2182
  %2583 = vmatprep.subr.bf16.mxu0 %v2179
  %2584 = vmatpush1.bf16.msra.mxu0 %v2178
  %2585 = vmatprep.subr.bf16.mxu0 0
  %2586 = vmatpush2.bf16.msra.mxu0 0
  %2587 = vmatprep.subr.bf16.mxu0 0
  %2588 = vmatpush2.bf16.msra.mxu0 0
  %2589 = vmatprep.subr.bf16.mxu0 0
  %2590 = vmatpush2.bf16.msra.mxu0 0
  %2591 = vmatprep.subr.bf16.mxu0 0
  %2592 = vmatpush2.bf16.msra.mxu0 0
  %2593 = vmatprep.subr.bf16.mxu0 0
  %2594 = vmatpush2.bf16.msra.mxu0 0
  %2595 = vmatprep.subr.bf16.mxu0 0
  %2596 = vmatpush2.bf16.msra.mxu0 0
  %2597 = vmatprep.subr.bf16.mxu0 0
  %2598 = vmatpush2.bf16.msra.mxu0 0
  %2599 = vmatprep.subr.bf16.mxu0 0
  %2600 = vmatpush2.bf16.msra.mxu0 0
  %2601 = vmatprep.mubr.bf16.mxu0 0
  %2602 = vmatmul.mubr.bf16.gmra.mxu0 %v2568
  %v2603 = vpop.f32.mrf.mxu0
  %v2604 = vadd.f32 0.0, %v2603
  %v2605 = vpop.f32.mrf.mxu0
  %v2606 = vadd.f32 0.0, %v2605
  %v2607 = vpop.f32.mrf.mxu0
  %v2608 = vpop.f32.mrf.mxu0
  %2609 = vdwg.mxu0
  %2610 = vmatprep.subr.bf16.mxu0 %v2209
  %2611 = vmatpush1.bf16.msra.mxu0 %v2208
  %2612 = vmatprep.subr.bf16.mxu0 %v2205
  %2613 = vmatpush1.bf16.msra.mxu0 %v2204
  %2614 = vmatprep.subr.bf16.mxu0 %v2201
  %2615 = vmatpush1.bf16.msra.mxu0 %v2200
  %2616 = vmatprep.subr.bf16.mxu0 %v2197
  %2617 = vmatpush1.bf16.msra.mxu0 %v2196
  %2618 = vmatprep.subr.bf16.mxu0 %v2193
  %2619 = vmatpush1.bf16.msra.mxu0 %v2192
  %2620 = vmatprep.subr.bf16.mxu0 %v2189
  %2621 = vmatpush1.bf16.msra.mxu0 %v2188
  %2622 = vmatprep.subr.bf16.mxu0 %v2185
  %2623 = vmatpush1.bf16.msra.mxu0 %v2184
  %2624 = vmatprep.subr.bf16.mxu0 %v2181
  %2625 = vmatpush1.bf16.msra.mxu0 %v2180
  %2626 = vmatprep.subr.bf16.mxu0 0
  %2627 = vmatpush2.bf16.msra.mxu0 0
  %2628 = vmatprep.subr.bf16.mxu0 0
  %2629 = vmatpush2.bf16.msra.mxu0 0
  %2630 = vmatprep.subr.bf16.mxu0 0
  %2631 = vmatpush2.bf16.msra.mxu0 0
  %2632 = vmatprep.subr.bf16.mxu0 0
  %2633 = vmatpush2.bf16.msra.mxu0 0
  %2634 = vmatprep.subr.bf16.mxu0 0
  %2635 = vmatpush2.bf16.msra.mxu0 0
  %2636 = vmatprep.subr.bf16.mxu0 0
  %2637 = vmatpush2.bf16.msra.mxu0 0
  %2638 = vmatprep.subr.bf16.mxu0 0
  %2639 = vmatpush2.bf16.msra.mxu0 0
  %2640 = vmatprep.subr.bf16.mxu0 0
  %2641 = vmatpush2.bf16.msra.mxu0 0
  %2642 = vmatprep.mubr.bf16.mxu0 0
  %2643 = vmatmul.mubr.bf16.gmra.mxu0 %v2568
  %v2644 = vpop.f32.mrf.mxu0
  %v2645 = vadd.f32 0.0, %v2644
  %v2646 = vpop.f32.mrf.mxu0
  %v2647 = vadd.f32 0.0, %v2646
  %v2648 = vpop.f32.mrf.mxu0
  %v2649 = vpop.f32.mrf.mxu0
  %2650 = vdwg.mxu0
  %v2651 = vadd.f32 %v2564, %v2604
  %v2652 = vadd.f32 %v2565, %v2606
  %v2653 = vadd.f32 %v2566, %v2645
  %v2654 = vadd.f32 %v2567, %v2647
  %v2655 = vmul.f32 %v2651, 0.5
  %v2656 = vmul.f32 %v2652, 0.5
  %v2657 = vmul.f32 %v2653, 0.5
  %v2658 = vtanh.pop %v2655
  %v2659 = vtanh.pop %v2656
  %v2660 = vtanh.pop %v2657
  %v2661 = vmul.f32 %v2658, 0.5
  %v2662 = vmul.f32 %v2659, 0.5
  %v2663 = vmul.f32 %v2660, 0.5
  %v2664 = vadd.f32 %v2661, 0.5
  %v2665 = vadd.f32 %v2662, 0.5
  %v2666 = vadd.f32 %v2663, 0.5
  %v2667 = vtanh.pop %v2654
  %v2668 = vmul.f32 %v2665, %v2561
  %v2669 = vmul.f32 %v2664, %v2667
  %v2670 = vadd.f32 %v2668, %v2669
  %v2671 = vtanh.pop %v2670
  %v2672 = vmul.f32 %v2666, %v2671
  %v2673 = vld [vmem:[#allocation3 + $0x80] sm:$0xff]
  %v2674 = vld [vmem:[#allocation3 + $0x88] sm:$0xff]
  %v2675 = vld [vmem:[#allocation3 + $0x90] sm:$0xff]
  %v2676 = vld [vmem:[#allocation3 + $0x98] sm:$0xff]
  %v2677 = vpack.c.bf16 %v2672, %v2672
  %2678 = vmatprep.subr.bf16.mxu0 %v2207
  %2679 = vmatpush1.bf16.msra.mxu0 %v2206
  %2680 = vmatprep.subr.bf16.mxu0 %v2203
  %2681 = vmatpush1.bf16.msra.mxu0 %v2202
  %2682 = vmatprep.subr.bf16.mxu0 %v2199
  %2683 = vmatpush1.bf16.msra.mxu0 %v2198
  %2684 = vmatprep.subr.bf16.mxu0 %v2195
  %2685 = vmatpush1.bf16.msra.mxu0 %v2194
  %2686 = vmatprep.subr.bf16.mxu0 %v2191
  %2687 = vmatpush1.bf16.msra.mxu0 %v2190
  %2688 = vmatprep.subr.bf16.mxu0 %v2187
  %2689 = vmatpush1.bf16.msra.mxu0 %v2186
  %2690 = vmatprep.subr.bf16.mxu0 %v2183
  %2691 = vmatpush1.bf16.msra.mxu0 %v2182
  %2692 = vmatprep.subr.bf16.mxu0 %v2179
  %2693 = vmatpush1.bf16.msra.mxu0 %v2178
  %2694 = vmatprep.subr.bf16.mxu0 0
  %2695 = vmatpush2.bf16.msra.mxu0 0
  %2696 = vmatprep.subr.bf16.mxu0 0
  %2697 = vmatpush2.bf16.msra.mxu0 0
  %2698 = vmatprep.subr.bf16.mxu0 0
  %2699 = vmatpush2.bf16.msra.mxu0 0
  %2700 = vmatprep.subr.bf16.mxu0 0
  %2701 = vmatpush2.bf16.msra.mxu0 0
  %2702 = vmatprep.subr.bf16.mxu0 0
  %2703 = vmatpush2.bf16.msra.mxu0 0
  %2704 = vmatprep.subr.bf16.mxu0 0
  %2705 = vmatpush2.bf16.msra.mxu0 0
  %2706 = vmatprep.subr.bf16.mxu0 0
  %2707 = vmatpush2.bf16.msra.mxu0 0
  %2708 = vmatprep.subr.bf16.mxu0 0
  %2709 = vmatpush2.bf16.msra.mxu0 0
  %2710 = vmatprep.mubr.bf16.mxu0 0
  %2711 = vmatmul.mubr.bf16.gmra.mxu0 %v2677
  %v2712 = vpop.f32.mrf.mxu0
  %v2713 = vadd.f32 0.0, %v2712
  %v2714 = vpop.f32.mrf.mxu0
  %v2715 = vadd.f32 0.0, %v2714
  %v2716 = vpop.f32.mrf.mxu0
  %v2717 = vpop.f32.mrf.mxu0
  %2718 = vdwg.mxu0
  %2719 = vmatprep.subr.bf16.mxu0 %v2209
  %2720 = vmatpush1.bf16.msra.mxu0 %v2208
  %2721 = vmatprep.subr.bf16.mxu0 %v2205
  %2722 = vmatpush1.bf16.msra.mxu0 %v2204
  %2723 = vmatprep.subr.bf16.mxu0 %v2201
  %2724 = vmatpush1.bf16.msra.mxu0 %v2200
  %2725 = vmatprep.subr.bf16.mxu0 %v2197
  %2726 = vmatpush1.bf16.msra.mxu0 %v2196
  %2727 = vmatprep.subr.bf16.mxu0 %v2193
  %2728 = vmatpush1.bf16.msra.mxu0 %v2192
  %2729 = vmatprep.subr.bf16.mxu0 %v2189
  %2730 = vmatpush1.bf16.msra.mxu0 %v2188
  %2731 = vmatprep.subr.bf16.mxu0 %v2185
  %2732 = vmatpush1.bf16.msra.mxu0 %v2184
  %2733 = vmatprep.subr.bf16.mxu0 %v2181
  %2734 = vmatpush1.bf16.msra.mxu0 %v2180
  %2735 = vmatprep.subr.bf16.mxu0 0
  %2736 = vmatpush2.bf16.msra.mxu0 0
  %2737 = vmatprep.subr.bf16.mxu0 0
  %2738 = vmatpush2.bf16.msra.mxu0 0
  %2739 = vmatprep.subr.bf16.mxu0 0
  %2740 = vmatpush2.bf16.msra.mxu0 0
  %2741 = vmatprep.subr.bf16.mxu0 0
  %2742 = vmatpush2.bf16.msra.mxu0 0
  %2743 = vmatprep.subr.bf16.mxu0 0
  %2744 = vmatpush2.bf16.msra.mxu0 0
  %2745 = vmatprep.subr.bf16.mxu0 0
  %2746 = vmatpush2.bf16.msra.mxu0 0
  %2747 = vmatprep.subr.bf16.mxu0 0
  %2748 = vmatpush2.bf16.msra.mxu0 0
  %2749 = vmatprep.subr.bf16.mxu0 0
  %2750 = vmatpush2.bf16.msra.mxu0 0
  %2751 = vmatprep.mubr.bf16.mxu0 0
  %2752 = vmatmul.mubr.bf16.gmra.mxu0 %v2677
  %v2753 = vpop.f32.mrf.mxu0
  %v2754 = vadd.f32 0.0, %v2753
  %v2755 = vpop.f32.mrf.mxu0
  %v2756 = vadd.f32 0.0, %v2755
  %v2757 = vpop.f32.mrf.mxu0
  %v2758 = vpop.f32.mrf.mxu0
  %2759 = vdwg.mxu0
  %v2760 = vadd.f32 %v2673, %v2713
  %v2761 = vadd.f32 %v2674, %v2715
  %v2762 = vadd.f32 %v2675, %v2754
  %v2763 = vadd.f32 %v2676, %v2756
  %v2764 = vmul.f32 %v2760, 0.5
  %v2765 = vmul.f32 %v2761, 0.5
  %v2766 = vmul.f32 %v2762, 0.5
  %v2767 = vtanh.pop %v2764
  %v2768 = vtanh.pop %v2765
  %v2769 = vtanh.pop %v2766
  %v2770 = vmul.f32 %v2767, 0.5
  %v2771 = vmul.f32 %v2768, 0.5
  %v2772 = vmul.f32 %v2769, 0.5
  %v2773 = vadd.f32 %v2770, 0.5
  %v2774 = vadd.f32 %v2771, 0.5
  %v2775 = vadd.f32 %v2772, 0.5
  %v2776 = vtanh.pop %v2763
  %v2777 = vmul.f32 %v2774, %v2670
  %v2778 = vmul.f32 %v2773, %v2776
  %v2779 = vadd.f32 %v2777, %v2778
  %v2780 = vtanh.pop %v2779
  %v2781 = vmul.f32 %v2775, %v2780
  %v2782 = vld [vmem:[#allocation3 + $0xa0] sm:$0xff]
  %v2783 = vld [vmem:[#allocation3 + $0xa8] sm:$0xff]
  %v2784 = vld [vmem:[#allocation3 + $0xb0] sm:$0xff]
  %v2785 = vld [vmem:[#allocation3 + $0xb8] sm:$0xff]
  %v2786 = vpack.c.bf16 %v2781, %v2781
  %2787 = vmatprep.subr.bf16.mxu0 %v2207
  %2788 = vmatpush1.bf16.msra.mxu0 %v2206
  %2789 = vmatprep.subr.bf16.mxu0 %v2203
  %2790 = vmatpush1.bf16.msra.mxu0 %v2202
  %2791 = vmatprep.subr.bf16.mxu0 %v2199
  %2792 = vmatpush1.bf16.msra.mxu0 %v2198
  %2793 = vmatprep.subr.bf16.mxu0 %v2195
  %2794 = vmatpush1.bf16.msra.mxu0 %v2194
  %2795 = vmatprep.subr.bf16.mxu0 %v2191
  %2796 = vmatpush1.bf16.msra.mxu0 %v2190
  %2797 = vmatprep.subr.bf16.mxu0 %v2187
  %2798 = vmatpush1.bf16.msra.mxu0 %v2186
  %2799 = vmatprep.subr.bf16.mxu0 %v2183
  %2800 = vmatpush1.bf16.msra.mxu0 %v2182
  %2801 = vmatprep.subr.bf16.mxu0 %v2179
  %2802 = vmatpush1.bf16.msra.mxu0 %v2178
  %2803 = vmatprep.subr.bf16.mxu0 0
  %2804 = vmatpush2.bf16.msra.mxu0 0
  %2805 = vmatprep.subr.bf16.mxu0 0
  %2806 = vmatpush2.bf16.msra.mxu0 0
  %2807 = vmatprep.subr.bf16.mxu0 0
  %2808 = vmatpush2.bf16.msra.mxu0 0
  %2809 = vmatprep.subr.bf16.mxu0 0
  %2810 = vmatpush2.bf16.msra.mxu0 0
  %2811 = vmatprep.subr.bf16.mxu0 0
  %2812 = vmatpush2.bf16.msra.mxu0 0
  %2813 = vmatprep.subr.bf16.mxu0 0
  %2814 = vmatpush2.bf16.msra.mxu0 0
  %2815 = vmatprep.subr.bf16.mxu0 0
  %2816 = vmatpush2.bf16.msra.mxu0 0
  %2817 = vmatprep.subr.bf16.mxu0 0
  %2818 = vmatpush2.bf16.msra.mxu0 0
  %2819 = vmatprep.mubr.bf16.mxu0 0
  %2820 = vmatmul.mubr.bf16.gmra.mxu0 %v2786
  %v2821 = vpop.f32.mrf.mxu0
  %v2822 = vadd.f32 0.0, %v2821
  %v2823 = vpop.f32.mrf.mxu0
  %v2824 = vadd.f32 0.0, %v2823
  %v2825 = vpop.f32.mrf.mxu0
  %v2826 = vpop.f32.mrf.mxu0
  %2827 = vdwg.mxu0
  %2828 = vmatprep.subr.bf16.mxu0 %v2209
  %2829 = vmatpush1.bf16.msra.mxu0 %v2208
  %2830 = vmatprep.subr.bf16.mxu0 %v2205
  %2831 = vmatpush1.bf16.msra.mxu0 %v2204
  %2832 = vmatprep.subr.bf16.mxu0 %v2201
  %2833 = vmatpush1.bf16.msra.mxu0 %v2200
  %2834 = vmatprep.subr.bf16.mxu0 %v2197
  %2835 = vmatpush1.bf16.msra.mxu0 %v2196
  %2836 = vmatprep.subr.bf16.mxu0 %v2193
  %2837 = vmatpush1.bf16.msra.mxu0 %v2192
  %2838 = vmatprep.subr.bf16.mxu0 %v2189
  %2839 = vmatpush1.bf16.msra.mxu0 %v2188
  %2840 = vmatprep.subr.bf16.mxu0 %v2185
  %2841 = vmatpush1.bf16.msra.mxu0 %v2184
  %2842 = vmatprep.subr.bf16.mxu0 %v2181
  %2843 = vmatpush1.bf16.msra.mxu0 %v2180
  %2844 = vmatprep.subr.bf16.mxu0 0
  %2845 = vmatpush2.bf16.msra.mxu0 0
  %2846 = vmatprep.subr.bf16.mxu0 0
  %2847 = vmatpush2.bf16.msra.mxu0 0
  %2848 = vmatprep.subr.bf16.mxu0 0
  %2849 = vmatpush2.bf16.msra.mxu0 0
  %2850 = vmatprep.subr.bf16.mxu0 0
  %2851 = vmatpush2.bf16.msra.mxu0 0
  %2852 = vmatprep.subr.bf16.mxu0 0
  %2853 = vmatpush2.bf16.msra.mxu0 0
  %2854 = vmatprep.subr.bf16.mxu0 0
  %2855 = vmatpush2.bf16.msra.mxu0 0
  %2856 = vmatprep.subr.bf16.mxu0 0
  %2857 = vmatpush2.bf16.msra.mxu0 0
  %2858 = vmatprep.subr.bf16.mxu0 0
  %2859 = vmatpush2.bf16.msra.mxu0 0
  %2860 = vmatprep.mubr.bf16.mxu0 0
  %2861 = vmatmul.mubr.bf16.gmra.mxu0 %v2786
  %v2862 = vpop.f32.mrf.mxu0
  %v2863 = vadd.f32 0.0, %v2862
  %v2864 = vpop.f32.mrf.mxu0
  %v2865 = vadd.f32 0.0, %v2864
  %v2866 = vpop.f32.mrf.mxu0
  %v2867 = vpop.f32.mrf.mxu0
  %2868 = vdwg.mxu0
  %v2869 = vadd.f32 %v2782, %v2822
  %v2870 = vadd.f32 %v2783, %v2824
  %v2871 = vadd.f32 %v2784, %v2863
  %v2872 = vadd.f32 %v2785, %v2865
  %v2873 = vmul.f32 %v2869, 0.5
  %v2874 = vmul.f32 %v2870, 0.5
  %v2875 = vmul.f32 %v2871, 0.5
  %v2876 = vtanh.pop %v2873
  %v2877 = vtanh.pop %v2874
  %v2878 = vtanh.pop %v2875
  %v2879 = vmul.f32 %v2876, 0.5
  %v2880 = vmul.f32 %v2877, 0.5
  %v2881 = vmul.f32 %v2878, 0.5
  %v2882 = vadd.f32 %v2879, 0.5
  %v2883 = vadd.f32 %v2880, 0.5
  %v2884 = vadd.f32 %v2881, 0.5
  %v2885 = vtanh.pop %v2872
  %v2886 = vmul.f32 %v2883, %v2779
  %v2887 = vmul.f32 %v2882, %v2885
  %v2888 = vadd.f32 %v2886, %v2887
  %v2889 = vtanh.pop %v2888
  %v2890 = vmul.f32 %v2884, %v2889
  %v2891 = vld [vmem:[#allocation3 + $0xc0] sm:$0xff]
  %v2892 = vld [vmem:[#allocation3 + $0xc8] sm:$0xff]
  %v2893 = vld [vmem:[#allocation3 + $0xd0] sm:$0xff]
  %v2894 = vld [vmem:[#allocation3 + $0xd8] sm:$0xff]
  %v2895 = vpack.c.bf16 %v2890, %v2890
  %2896 = vmatprep.subr.bf16.mxu0 %v2207
  %2897 = vmatpush1.bf16.msra.mxu0 %v2206
  %2898 = vmatprep.subr.bf16.mxu0 %v2203
  %2899 = vmatpush1.bf16.msra.mxu0 %v2202
  %2900 = vmatprep.subr.bf16.mxu0 %v2199
  %2901 = vmatpush1.bf16.msra.mxu0 %v2198
  %2902 = vmatprep.subr.bf16.mxu0 %v2195
  %2903 = vmatpush1.bf16.msra.mxu0 %v2194
  %2904 = vmatprep.subr.bf16.mxu0 %v2191
  %2905 = vmatpush1.bf16.msra.mxu0 %v2190
  %2906 = vmatprep.subr.bf16.mxu0 %v2187
  %2907 = vmatpush1.bf16.msra.mxu0 %v2186
  %2908 = vmatprep.subr.bf16.mxu0 %v2183
  %2909 = vmatpush1.bf16.msra.mxu0 %v2182
  %2910 = vmatprep.subr.bf16.mxu0 %v2179
  %2911 = vmatpush1.bf16.msra.mxu0 %v2178
  %2912 = vmatprep.subr.bf16.mxu0 0
  %2913 = vmatpush2.bf16.msra.mxu0 0
  %2914 = vmatprep.subr.bf16.mxu0 0
  %2915 = vmatpush2.bf16.msra.mxu0 0
  %2916 = vmatprep.subr.bf16.mxu0 0
  %2917 = vmatpush2.bf16.msra.mxu0 0
  %2918 = vmatprep.subr.bf16.mxu0 0
  %2919 = vmatpush2.bf16.msra.mxu0 0
  %2920 = vmatprep.subr.bf16.mxu0 0
  %2921 = vmatpush2.bf16.msra.mxu0 0
  %2922 = vmatprep.subr.bf16.mxu0 0
  %2923 = vmatpush2.bf16.msra.mxu0 0
  %2924 = vmatprep.subr.bf16.mxu0 0
  %2925 = vmatpush2.bf16.msra.mxu0 0
  %2926 = vmatprep.subr.bf16.mxu0 0
  %2927 = vmatpush2.bf16.msra.mxu0 0
  %2928 = vmatprep.mubr.bf16.mxu0 0
  %2929 = vmatmul.mubr.bf16.gmra.mxu0 %v2895
  %v2930 = vpop.f32.mrf.mxu0
  %v2931 = vadd.f32 0.0, %v2930
  %v2932 = vpop.f32.mrf.mxu0
  %v2933 = vadd.f32 0.0, %v2932
  %v2934 = vpop.f32.mrf.mxu0
  %v2935 = vpop.f32.mrf.mxu0
  %2936 = vdwg.mxu0
  %2937 = vmatprep.subr.bf16.mxu0 %v2209
  %2938 = vmatpush1.bf16.msra.mxu0 %v2208
  %2939 = vmatprep.subr.bf16.mxu0 %v2205
  %2940 = vmatpush1.bf16.msra.mxu0 %v2204
  %2941 = vmatprep.subr.bf16.mxu0 %v2201
  %2942 = vmatpush1.bf16.msra.mxu0 %v2200
  %2943 = vmatprep.subr.bf16.mxu0 %v2197
  %2944 = vmatpush1.bf16.msra.mxu0 %v2196
  %2945 = vmatprep.subr.bf16.mxu0 %v2193
  %2946 = vmatpush1.bf16.msra.mxu0 %v2192
  %2947 = vmatprep.subr.bf16.mxu0 %v2189
  %2948 = vmatpush1.bf16.msra.mxu0 %v2188
  %2949 = vmatprep.subr.bf16.mxu0 %v2185
  %2950 = vmatpush1.bf16.msra.mxu0 %v2184
  %2951 = vmatprep.subr.bf16.mxu0 %v2181
  %2952 = vmatpush1.bf16.msra.mxu0 %v2180
  %2953 = vmatprep.subr.bf16.mxu0 0
  %2954 = vmatpush2.bf16.msra.mxu0 0
  %2955 = vmatprep.subr.bf16.mxu0 0
  %2956 = vmatpush2.bf16.msra.mxu0 0
  %2957 = vmatprep.subr.bf16.mxu0 0
  %2958 = vmatpush2.bf16.msra.mxu0 0
  %2959 = vmatprep.subr.bf16.mxu0 0
  %2960 = vmatpush2.bf16.msra.mxu0 0
  %2961 = vmatprep.subr.bf16.mxu0 0
  %2962 = vmatpush2.bf16.msra.mxu0 0
  %2963 = vmatprep.subr.bf16.mxu0 0
  %2964 = vmatpush2.bf16.msra.mxu0 0
  %2965 = vmatprep.subr.bf16.mxu0 0
  %2966 = vmatpush2.bf16.msra.mxu0 0
  %2967 = vmatprep.subr.bf16.mxu0 0
  %2968 = vmatpush2.bf16.msra.mxu0 0
  %2969 = vmatprep.mubr.bf16.mxu0 0
  %2970 = vmatmul.mubr.bf16.gmra.mxu0 %v2895
  %v2971 = vpop.f32.mrf.mxu0
  %v2972 = vadd.f32 0.0, %v2971
  %v2973 = vpop.f32.mrf.mxu0
  %v2974 = vadd.f32 0.0, %v2973
  %v2975 = vpop.f32.mrf.mxu0
  %v2976 = vpop.f32.mrf.mxu0
  %2977 = vdwg.mxu0
  %v2978 = vadd.f32 %v2891, %v2931
  %v2979 = vadd.f32 %v2892, %v2933
  %v2980 = vadd.f32 %v2893, %v2972
  %v2981 = vadd.f32 %v2894, %v2974
  %v2982 = vmul.f32 %v2978, 0.5
  %v2983 = vmul.f32 %v2979, 0.5
  %v2984 = vmul.f32 %v2980, 0.5
  %v2985 = vtanh.pop %v2982
  %v2986 = vtanh.pop %v2983
  %v2987 = vtanh.pop %v2984
  %v2988 = vmul.f32 %v2985, 0.5
  %v2989 = vmul.f32 %v2986, 0.5
  %v2990 = vmul.f32 %v2987, 0.5
  %v2991 = vadd.f32 %v2988, 0.5
  %v2992 = vadd.f32 %v2989, 0.5
  %v2993 = vadd.f32 %v2990, 0.5
  %v2994 = vtanh.pop %v2981
  %v2995 = vmul.f32 %v2992, %v2888
  %v2996 = vmul.f32 %v2991, %v2994
  %v2997 = vadd.f32 %v2995, %v2996
  %v2998 = vtanh.pop %v2997
  %v2999 = vmul.f32 %v2993, %v2998
  %v3000 = vpack.c.bf16 %v2454, %v2345
  %v3001 = vpack.c.bf16 %v2672, %v2563
  %v3002 = vpack.c.bf16 %v2890, %v2781
  %v3003 = vpack.c.bf16 %v2999, %v2999
  %v3004 = vld [vmem:[%s9] sm:$0xf]
  %v3005 = vld [vmem:[%s9 + $0x4] sm:$0xf]
  %v3006 = vld [vmem:[%s9 + $0x8] sm:$0xf]
  %v3007 = vld [vmem:[%s9 + $0xc] sm:$0xf]
  %v3008 = vld [vmem:[%s9 + $0x10] sm:$0xf]
  %v3009 = vld [vmem:[%s9 + $0x14] sm:$0xf]
  %v3010 = vld [vmem:[%s9 + $0x18] sm:$0xf]
  %v3011 = vld [vmem:[%s9 + $0x1c] sm:$0xf]
  %v3012 = vld [vmem:[%s9 + $0x20] sm:$0xf]
  %v3013 = vld [vmem:[%s9 + $0x24] sm:$0xf]
  %v3014 = vld [vmem:[%s9 + $0x28] sm:$0xf]
  %v3015 = vld [vmem:[%s9 + $0x2c] sm:$0xf]
  %v3016 = vld [vmem:[%s9 + $0x30] sm:$0xf]
  %v3017 = vld [vmem:[%s9 + $0x34] sm:$0xf]
  %v3018 = vld [vmem:[%s9 + $0x38] sm:$0xf]
  %v3019 = vld [vmem:[%s9 + $0x3c] sm:$0xf]
  %v3020 = vld [vmem:[%s10] sm:$0x1]
  %v3022 = vlaneseq
  %v3023 = vshrl.u32 %v3022, 7
  %v3024 = vsub.s32 0, %v3023
  %v3025 = vrot.slane %v3020, %v3024
  %v3043 = vunpack.c.l.b16 %v3004
  %v3044 = vunpack.c.l.b16 %v3005
  %v3045 = vunpack.c.l.b16 %v3006
  %v3046 = vunpack.c.l.b16 %v3007
  %v3047 = vunpack.c.l.b16 %v3008
  %v3048 = vunpack.c.l.b16 %v3009
  %v3049 = vunpack.c.l.b16 %v3010
  %v3050 = vunpack.c.l.b16 %v3011
  %v3051 = vunpack.c.l.b16 %v3012
  %v3052 = vunpack.c.l.b16 %v3013
  %v3053 = vunpack.c.l.b16 %v3014
  %v3054 = vunpack.c.l.b16 %v3015
  %v3055 = vunpack.c.l.b16 %v3016
  %v3056 = vunpack.c.l.b16 %v3017
  %v3057 = vunpack.c.l.b16 %v3018
  %v3058 = vunpack.c.l.b16 %v3019
  %v3059 = vpack.c.b16 %v3044, %v3043
  %v3060 = vpack.c.b16 %v3046, %v3045
  %v3061 = vpack.c.b16 %v3048, %v3047
  %v3062 = vpack.c.b16 %v3050, %v3049
  %v3063 = vpack.c.b16 %v3052, %v3051
  %v3064 = vpack.c.b16 %v3054, %v3053
  %v3065 = vpack.c.b16 %v3056, %v3055
  %v3066 = vpack.c.b16 %v3058, %v3057
  %3075 = vmatprep.subr.bf16.mxu0 0
  %3076 = vmatpush1.bf16.msra.mxu0 %v3066
  %3077 = vmatprep.subr.bf16.mxu0 0
  %3078 = vmatpush1.bf16.msra.mxu0 %v3065
  %3079 = vmatprep.subr.bf16.mxu0 0
  %3080 = vmatpush1.bf16.msra.mxu0 %v3064
  %3081 = vmatprep.subr.bf16.mxu0 0
  %3082 = vmatpush1.bf16.msra.mxu0 %v3063
  %3083 = vmatprep.subr.bf16.mxu0 0
  %3084 = vmatpush1.bf16.msra.mxu0 %v3062
  %3085 = vmatprep.subr.bf16.mxu0 0
  %3086 = vmatpush1.bf16.msra.mxu0 %v3061
  %3087 = vmatprep.subr.bf16.mxu0 0
  %3088 = vmatpush1.bf16.msra.mxu0 %v3060
  %3089 = vmatprep.subr.bf16.mxu0 0
  %3090 = vmatpush1.bf16.msra.mxu0 %v3059
  %3091 = vmatprep.subr.bf16.mxu0 0
  %3092 = vmatpush2.bf16.msra.mxu0 0
  %3093 = vmatprep.subr.bf16.mxu0 0
  %3094 = vmatpush2.bf16.msra.mxu0 0
  %3095 = vmatprep.subr.bf16.mxu0 0
  %3096 = vmatpush2.bf16.msra.mxu0 0
  %3097 = vmatprep.subr.bf16.mxu0 0
  %3098 = vmatpush2.bf16.msra.mxu0 0
  %3099 = vmatprep.subr.bf16.mxu0 0
  %3100 = vmatpush2.bf16.msra.mxu0 0
  %3101 = vmatprep.subr.bf16.mxu0 0
  %3102 = vmatpush2.bf16.msra.mxu0 0
  %3103 = vmatprep.subr.bf16.mxu0 0
  %3104 = vmatpush2.bf16.msra.mxu0 0
  %3105 = vmatprep.subr.bf16.mxu0 0
  %3106 = vmatpush2.bf16.msra.mxu0 0
  %3107 = vmatprep.mubr.bf16.mxu0 0
  %3108 = vmatmul.mubr.bf16.gmra.mxu0 %v3000
  %v3109 = vpop.f32.mrf.mxu0
  %v3110 = vadd.f32 %v3025, %v3109
  %v3111 = vpop.f32.mrf.mxu0
  %v3112 = vpop.f32.mrf.mxu0
  %v3113 = vadd.f32 %v3025, %v3112
  %v3114 = vpop.f32.mrf.mxu0
  %3115 = vmatprep.mubr.bf16.mxu0 0
  %3116 = vmatmul.mubr.bf16.gmra.mxu0 %v3001
  %v3117 = vpop.f32.mrf.mxu0
  %v3118 = vadd.f32 %v3025, %v3117
  %v3119 = vpop.f32.mrf.mxu0
  %v3120 = vpop.f32.mrf.mxu0
  %v3121 = vadd.f32 %v3025, %v3120
  %v3122 = vpop.f32.mrf.mxu0
  %3123 = vmatprep.mubr.bf16.mxu0 0
  %3124 = vmatmul.mubr.bf16.gmra.mxu0 %v3002
  %v3125 = vpop.f32.mrf.mxu0
  %v3126 = vadd.f32 %v3025, %v3125
  %v3127 = vpop.f32.mrf.mxu0
  %v3128 = vpop.f32.mrf.mxu0
  %v3129 = vadd.f32 %v3025, %v3128
  %v3130 = vpop.f32.mrf.mxu0
  %3131 = vmatprep.mubr.bf16.mxu0 0
  %3132 = vmatmul.mubr.bf16.gmra.mxu0 %v3003
  %v3133 = vpop.f32.mrf.mxu0
  %v3134 = vadd.f32 %v3025, %v3133
  %v3135 = vpop.f32.mrf.mxu0
  %v3136 = vpop.f32.mrf.mxu0
  %v3137 = vpop.f32.mrf.mxu0
  %3138 = vdwg.mxu0
  %v3139 = vlaneseq
  %v3140 = vand.u32 %v3139, 127
  %vm3141 = vcmp.lt.s32.totalorder %v3140, 7
  %v3142 = vsel %vm3141, 1, 0
  %vm3143 = vcmp.eq.s32.totalorder %v3142, 1
  %v3144 = vsel %vm3143, %v3110, -1e+30
  %v3145 = vsel %vm3143, %v3113, -1e+30
  %v3146 = vsel %vm3143, %v3118, -1e+30
  %v3147 = vsel %vm3143, %v3121, -1e+30
  %v3148 = vsel %vm3143, %v3126, -1e+30
  %v3149 = vsel %vm3143, %v3129, -1e+30
  %v3150 = vsel %vm3143, %v3134, -1e+30
  %3151 = vmax.xlane.f32.xlu0 %v3144
  %v3152 = vpop.xlane.xlu0 %3151
  %3153 = vmax.xlane.f32.xlu0 %v3145
  %v3154 = vpop.xlane.xlu0 %3153
  %3155 = vmax.xlane.f32.xlu0 %v3146
  %v3156 = vpop.xlane.xlu0 %3155
  %3157 = vmax.xlane.f32.xlu0 %v3147
  %v3158 = vpop.xlane.xlu0 %3157
  %3159 = vmax.xlane.f32.xlu0 %v3148
  %v3160 = vpop.xlane.xlu0 %3159
  %3161 = vmax.xlane.f32.xlu0 %v3149
  %v3162 = vpop.xlane.xlu0 %3161
  %3163 = vmax.xlane.f32.xlu0 %v3150
  %v3164 = vpop.xlane.xlu0 %3163
  %v3165 = vsub.f32 %v3144, %v3152
  %v3166 = vsub.f32 %v3145, %v3154
  %v3167 = vsub.f32 %v3146, %v3156
  %v3168 = vsub.f32 %v3147, %v3158
  %v3169 = vsub.f32 %v3148, %v3160
  %v3170 = vsub.f32 %v3149, %v3162
  %v3171 = vsub.f32 %v3150, %v3164
  %v3172 = vmul.f32 %v3165, 1.442695
  %v3173 = vpow.pop %v3172
  %v3174 = vmul.f32 %v3166, 1.442695
  %v3175 = vpow.pop %v3174
  %v3176 = vmul.f32 %v3167, 1.442695
  %v3177 = vpow.pop %v3176
  %v3178 = vmul.f32 %v3168, 1.442695
  %v3179 = vpow.pop %v3178
  %v3180 = vmul.f32 %v3169, 1.442695
  %v3181 = vpow.pop %v3180
  %v3182 = vmul.f32 %v3170, 1.442695
  %v3183 = vpow.pop %v3182
  %v3184 = vmul.f32 %v3171, 1.442695
  %v3185 = vpow.pop %v3184
  %3186 = vadd.xlane.f32.xlu0 %v3173
  %v3187 = vpop.xlane.xlu0 %3186
  %3188 = vadd.xlane.f32.xlu0 %v3175
  %v3189 = vpop.xlane.xlu0 %3188
  %3190 = vadd.xlane.f32.xlu0 %v3177
  %v3191 = vpop.xlane.xlu0 %3190
  %3192 = vadd.xlane.f32.xlu0 %v3179
  %v3193 = vpop.xlane.xlu0 %3192
  %3194 = vadd.xlane.f32.xlu0 %v3181
  %v3195 = vpop.xlane.xlu0 %3194
  %3196 = vadd.xlane.f32.xlu0 %v3183
  %v3197 = vpop.xlane.xlu0 %3196
  %3198 = vadd.xlane.f32.xlu0 %v3185
  %v3199 = vpop.xlane.xlu0 %3198
  %v3200 = vlog2.pop %v3187
  %v3201 = vmul.f32 %v3200, 0.6931472
  %v3202 = vlog2.pop %v3189
  %v3203 = vmul.f32 %v3202, 0.6931472
  %v3204 = vlog2.pop %v3191
  %v3205 = vmul.f32 %v3204, 0.6931472
  %v3206 = vlog2.pop %v3193
  %v3207 = vmul.f32 %v3206, 0.6931472
  %v3208 = vlog2.pop %v3195
  %v3209 = vmul.f32 %v3208, 0.6931472
  %v3210 = vlog2.pop %v3197
  %v3211 = vmul.f32 %v3210, 0.6931472
  %v3212 = vlog2.pop %v3199
  %v3213 = vmul.f32 %v3212, 0.6931472
  %v3214 = vsub.f32 %v3165, %v3201
  %v3215 = vsub.f32 %v3166, %v3203
  %v3216 = vsub.f32 %v3167, %v3205
  %v3217 = vsub.f32 %v3168, %v3207
  %v3218 = vsub.f32 %v3169, %v3209
  %v3219 = vsub.f32 %v3170, %v3211
  %v3220 = vsub.f32 %v3171, %v3213
  %3221 = vst [vmem:[%s11] sm:$0xff] %v3214
  %3222 = vst [vmem:[%s11 + $0x8] sm:$0xff] %v3215
  %3223 = vst [vmem:[%s11 + $0x10] sm:$0xff] %v3216
  %3224 = vst [vmem:[%s11 + $0x18] sm:$0xff] %v3217
  %3225 = vst [vmem:[%s11 + $0x20] sm:$0xff] %v3218
  %3226 = vst [vmem:[%s11 + $0x28] sm:$0xff] %v3219
  %3227 = vst [vmem:[%s11 + $0x30] sm:$0xff] %v3220
  // Predicated region
  $region42: #{seq2seq_lstm_forward.1} parent=0 // pred_check
    _
  $region43: #{seq2seq_lstm_forward.1} parent=0 // pred_check_branch
    %3229 = sbr.rel (0) target = $region45
  $region44: #{seq2seq_lstm_forward.1} parent=0 // pred_region
    _
  $region45: #{seq2seq_lstm_forward.1} parent=0 // pred_fallthru
    _
  // Predicated region
  $region46: #{seq2seq_lstm_forward.1} parent=0 // pred_check
    _
  $region47: #{seq2seq_lstm_forward.1} parent=0 // pred_check_branch
    %3231 = sbr.rel (0) target = $region49
  $region48: #{seq2seq_lstm_forward.1} parent=0 // pred_region
    _
  $region49: #{seq2seq_lstm_forward.1} parent=0 // pred_fallthru
    _

</llo_original>
